<compile_context>
chip_gen: v6e
topology: v6e:2x2x1
jax: 0.10.0
libtpu: 0.0.40
codegen_flags: <defaults>
</compile_context>

<pallas_src>
import jax
import jax.numpy as jnp
from jax import lax
import numpy as np
from jax.experimental import pallas as pl
from jax.experimental.pallas import tpu as pltpu


# ------------------------- Fused classifier kernel ---------------------------
def make_fused_kernel(B, T, D, H, L, C):
    """Fused LSTM(L layers) + FC + LogSoftmax kernel (single grid point).

    Ref layout (all full-array VMEM blocks):
      x_ref   : [B*T, D]  f32   batch-first rows (row = b*T + t)
      wih_ref : [L, H, 4H] bf16 (layer-0 rows D..H-1 zero-padded)
      whh_ref : [L, H, 4H] bf16
      b_ref   : [L, 4H]    f32  (b_ih + b_hh)
      fcw_ref : [H, C]     bf16
      fcb_ref : [1, C]     f32
      out_ref : [B, C]     f32
    """

    def kernel(x_ref, wih_ref, whh_ref, b_ref, fcw_ref, fcb_ref, out_ref):
        # ---- Layer-0 input projection, hoisted over all B*T rows (this and
        #      the de-interleave below are entirely off the recurrent path). --
        x_bf = x_ref[...].astype(jnp.bfloat16)                    # [B*T, D]
        wih0 = wih_ref[0][:D, :]                                  # [D, 4H] bf16
        proj0 = jnp.dot(x_bf, wih0,
                        preferred_element_type=jnp.float32) + b_ref[0:1, :]  # [B*T,4H]

        # Row b*T + t  ->  per-step [B, 4H] blocks (bias already folded in).
        xs = [
            jnp.concatenate(
                [proj0[b * T + t: b * T + t + 1, :] for b in range(B)], axis=0)
            for t in range(T)
        ]

        # ---- Fully unrolled LSTM stack with wavefront dependences ------------
        # gates_{l,t} depends only on h_{l-1,t} and h_{l,t-1}; the LLO
        # scheduler can overlap layers along the (l, t) diagonals.
        seq = xs          # layer-0 inputs are already projected (+bias)
        h = None
        for l in range(L):
            whh = whh_ref[l]                                      # [H, 4H] bf16
            wih = wih_ref[l] if l > 0 else None                   # [H, 4H] bf16
            b_l = b_ref[l:l + 1, :] if l > 0 else None            # [1, 4H] f32
            c = None
            outs = []
            for t in range(T):                                    # T static -> unrolled
                if l == 0:
                    g_in = seq[t]                                  # x@Wih + b
                else:
                    g_in = jnp.dot(seq[t], wih,
                                   preferred_element_type=jnp.float32) + b_l
                if t == 0:
                    gates = g_in                                   # h_{-1} = 0
                else:
                    gates = g_in + jnp.dot(h.astype(jnp.bfloat16), whh,
                                           preferred_element_type=jnp.float32)
                # Two full-width EUP pushes, then slice out i/f/g/o.
                sig = jax.nn.sigmoid(gates)                        # [B, 4H]
                th = jnp.tanh(gates)                               # [B, 4H]
                i_g = sig[:, 0 * H:1 * H]
                f_g = sig[:, 1 * H:2 * H]
                g_g = th[:, 2 * H:3 * H]
                o_g = sig[:, 3 * H:4 * H]
                c = i_g * g_g if t == 0 else f_g * c + i_g * g_g   # c_{-1} = 0
                h = o_g * jnp.tanh(c)
                if l < L - 1:
                    outs.append(h.astype(jnp.bfloat16))            # SSA, stays in vregs
            seq = outs

        # ---- FC + LogSoftmax(dim=1) on the last hidden state of the top layer.
        logits = jnp.dot(h.astype(jnp.bfloat16), fcw_ref[...],
                         preferred_element_type=jnp.float32) + fcb_ref[...]   # [B, C]
        m = jnp.max(logits, axis=1, keepdims=True)
        z = logits - m
        lse = jnp.log(jnp.sum(jnp.exp(z), axis=1, keepdims=True))
        out_ref[...] = z - lse

    return kernel


def classifier_forward(x_btd, params):
    """x_btd: [B, T, D] (batch_first, like the PyTorch module). Returns [B, C]."""
    B, T, D = x_btd.shape
    wih_all = params["wih_all"]          # [L, H, 4H] bf16
    whh_all = params["whh_all"]          # [L, H, 4H] bf16
    b_all = params["b_all"]              # [L, 4H]    f32
    fcw = params["fc_w_bf"]              # [H, C]     bf16
    fcb = params["fc_b"]                 # [1, C]     f32
    L, H, G = wih_all.shape
    C = fcw.shape[1]

    # Dims-collapse reshape only (bitcast under jit): no transpose/pad prep op,
    # no extra HBM round trip before the kernel.
    x_flat = x_btd.reshape(B * T, D).astype(jnp.float32)

    kernel = make_fused_kernel(B=B, T=T, D=D, H=H, L=L, C=C)
    return pl.pallas_call(
        kernel,
        out_shape=jax.ShapeDtypeStruct((B, C), jnp.float32),
        grid=(1,),
        in_specs=[
            pl.BlockSpec((B * T, D), lambda i: (0, 0)),
            pl.BlockSpec((L, H, G), lambda i: (0, 0, 0)),
            pl.BlockSpec((L, H, G), lambda i: (0, 0, 0)),
            pl.BlockSpec((L, G), lambda i: (0, 0)),
            pl.BlockSpec((H, C), lambda i: (0, 0)),
            pl.BlockSpec((1, C), lambda i: (0, 0)),
        ],
        out_specs=pl.BlockSpec((B, C), lambda i: (0, 0)),
        compiler_params=pltpu.CompilerParams(
            dimension_semantics=("arbitrary",)),
    )(x_flat, wih_all, whh_all, b_all, fcw, fcb)


# ----------------------- Deterministic parameter init ------------------------
def init_params(key, input_dim, hidden_dim, layer_count, class_count):
    """PyTorch-style LSTM/Linear init.

    Returns both the f32 reference parameters and the packed bf16 kernel
    parameters (wih_all/whh_all stacked per layer, layer-0 W_ih zero-padded
    from input_dim -> hidden_dim rows).
    """
    H = hidden_dim
    k = 1.0 / np.sqrt(H)
    ref_lstm = []
    wih_pack, whh_pack, b_pack = [], [], []
    for layer in range(layer_count):
        din = input_dim if layer == 0 else H
        key, k1, k2, k3, k4 = jax.random.split(key, 5)
        w_ih = jax.random.uniform(k1, (4 * H, din), jnp.float32, -k, k)
        w_hh = jax.random.uniform(k2, (4 * H, H), jnp.float32, -k, k)
        b_ih = jax.random.uniform(k3, (4 * H,), jnp.float32, -k, k)
        b_hh = jax.random.uniform(k4, (4 * H,), jnp.float32, -k, k)
        w_ih_t = w_ih.T                              # [din, 4H]
        w_hh_t = w_hh.T                              # [H, 4H]
        bias = (b_ih + b_hh).reshape(1, 4 * H)
        ref_lstm.append((w_ih_t, w_hh_t, bias))
        wih_pack.append(jnp.zeros((H, 4 * H), jnp.float32).at[:din, :].set(w_ih_t))
        whh_pack.append(w_hh_t)
        b_pack.append(bias[0])

    key, k5, k6 = jax.random.split(key, 3)
    fc_w = jax.random.uniform(k5, (class_count, H), jnp.float32, -k, k)
    fc_b = jax.random.uniform(k6, (class_count,), jnp.float32, -k, k)

    return {
        # f32 reference params
        "lstm": ref_lstm,
        "fc_w_t": fc_w.T,                                  # [H, C] f32
        "fc_b": fc_b.reshape(1, class_count),              # [1, C] f32
        # packed kernel params (bf16 matmul operands, f32 biases)
        "wih_all": jnp.stack(wih_pack).astype(jnp.bfloat16),   # [L, H, 4H]
        "whh_all": jnp.stack(whh_pack).astype(jnp.bfloat16),   # [L, H, 4H]
        "b_all": jnp.stack(b_pack),                             # [L, 4H] f32
        "fc_w_bf": fc_w.T.astype(jnp.bfloat16),                 # [H, C]
    }


# ------------------------------- JAX reference --------------------------------
def reference_forward(x_btd, params):
    x = jnp.transpose(x_btd, (1, 0, 2)).astype(jnp.float32)  # [T, B, D]
    B = x.shape[1]
    for (w_ih_t, w_hh_t, b) in params["lstm"]:
        H = w_hh_t.shape[0]
        h0 = jnp.zeros((B, H), jnp.float32)
        c0 = jnp.zeros((B, H), jnp.float32)

        def step(carry, x_t):
            h, c = carry
            gates = (
                jnp.dot(x_t, w_ih_t, precision=lax.Precision.HIGHEST)
                + jnp.dot(h, w_hh_t, precision=lax.Precision.HIGHEST)
                + b
            )
            i = jax.nn.sigmoid(gates[:, 0 * H:1 * H])
            f = jax.nn.sigmoid(gates[:, 1 * H:2 * H])
            g = jnp.tanh(gates[:, 2 * H:3 * H])
            o = jax.nn.sigmoid(gates[:, 3 * H:4 * H])
            c_new = f * c + i * g
            h_new = o * jnp.tanh(c_new)
            return (h_new, c_new), h_new

        (_, _), outs = lax.scan(step, (h0, c0), x)
        x = outs
    h_last = x[-1]
    logits = jnp.dot(h_last, params["fc_w_t"],
                     precision=lax.Precision.HIGHEST) + params["fc_b"]
    return jax.nn.log_softmax(logits, axis=1)


if __name__ == "__main__":
    # Small shapes consistent with the module: batch=2, seq=8, input_dim=16,
    # hidden_dim=32, layer_count=3, class_count=4.
    B, T, D, H, L, C = 2, 8, 16, 32, 3, 4

    key = jax.random.PRNGKey(0)
    key, kx, kp = jax.random.split(key, 3)
    x = jax.random.normal(kx, (B, T, D), jnp.float32)
    params = init_params(kp, D, H, L, C)

    fwd = jax.jit(classifier_forward)
    y = jax.block_until_ready(fwd(x, params))

    y_ref = jax.block_until_ready(reference_forward(x, params))
    np.testing.assert_allclose(np.asarray(y), np.asarray(y_ref),
                               rtol=1e-2, atol=1e-2)

    assert y.shape == (B, C)
    print("KERNEL_OK")
</pallas_src>

<mosaic_0001>
module attributes {stable_mosaic.version = 11 : i64} {
  func.func @kernel(%arg0: i32, %arg1: memref<16x16xf32, #tpu.memory_space<vmem>>, %arg2: memref<3x32x128xbf16, #tpu.memory_space<vmem>>, %arg3: memref<3x32x128xbf16, #tpu.memory_space<vmem>>, %arg4: memref<3x128xf32, #tpu.memory_space<vmem>>, %arg5: memref<32x4xbf16, #tpu.memory_space<vmem>>, %arg6: memref<1x4xf32, #tpu.memory_space<vmem>>, %arg7: memref<2x4xf32, #tpu.memory_space<vmem>>) attributes {dimension_semantics = [#tpu.dimension_semantics<arbitrary>], iteration_bounds = array<i64: 1>, scalar_prefetch = 0 : i64, scratch_operands = 0 : i64, tpu.core_type = #tpu.core_type<tc>, window_params = [{pipeline_mode = #tpu.pipeline_mode<synchronous>, transform_indices = @transform_0, window_bounds = array<i64: 16, 16>}, {pipeline_mode = #tpu.pipeline_mode<synchronous>, transform_indices = @transform_1, window_bounds = array<i64: 3, 32, 128>}, {pipeline_mode = #tpu.pipeline_mode<synchronous>, transform_indices = @transform_2, window_bounds = array<i64: 3, 32, 128>}, {pipeline_mode = #tpu.pipeline_mode<synchronous>, transform_indices = @transform_3, window_bounds = array<i64: 3, 128>}, {pipeline_mode = #tpu.pipeline_mode<synchronous>, transform_indices = @transform_4, window_bounds = array<i64: 32, 4>}, {pipeline_mode = #tpu.pipeline_mode<synchronous>, transform_indices = @transform_5, window_bounds = array<i64: 1, 4>}, {pipeline_mode = #tpu.pipeline_mode<synchronous>, transform_indices = @transform_6, window_bounds = array<i64: 2, 4>}]} {
    %c0 = arith.constant 0 : index
    %c0_0 = arith.constant 0 : index
    %0 = vector.load %arg1[%c0, %c0_0] : memref<16x16xf32, #tpu.memory_space<vmem>>, vector<16x16xf32>
    %1 = arith.truncf %0 : vector<16x16xf32> to vector<16x16xbf16>
    %c0_1 = arith.constant 0 : index
    %c0_2 = arith.constant 0 : index
    %c0_3 = arith.constant 0 : index
    %2 = vector.load %arg2[%c0_1, %c0_2, %c0_3] : memref<3x32x128xbf16, #tpu.memory_space<vmem>>, vector<1x32x128xbf16>
    %3 = vector.shape_cast %2 : vector<1x32x128xbf16> to vector<32x128xbf16>
    %4 = vector.extract_strided_slice %3 {offsets = [0, 0], sizes = [16, 128], strides = [1, 1]} : vector<32x128xbf16> to vector<16x128xbf16>
    %cst = arith.constant dense<0.000000e+00> : vector<16x128xf32>
    %5 = tpu.matmul %1, %4, %cst {dimension_numbers = #tpu.dot_dimension_numbers<[1], [0], [0], [1], [0, 0, 1, 1], [], []>} : vector<16x16xbf16>, vector<16x128xbf16>, vector<16x128xf32> -> vector<16x128xf32>
    %c0_4 = arith.constant 0 : index
    %c0_5 = arith.constant 0 : index
    %6 = vector.load %arg4[%c0_4, %c0_5] : memref<3x128xf32, #tpu.memory_space<vmem>>, vector<1x128xf32>
    %7 = vector.broadcast %6 : vector<1x128xf32> to vector<16x128xf32>
    %8 = arith.addf %5, %7 : vector<16x128xf32>
    %9 = vector.extract_strided_slice %8 {offsets = [0, 0], sizes = [1, 128], strides = [1, 1]} : vector<16x128xf32> to vector<1x128xf32>
    %10 = vector.extract_strided_slice %8 {offsets = [8, 0], sizes = [1, 128], strides = [1, 1]} : vector<16x128xf32> to vector<1x128xf32>
    %11 = tpu.concatenate %9, %10 in 0 : vector<1x128xf32>, vector<1x128xf32> -> vector<2x128xf32>
    %12 = vector.extract_strided_slice %8 {offsets = [1, 0], sizes = [1, 128], strides = [1, 1]} : vector<16x128xf32> to vector<1x128xf32>
    %13 = vector.extract_strided_slice %8 {offsets = [9, 0], sizes = [1, 128], strides = [1, 1]} : vector<16x128xf32> to vector<1x128xf32>
    %14 = tpu.concatenate %12, %13 in 0 : vector<1x128xf32>, vector<1x128xf32> -> vector<2x128xf32>
    %15 = vector.extract_strided_slice %8 {offsets = [2, 0], sizes = [1, 128], strides = [1, 1]} : vector<16x128xf32> to vector<1x128xf32>
    %16 = vector.extract_strided_slice %8 {offsets = [10, 0], sizes = [1, 128], strides = [1, 1]} : vector<16x128xf32> to vector<1x128xf32>
    %17 = tpu.concatenate %15, %16 in 0 : vector<1x128xf32>, vector<1x128xf32> -> vector<2x128xf32>
    %18 = vector.extract_strided_slice %8 {offsets = [3, 0], sizes = [1, 128], strides = [1, 1]} : vector<16x128xf32> to vector<1x128xf32>
    %19 = vector.extract_strided_slice %8 {offsets = [11, 0], sizes = [1, 128], strides = [1, 1]} : vector<16x128xf32> to vector<1x128xf32>
    %20 = tpu.concatenate %18, %19 in 0 : vector<1x128xf32>, vector<1x128xf32> -> vector<2x128xf32>
    %21 = vector.extract_strided_slice %8 {offsets = [4, 0], sizes = [1, 128], strides = [1, 1]} : vector<16x128xf32> to vector<1x128xf32>
    %22 = vector.extract_strided_slice %8 {offsets = [12, 0], sizes = [1, 128], strides = [1, 1]} : vector<16x128xf32> to vector<1x128xf32>
    %23 = tpu.concatenate %21, %22 in 0 : vector<1x128xf32>, vector<1x128xf32> -> vector<2x128xf32>
    %24 = vector.extract_strided_slice %8 {offsets = [5, 0], sizes = [1, 128], strides = [1, 1]} : vector<16x128xf32> to vector<1x128xf32>
    %25 = vector.extract_strided_slice %8 {offsets = [13, 0], sizes = [1, 128], strides = [1, 1]} : vector<16x128xf32> to vector<1x128xf32>
    %26 = tpu.concatenate %24, %25 in 0 : vector<1x128xf32>, vector<1x128xf32> -> vector<2x128xf32>
    %27 = vector.extract_strided_slice %8 {offsets = [6, 0], sizes = [1, 128], strides = [1, 1]} : vector<16x128xf32> to vector<1x128xf32>
    %28 = vector.extract_strided_slice %8 {offsets = [14, 0], sizes = [1, 128], strides = [1, 1]} : vector<16x128xf32> to vector<1x128xf32>
    %29 = tpu.concatenate %27, %28 in 0 : vector<1x128xf32>, vector<1x128xf32> -> vector<2x128xf32>
    %30 = vector.extract_strided_slice %8 {offsets = [7, 0], sizes = [1, 128], strides = [1, 1]} : vector<16x128xf32> to vector<1x128xf32>
    %31 = vector.extract_strided_slice %8 {offsets = [15, 0], sizes = [1, 128], strides = [1, 1]} : vector<16x128xf32> to vector<1x128xf32>
    %32 = tpu.concatenate %30, %31 in 0 : vector<1x128xf32>, vector<1x128xf32> -> vector<2x128xf32>
    %c0_6 = arith.constant 0 : index
    %c0_7 = arith.constant 0 : index
    %c0_8 = arith.constant 0 : index
    %33 = vector.load %arg3[%c0_6, %c0_7, %c0_8] : memref<3x32x128xbf16, #tpu.memory_space<vmem>>, vector<1x32x128xbf16>
    %34 = vector.shape_cast %33 : vector<1x32x128xbf16> to vector<32x128xbf16>
    %35 = arith.negf %11 : vector<2x128xf32>
    %36 = math.exp %35 : vector<2x128xf32>
    %cst_9 = arith.constant 1.000000e+00 : f32
    %37 = vector.broadcast %cst_9 : f32 to vector<2x128xf32>
    %38 = arith.addf %37, %36 : vector<2x128xf32>
    %39 = arith.divf %37, %38 : vector<2x128xf32>
    %40 = math.tanh %11 : vector<2x128xf32>
    %41 = vector.extract_strided_slice %39 {offsets = [0, 0], sizes = [2, 32], strides = [1, 1]} : vector<2x128xf32> to vector<2x32xf32>
    %42 = vector.extract_strided_slice %40 {offsets = [0, 64], sizes = [2, 32], strides = [1, 1]} : vector<2x128xf32> to vector<2x32xf32>
    %43 = vector.extract_strided_slice %39 {offsets = [0, 96], sizes = [2, 32], strides = [1, 1]} : vector<2x128xf32> to vector<2x32xf32>
    %44 = arith.mulf %41, %42 : vector<2x32xf32>
    %45 = math.tanh %44 : vector<2x32xf32>
    %46 = arith.mulf %43, %45 : vector<2x32xf32>
    %47 = arith.truncf %46 : vector<2x32xf32> to vector<2x32xbf16>
    %48 = arith.truncf %46 : vector<2x32xf32> to vector<2x32xbf16>
    %cst_10 = arith.constant dense<0.000000e+00> : vector<2x128xf32>
    %49 = tpu.matmul %48, %34, %cst_10 {dimension_numbers = #tpu.dot_dimension_numbers<[1], [0], [0], [1], [0, 0, 1, 1], [], []>} : vector<2x32xbf16>, vector<32x128xbf16>, vector<2x128xf32> -> vector<2x128xf32>
    %50 = arith.addf %14, %49 : vector<2x128xf32>
    %51 = arith.negf %50 : vector<2x128xf32>
    %52 = math.exp %51 : vector<2x128xf32>
    %cst_11 = arith.constant 1.000000e+00 : f32
    %53 = vector.broadcast %cst_11 : f32 to vector<2x128xf32>
    %54 = arith.addf %53, %52 : vector<2x128xf32>
    %55 = arith.divf %53, %54 : vector<2x128xf32>
    %56 = math.tanh %50 : vector<2x128xf32>
    %57 = vector.extract_strided_slice %55 {offsets = [0, 0], sizes = [2, 32], strides = [1, 1]} : vector<2x128xf32> to vector<2x32xf32>
    %58 = vector.extract_strided_slice %55 {offsets = [0, 32], sizes = [2, 32], strides = [1, 1]} : vector<2x128xf32> to vector<2x32xf32>
    %59 = vector.extract_strided_slice %56 {offsets = [0, 64], sizes = [2, 32], strides = [1, 1]} : vector<2x128xf32> to vector<2x32xf32>
    %60 = vector.extract_strided_slice %55 {offsets = [0, 96], sizes = [2, 32], strides = [1, 1]} : vector<2x128xf32> to vector<2x32xf32>
    %61 = arith.mulf %58, %44 : vector<2x32xf32>
    %62 = arith.mulf %57, %59 : vector<2x32xf32>
    %63 = arith.addf %61, %62 : vector<2x32xf32>
    %64 = math.tanh %63 : vector<2x32xf32>
    %65 = arith.mulf %60, %64 : vector<2x32xf32>
    %66 = arith.truncf %65 : vector<2x32xf32> to vector<2x32xbf16>
    %67 = arith.truncf %65 : vector<2x32xf32> to vector<2x32xbf16>
    %cst_12 = arith.constant dense<0.000000e+00> : vector<2x128xf32>
    %68 = tpu.matmul %67, %34, %cst_12 {dimension_numbers = #tpu.dot_dimension_numbers<[1], [0], [0], [1], [0, 0, 1, 1], [], []>} : vector<2x32xbf16>, vector<32x128xbf16>, vector<2x128xf32> -> vector<2x128xf32>
    %69 = arith.addf %17, %68 : vector<2x128xf32>
    %70 = arith.negf %69 : vector<2x128xf32>
    %71 = math.exp %70 : vector<2x128xf32>
    %cst_13 = arith.constant 1.000000e+00 : f32
    %72 = vector.broadcast %cst_13 : f32 to vector<2x128xf32>
    %73 = arith.addf %72, %71 : vector<2x128xf32>
    %74 = arith.divf %72, %73 : vector<2x128xf32>
    %75 = math.tanh %69 : vector<2x128xf32>
    %76 = vector.extract_strided_slice %74 {offsets = [0, 0], sizes = [2, 32], strides = [1, 1]} : vector<2x128xf32> to vector<2x32xf32>
    %77 = vector.extract_strided_slice %74 {offsets = [0, 32], sizes = [2, 32], strides = [1, 1]} : vector<2x128xf32> to vector<2x32xf32>
    %78 = vector.extract_strided_slice %75 {offsets = [0, 64], sizes = [2, 32], strides = [1, 1]} : vector<2x128xf32> to vector<2x32xf32>
    %79 = vector.extract_strided_slice %74 {offsets = [0, 96], sizes = [2, 32], strides = [1, 1]} : vector<2x128xf32> to vector<2x32xf32>
    %80 = arith.mulf %77, %63 : vector<2x32xf32>
    %81 = arith.mulf %76, %78 : vector<2x32xf32>
    %82 = arith.addf %80, %81 : vector<2x32xf32>
    %83 = math.tanh %82 : vector<2x32xf32>
    %84 = arith.mulf %79, %83 : vector<2x32xf32>
    %85 = arith.truncf %84 : vector<2x32xf32> to vector<2x32xbf16>
    %86 = arith.truncf %84 : vector<2x32xf32> to vector<2x32xbf16>
    %cst_14 = arith.constant dense<0.000000e+00> : vector<2x128xf32>
    %87 = tpu.matmul %86, %34, %cst_14 {dimension_numbers = #tpu.dot_dimension_numbers<[1], [0], [0], [1], [0, 0, 1, 1], [], []>} : vector<2x32xbf16>, vector<32x128xbf16>, vector<2x128xf32> -> vector<2x128xf32>
    %88 = arith.addf %20, %87 : vector<2x128xf32>
    %89 = arith.negf %88 : vector<2x128xf32>
    %90 = math.exp %89 : vector<2x128xf32>
    %cst_15 = arith.constant 1.000000e+00 : f32
    %91 = vector.broadcast %cst_15 : f32 to vector<2x128xf32>
    %92 = arith.addf %91, %90 : vector<2x128xf32>
    %93 = arith.divf %91, %92 : vector<2x128xf32>
    %94 = math.tanh %88 : vector<2x128xf32>
    %95 = vector.extract_strided_slice %93 {offsets = [0, 0], sizes = [2, 32], strides = [1, 1]} : vector<2x128xf32> to vector<2x32xf32>
    %96 = vector.extract_strided_slice %93 {offsets = [0, 32], sizes = [2, 32], strides = [1, 1]} : vector<2x128xf32> to vector<2x32xf32>
    %97 = vector.extract_strided_slice %94 {offsets = [0, 64], sizes = [2, 32], strides = [1, 1]} : vector<2x128xf32> to vector<2x32xf32>
    %98 = vector.extract_strided_slice %93 {offsets = [0, 96], sizes = [2, 32], strides = [1, 1]} : vector<2x128xf32> to vector<2x32xf32>
    %99 = arith.mulf %96, %82 : vector<2x32xf32>
    %100 = arith.mulf %95, %97 : vector<2x32xf32>
    %101 = arith.addf %99, %100 : vector<2x32xf32>
    %102 = math.tanh %101 : vector<2x32xf32>
    %103 = arith.mulf %98, %102 : vector<2x32xf32>
    %104 = arith.truncf %103 : vector<2x32xf32> to vector<2x32xbf16>
    %105 = arith.truncf %103 : vector<2x32xf32> to vector<2x32xbf16>
    %cst_16 = arith.constant dense<0.000000e+00> : vector<2x128xf32>
    %106 = tpu.matmul %105, %34, %cst_16 {dimension_numbers = #tpu.dot_dimension_numbers<[1], [0], [0], [1], [0, 0, 1, 1], [], []>} : vector<2x32xbf16>, vector<32x128xbf16>, vector<2x128xf32> -> vector<2x128xf32>
    %107 = arith.addf %23, %106 : vector<2x128xf32>
    %108 = arith.negf %107 : vector<2x128xf32>
    %109 = math.exp %108 : vector<2x128xf32>
    %cst_17 = arith.constant 1.000000e+00 : f32
    %110 = vector.broadcast %cst_17 : f32 to vector<2x128xf32>
    %111 = arith.addf %110, %109 : vector<2x128xf32>
    %112 = arith.divf %110, %111 : vector<2x128xf32>
    %113 = math.tanh %107 : vector<2x128xf32>
    %114 = vector.extract_strided_slice %112 {offsets = [0, 0], sizes = [2, 32], strides = [1, 1]} : vector<2x128xf32> to vector<2x32xf32>
    %115 = vector.extract_strided_slice %112 {offsets = [0, 32], sizes = [2, 32], strides = [1, 1]} : vector<2x128xf32> to vector<2x32xf32>
    %116 = vector.extract_strided_slice %113 {offsets = [0, 64], sizes = [2, 32], strides = [1, 1]} : vector<2x128xf32> to vector<2x32xf32>
    %117 = vector.extract_strided_slice %112 {offsets = [0, 96], sizes = [2, 32], strides = [1, 1]} : vector<2x128xf32> to vector<2x32xf32>
    %118 = arith.mulf %115, %101 : vector<2x32xf32>
    %119 = arith.mulf %114, %116 : vector<2x32xf32>
    %120 = arith.addf %118, %119 : vector<2x32xf32>
    %121 = math.tanh %120 : vector<2x32xf32>
    %122 = arith.mulf %117, %121 : vector<2x32xf32>
    %123 = arith.truncf %122 : vector<2x32xf32> to vector<2x32xbf16>
    %124 = arith.truncf %122 : vector<2x32xf32> to vector<2x32xbf16>
    %cst_18 = arith.constant dense<0.000000e+00> : vector<2x128xf32>
    %125 = tpu.matmul %124, %34, %cst_18 {dimension_numbers = #tpu.dot_dimension_numbers<[1], [0], [0], [1], [0, 0, 1, 1], [], []>} : vector<2x32xbf16>, vector<32x128xbf16>, vector<2x128xf32> -> vector<2x128xf32>
    %126 = arith.addf %26, %125 : vector<2x128xf32>
    %127 = arith.negf %126 : vector<2x128xf32>
    %128 = math.exp %127 : vector<2x128xf32>
    %cst_19 = arith.constant 1.000000e+00 : f32
    %129 = vector.broadcast %cst_19 : f32 to vector<2x128xf32>
    %130 = arith.addf %129, %128 : vector<2x128xf32>
    %131 = arith.divf %129, %130 : vector<2x128xf32>
    %132 = math.tanh %126 : vector<2x128xf32>
    %133 = vector.extract_strided_slice %131 {offsets = [0, 0], sizes = [2, 32], strides = [1, 1]} : vector<2x128xf32> to vector<2x32xf32>
    %134 = vector.extract_strided_slice %131 {offsets = [0, 32], sizes = [2, 32], strides = [1, 1]} : vector<2x128xf32> to vector<2x32xf32>
    %135 = vector.extract_strided_slice %132 {offsets = [0, 64], sizes = [2, 32], strides = [1, 1]} : vector<2x128xf32> to vector<2x32xf32>
    %136 = vector.extract_strided_slice %131 {offsets = [0, 96], sizes = [2, 32], strides = [1, 1]} : vector<2x128xf32> to vector<2x32xf32>
    %137 = arith.mulf %134, %120 : vector<2x32xf32>
    %138 = arith.mulf %133, %135 : vector<2x32xf32>
    %139 = arith.addf %137, %138 : vector<2x32xf32>
    %140 = math.tanh %139 : vector<2x32xf32>
    %141 = arith.mulf %136, %140 : vector<2x32xf32>
    %142 = arith.truncf %141 : vector<2x32xf32> to vector<2x32xbf16>
    %143 = arith.truncf %141 : vector<2x32xf32> to vector<2x32xbf16>
    %cst_20 = arith.constant dense<0.000000e+00> : vector<2x128xf32>
    %144 = tpu.matmul %143, %34, %cst_20 {dimension_numbers = #tpu.dot_dimension_numbers<[1], [0], [0], [1], [0, 0, 1, 1], [], []>} : vector<2x32xbf16>, vector<32x128xbf16>, vector<2x128xf32> -> vector<2x128xf32>
    %145 = arith.addf %29, %144 : vector<2x128xf32>
    %146 = arith.negf %145 : vector<2x128xf32>
    %147 = math.exp %146 : vector<2x128xf32>
    %cst_21 = arith.constant 1.000000e+00 : f32
    %148 = vector.broadcast %cst_21 : f32 to vector<2x128xf32>
    %149 = arith.addf %148, %147 : vector<2x128xf32>
    %150 = arith.divf %148, %149 : vector<2x128xf32>
    %151 = math.tanh %145 : vector<2x128xf32>
    %152 = vector.extract_strided_slice %150 {offsets = [0, 0], sizes = [2, 32], strides = [1, 1]} : vector<2x128xf32> to vector<2x32xf32>
    %153 = vector.extract_strided_slice %150 {offsets = [0, 32], sizes = [2, 32], strides = [1, 1]} : vector<2x128xf32> to vector<2x32xf32>
    %154 = vector.extract_strided_slice %151 {offsets = [0, 64], sizes = [2, 32], strides = [1, 1]} : vector<2x128xf32> to vector<2x32xf32>
    %155 = vector.extract_strided_slice %150 {offsets = [0, 96], sizes = [2, 32], strides = [1, 1]} : vector<2x128xf32> to vector<2x32xf32>
    %156 = arith.mulf %153, %139 : vector<2x32xf32>
    %157 = arith.mulf %152, %154 : vector<2x32xf32>
    %158 = arith.addf %156, %157 : vector<2x32xf32>
    %159 = math.tanh %158 : vector<2x32xf32>
    %160 = arith.mulf %155, %159 : vector<2x32xf32>
    %161 = arith.truncf %160 : vector<2x32xf32> to vector<2x32xbf16>
    %162 = arith.truncf %160 : vector<2x32xf32> to vector<2x32xbf16>
    %cst_22 = arith.constant dense<0.000000e+00> : vector<2x128xf32>
    %163 = tpu.matmul %162, %34, %cst_22 {dimension_numbers = #tpu.dot_dimension_numbers<[1], [0], [0], [1], [0, 0, 1, 1], [], []>} : vector<2x32xbf16>, vector<32x128xbf16>, vector<2x128xf32> -> vector<2x128xf32>
    %164 = arith.addf %32, %163 : vector<2x128xf32>
    %165 = arith.negf %164 : vector<2x128xf32>
    %166 = math.exp %165 : vector<2x128xf32>
    %cst_23 = arith.constant 1.000000e+00 : f32
    %167 = vector.broadcast %cst_23 : f32 to vector<2x128xf32>
    %168 = arith.addf %167, %166 : vector<2x128xf32>
    %169 = arith.divf %167, %168 : vector<2x128xf32>
    %170 = math.tanh %164 : vector<2x128xf32>
    %171 = vector.extract_strided_slice %169 {offsets = [0, 0], sizes = [2, 32], strides = [1, 1]} : vector<2x128xf32> to vector<2x32xf32>
    %172 = vector.extract_strided_slice %169 {offsets = [0, 32], sizes = [2, 32], strides = [1, 1]} : vector<2x128xf32> to vector<2x32xf32>
    %173 = vector.extract_strided_slice %170 {offsets = [0, 64], sizes = [2, 32], strides = [1, 1]} : vector<2x128xf32> to vector<2x32xf32>
    %174 = vector.extract_strided_slice %169 {offsets = [0, 96], sizes = [2, 32], strides = [1, 1]} : vector<2x128xf32> to vector<2x32xf32>
    %175 = arith.mulf %172, %158 : vector<2x32xf32>
    %176 = arith.mulf %171, %173 : vector<2x32xf32>
    %177 = arith.addf %175, %176 : vector<2x32xf32>
    %178 = math.tanh %177 : vector<2x32xf32>
    %179 = arith.mulf %174, %178 : vector<2x32xf32>
    %180 = arith.truncf %179 : vector<2x32xf32> to vector<2x32xbf16>
    %c1 = arith.constant 1 : index
    %c0_24 = arith.constant 0 : index
    %c0_25 = arith.constant 0 : index
    %181 = vector.load %arg3[%c1, %c0_24, %c0_25] : memref<3x32x128xbf16, #tpu.memory_space<vmem>>, vector<1x32x128xbf16>
    %182 = vector.shape_cast %181 : vector<1x32x128xbf16> to vector<32x128xbf16>
    %c1_26 = arith.constant 1 : index
    %c0_27 = arith.constant 0 : index
    %c0_28 = arith.constant 0 : index
    %183 = vector.load %arg2[%c1_26, %c0_27, %c0_28] : memref<3x32x128xbf16, #tpu.memory_space<vmem>>, vector<1x32x128xbf16>
    %184 = vector.shape_cast %183 : vector<1x32x128xbf16> to vector<32x128xbf16>
    %c1_29 = arith.constant 1 : index
    %c0_30 = arith.constant 0 : index
    %185 = vector.load %arg4[%c1_29, %c0_30] : memref<3x128xf32, #tpu.memory_space<vmem>>, vector<1x128xf32>
    %cst_31 = arith.constant dense<0.000000e+00> : vector<2x128xf32>
    %186 = tpu.matmul %47, %184, %cst_31 {dimension_numbers = #tpu.dot_dimension_numbers<[1], [0], [0], [1], [0, 0, 1, 1], [], []>} : vector<2x32xbf16>, vector<32x128xbf16>, vector<2x128xf32> -> vector<2x128xf32>
    %187 = vector.broadcast %185 : vector<1x128xf32> to vector<2x128xf32>
    %188 = arith.addf %186, %187 : vector<2x128xf32>
    %189 = arith.negf %188 : vector<2x128xf32>
    %190 = math.exp %189 : vector<2x128xf32>
    %cst_32 = arith.constant 1.000000e+00 : f32
    %191 = vector.broadcast %cst_32 : f32 to vector<2x128xf32>
    %192 = arith.addf %191, %190 : vector<2x128xf32>
    %193 = arith.divf %191, %192 : vector<2x128xf32>
    %194 = math.tanh %188 : vector<2x128xf32>
    %195 = vector.extract_strided_slice %193 {offsets = [0, 0], sizes = [2, 32], strides = [1, 1]} : vector<2x128xf32> to vector<2x32xf32>
    %196 = vector.extract_strided_slice %194 {offsets = [0, 64], sizes = [2, 32], strides = [1, 1]} : vector<2x128xf32> to vector<2x32xf32>
    %197 = vector.extract_strided_slice %193 {offsets = [0, 96], sizes = [2, 32], strides = [1, 1]} : vector<2x128xf32> to vector<2x32xf32>
    %198 = arith.mulf %195, %196 : vector<2x32xf32>
    %199 = math.tanh %198 : vector<2x32xf32>
    %200 = arith.mulf %197, %199 : vector<2x32xf32>
    %201 = arith.truncf %200 : vector<2x32xf32> to vector<2x32xbf16>
    %cst_33 = arith.constant dense<0.000000e+00> : vector<2x128xf32>
    %202 = tpu.matmul %66, %184, %cst_33 {dimension_numbers = #tpu.dot_dimension_numbers<[1], [0], [0], [1], [0, 0, 1, 1], [], []>} : vector<2x32xbf16>, vector<32x128xbf16>, vector<2x128xf32> -> vector<2x128xf32>
    %203 = vector.broadcast %185 : vector<1x128xf32> to vector<2x128xf32>
    %204 = arith.addf %202, %203 : vector<2x128xf32>
    %205 = arith.truncf %200 : vector<2x32xf32> to vector<2x32xbf16>
    %cst_34 = arith.constant dense<0.000000e+00> : vector<2x128xf32>
    %206 = tpu.matmul %205, %182, %cst_34 {dimension_numbers = #tpu.dot_dimension_numbers<[1], [0], [0], [1], [0, 0, 1, 1], [], []>} : vector<2x32xbf16>, vector<32x128xbf16>, vector<2x128xf32> -> vector<2x128xf32>
    %207 = arith.addf %204, %206 : vector<2x128xf32>
    %208 = arith.negf %207 : vector<2x128xf32>
    %209 = math.exp %208 : vector<2x128xf32>
    %cst_35 = arith.constant 1.000000e+00 : f32
    %210 = vector.broadcast %cst_35 : f32 to vector<2x128xf32>
    %211 = arith.addf %210, %209 : vector<2x128xf32>
    %212 = arith.divf %210, %211 : vector<2x128xf32>
    %213 = math.tanh %207 : vector<2x128xf32>
    %214 = vector.extract_strided_slice %212 {offsets = [0, 0], sizes = [2, 32], strides = [1, 1]} : vector<2x128xf32> to vector<2x32xf32>
    %215 = vector.extract_strided_slice %212 {offsets = [0, 32], sizes = [2, 32], strides = [1, 1]} : vector<2x128xf32> to vector<2x32xf32>
    %216 = vector.extract_strided_slice %213 {offsets = [0, 64], sizes = [2, 32], strides = [1, 1]} : vector<2x128xf32> to vector<2x32xf32>
    %217 = vector.extract_strided_slice %212 {offsets = [0, 96], sizes = [2, 32], strides = [1, 1]} : vector<2x128xf32> to vector<2x32xf32>
    %218 = arith.mulf %215, %198 : vector<2x32xf32>
    %219 = arith.mulf %214, %216 : vector<2x32xf32>
    %220 = arith.addf %218, %219 : vector<2x32xf32>
    %221 = math.tanh %220 : vector<2x32xf32>
    %222 = arith.mulf %217, %221 : vector<2x32xf32>
    %223 = arith.truncf %222 : vector<2x32xf32> to vector<2x32xbf16>
    %cst_36 = arith.constant dense<0.000000e+00> : vector<2x128xf32>
    %224 = tpu.matmul %85, %184, %cst_36 {dimension_numbers = #tpu.dot_dimension_numbers<[1], [0], [0], [1], [0, 0, 1, 1], [], []>} : vector<2x32xbf16>, vector<32x128xbf16>, vector<2x128xf32> -> vector<2x128xf32>
    %225 = vector.broadcast %185 : vector<1x128xf32> to vector<2x128xf32>
    %226 = arith.addf %224, %225 : vector<2x128xf32>
    %227 = arith.truncf %222 : vector<2x32xf32> to vector<2x32xbf16>
    %cst_37 = arith.constant dense<0.000000e+00> : vector<2x128xf32>
    %228 = tpu.matmul %227, %182, %cst_37 {dimension_numbers = #tpu.dot_dimension_numbers<[1], [0], [0], [1], [0, 0, 1, 1], [], []>} : vector<2x32xbf16>, vector<32x128xbf16>, vector<2x128xf32> -> vector<2x128xf32>
    %229 = arith.addf %226, %228 : vector<2x128xf32>
    %230 = arith.negf %229 : vector<2x128xf32>
    %231 = math.exp %230 : vector<2x128xf32>
    %cst_38 = arith.constant 1.000000e+00 : f32
    %232 = vector.broadcast %cst_38 : f32 to vector<2x128xf32>
    %233 = arith.addf %232, %231 : vector<2x128xf32>
    %234 = arith.divf %232, %233 : vector<2x128xf32>
    %235 = math.tanh %229 : vector<2x128xf32>
    %236 = vector.extract_strided_slice %234 {offsets = [0, 0], sizes = [2, 32], strides = [1, 1]} : vector<2x128xf32> to vector<2x32xf32>
    %237 = vector.extract_strided_slice %234 {offsets = [0, 32], sizes = [2, 32], strides = [1, 1]} : vector<2x128xf32> to vector<2x32xf32>
    %238 = vector.extract_strided_slice %235 {offsets = [0, 64], sizes = [2, 32], strides = [1, 1]} : vector<2x128xf32> to vector<2x32xf32>
    %239 = vector.extract_strided_slice %234 {offsets = [0, 96], sizes = [2, 32], strides = [1, 1]} : vector<2x128xf32> to vector<2x32xf32>
    %240 = arith.mulf %237, %220 : vector<2x32xf32>
    %241 = arith.mulf %236, %238 : vector<2x32xf32>
    %242 = arith.addf %240, %241 : vector<2x32xf32>
    %243 = math.tanh %242 : vector<2x32xf32>
    %244 = arith.mulf %239, %243 : vector<2x32xf32>
    %245 = arith.truncf %244 : vector<2x32xf32> to vector<2x32xbf16>
    %cst_39 = arith.constant dense<0.000000e+00> : vector<2x128xf32>
    %246 = tpu.matmul %104, %184, %cst_39 {dimension_numbers = #tpu.dot_dimension_numbers<[1], [0], [0], [1], [0, 0, 1, 1], [], []>} : vector<2x32xbf16>, vector<32x128xbf16>, vector<2x128xf32> -> vector<2x128xf32>
    %247 = vector.broadcast %185 : vector<1x128xf32> to vector<2x128xf32>
    %248 = arith.addf %246, %247 : vector<2x128xf32>
    %249 = arith.truncf %244 : vector<2x32xf32> to vector<2x32xbf16>
    %cst_40 = arith.constant dense<0.000000e+00> : vector<2x128xf32>
    %250 = tpu.matmul %249, %182, %cst_40 {dimension_numbers = #tpu.dot_dimension_numbers<[1], [0], [0], [1], [0, 0, 1, 1], [], []>} : vector<2x32xbf16>, vector<32x128xbf16>, vector<2x128xf32> -> vector<2x128xf32>
    %251 = arith.addf %248, %250 : vector<2x128xf32>
    %252 = arith.negf %251 : vector<2x128xf32>
    %253 = math.exp %252 : vector<2x128xf32>
    %cst_41 = arith.constant 1.000000e+00 : f32
    %254 = vector.broadcast %cst_41 : f32 to vector<2x128xf32>
    %255 = arith.addf %254, %253 : vector<2x128xf32>
    %256 = arith.divf %254, %255 : vector<2x128xf32>
    %257 = math.tanh %251 : vector<2x128xf32>
    %258 = vector.extract_strided_slice %256 {offsets = [0, 0], sizes = [2, 32], strides = [1, 1]} : vector<2x128xf32> to vector<2x32xf32>
    %259 = vector.extract_strided_slice %256 {offsets = [0, 32], sizes = [2, 32], strides = [1, 1]} : vector<2x128xf32> to vector<2x32xf32>
    %260 = vector.extract_strided_slice %257 {offsets = [0, 64], sizes = [2, 32], strides = [1, 1]} : vector<2x128xf32> to vector<2x32xf32>
    %261 = vector.extract_strided_slice %256 {offsets = [0, 96], sizes = [2, 32], strides = [1, 1]} : vector<2x128xf32> to vector<2x32xf32>
    %262 = arith.mulf %259, %242 : vector<2x32xf32>
    %263 = arith.mulf %258, %260 : vector<2x32xf32>
    %264 = arith.addf %262, %263 : vector<2x32xf32>
    %265 = math.tanh %264 : vector<2x32xf32>
    %266 = arith.mulf %261, %265 : vector<2x32xf32>
    %267 = arith.truncf %266 : vector<2x32xf32> to vector<2x32xbf16>
    %cst_42 = arith.constant dense<0.000000e+00> : vector<2x128xf32>
    %268 = tpu.matmul %123, %184, %cst_42 {dimension_numbers = #tpu.dot_dimension_numbers<[1], [0], [0], [1], [0, 0, 1, 1], [], []>} : vector<2x32xbf16>, vector<32x128xbf16>, vector<2x128xf32> -> vector<2x128xf32>
    %269 = vector.broadcast %185 : vector<1x128xf32> to vector<2x128xf32>
    %270 = arith.addf %268, %269 : vector<2x128xf32>
    %271 = arith.truncf %266 : vector<2x32xf32> to vector<2x32xbf16>
    %cst_43 = arith.constant dense<0.000000e+00> : vector<2x128xf32>
    %272 = tpu.matmul %271, %182, %cst_43 {dimension_numbers = #tpu.dot_dimension_numbers<[1], [0], [0], [1], [0, 0, 1, 1], [], []>} : vector<2x32xbf16>, vector<32x128xbf16>, vector<2x128xf32> -> vector<2x128xf32>
    %273 = arith.addf %270, %272 : vector<2x128xf32>
    %274 = arith.negf %273 : vector<2x128xf32>
    %275 = math.exp %274 : vector<2x128xf32>
    %cst_44 = arith.constant 1.000000e+00 : f32
    %276 = vector.broadcast %cst_44 : f32 to vector<2x128xf32>
    %277 = arith.addf %276, %275 : vector<2x128xf32>
    %278 = arith.divf %276, %277 : vector<2x128xf32>
    %279 = math.tanh %273 : vector<2x128xf32>
    %280 = vector.extract_strided_slice %278 {offsets = [0, 0], sizes = [2, 32], strides = [1, 1]} : vector<2x128xf32> to vector<2x32xf32>
    %281 = vector.extract_strided_slice %278 {offsets = [0, 32], sizes = [2, 32], strides = [1, 1]} : vector<2x128xf32> to vector<2x32xf32>
    %282 = vector.extract_strided_slice %279 {offsets = [0, 64], sizes = [2, 32], strides = [1, 1]} : vector<2x128xf32> to vector<2x32xf32>
    %283 = vector.extract_strided_slice %278 {offsets = [0, 96], sizes = [2, 32], strides = [1, 1]} : vector<2x128xf32> to vector<2x32xf32>
    %284 = arith.mulf %281, %264 : vector<2x32xf32>
    %285 = arith.mulf %280, %282 : vector<2x32xf32>
    %286 = arith.addf %284, %285 : vector<2x32xf32>
    %287 = math.tanh %286 : vector<2x32xf32>
    %288 = arith.mulf %283, %287 : vector<2x32xf32>
    %289 = arith.truncf %288 : vector<2x32xf32> to vector<2x32xbf16>
    %cst_45 = arith.constant dense<0.000000e+00> : vector<2x128xf32>
    %290 = tpu.matmul %142, %184, %cst_45 {dimension_numbers = #tpu.dot_dimension_numbers<[1], [0], [0], [1], [0, 0, 1, 1], [], []>} : vector<2x32xbf16>, vector<32x128xbf16>, vector<2x128xf32> -> vector<2x128xf32>
    %291 = vector.broadcast %185 : vector<1x128xf32> to vector<2x128xf32>
    %292 = arith.addf %290, %291 : vector<2x128xf32>
    %293 = arith.truncf %288 : vector<2x32xf32> to vector<2x32xbf16>
    %cst_46 = arith.constant dense<0.000000e+00> : vector<2x128xf32>
    %294 = tpu.matmul %293, %182, %cst_46 {dimension_numbers = #tpu.dot_dimension_numbers<[1], [0], [0], [1], [0, 0, 1, 1], [], []>} : vector<2x32xbf16>, vector<32x128xbf16>, vector<2x128xf32> -> vector<2x128xf32>
    %295 = arith.addf %292, %294 : vector<2x128xf32>
    %296 = arith.negf %295 : vector<2x128xf32>
    %297 = math.exp %296 : vector<2x128xf32>
    %cst_47 = arith.constant 1.000000e+00 : f32
    %298 = vector.broadcast %cst_47 : f32 to vector<2x128xf32>
    %299 = arith.addf %298, %297 : vector<2x128xf32>
    %300 = arith.divf %298, %299 : vector<2x128xf32>
    %301 = math.tanh %295 : vector<2x128xf32>
    %302 = vector.extract_strided_slice %300 {offsets = [0, 0], sizes = [2, 32], strides = [1, 1]} : vector<2x128xf32> to vector<2x32xf32>
    %303 = vector.extract_strided_slice %300 {offsets = [0, 32], sizes = [2, 32], strides = [1, 1]} : vector<2x128xf32> to vector<2x32xf32>
    %304 = vector.extract_strided_slice %301 {offsets = [0, 64], sizes = [2, 32], strides = [1, 1]} : vector<2x128xf32> to vector<2x32xf32>
    %305 = vector.extract_strided_slice %300 {offsets = [0, 96], sizes = [2, 32], strides = [1, 1]} : vector<2x128xf32> to vector<2x32xf32>
    %306 = arith.mulf %303, %286 : vector<2x32xf32>
    %307 = arith.mulf %302, %304 : vector<2x32xf32>
    %308 = arith.addf %306, %307 : vector<2x32xf32>
    %309 = math.tanh %308 : vector<2x32xf32>
    %310 = arith.mulf %305, %309 : vector<2x32xf32>
    %311 = arith.truncf %310 : vector<2x32xf32> to vector<2x32xbf16>
    %cst_48 = arith.constant dense<0.000000e+00> : vector<2x128xf32>
    %312 = tpu.matmul %161, %184, %cst_48 {dimension_numbers = #tpu.dot_dimension_numbers<[1], [0], [0], [1], [0, 0, 1, 1], [], []>} : vector<2x32xbf16>, vector<32x128xbf16>, vector<2x128xf32> -> vector<2x128xf32>
    %313 = vector.broadcast %185 : vector<1x128xf32> to vector<2x128xf32>
    %314 = arith.addf %312, %313 : vector<2x128xf32>
    %315 = arith.truncf %310 : vector<2x32xf32> to vector<2x32xbf16>
    %cst_49 = arith.constant dense<0.000000e+00> : vector<2x128xf32>
    %316 = tpu.matmul %315, %182, %cst_49 {dimension_numbers = #tpu.dot_dimension_numbers<[1], [0], [0], [1], [0, 0, 1, 1], [], []>} : vector<2x32xbf16>, vector<32x128xbf16>, vector<2x128xf32> -> vector<2x128xf32>
    %317 = arith.addf %314, %316 : vector<2x128xf32>
    %318 = arith.negf %317 : vector<2x128xf32>
    %319 = math.exp %318 : vector<2x128xf32>
    %cst_50 = arith.constant 1.000000e+00 : f32
    %320 = vector.broadcast %cst_50 : f32 to vector<2x128xf32>
    %321 = arith.addf %320, %319 : vector<2x128xf32>
    %322 = arith.divf %320, %321 : vector<2x128xf32>
    %323 = math.tanh %317 : vector<2x128xf32>
    %324 = vector.extract_strided_slice %322 {offsets = [0, 0], sizes = [2, 32], strides = [1, 1]} : vector<2x128xf32> to vector<2x32xf32>
    %325 = vector.extract_strided_slice %322 {offsets = [0, 32], sizes = [2, 32], strides = [1, 1]} : vector<2x128xf32> to vector<2x32xf32>
    %326 = vector.extract_strided_slice %323 {offsets = [0, 64], sizes = [2, 32], strides = [1, 1]} : vector<2x128xf32> to vector<2x32xf32>
    %327 = vector.extract_strided_slice %322 {offsets = [0, 96], sizes = [2, 32], strides = [1, 1]} : vector<2x128xf32> to vector<2x32xf32>
    %328 = arith.mulf %325, %308 : vector<2x32xf32>
    %329 = arith.mulf %324, %326 : vector<2x32xf32>
    %330 = arith.addf %328, %329 : vector<2x32xf32>
    %331 = math.tanh %330 : vector<2x32xf32>
    %332 = arith.mulf %327, %331 : vector<2x32xf32>
    %333 = arith.truncf %332 : vector<2x32xf32> to vector<2x32xbf16>
    %cst_51 = arith.constant dense<0.000000e+00> : vector<2x128xf32>
    %334 = tpu.matmul %180, %184, %cst_51 {dimension_numbers = #tpu.dot_dimension_numbers<[1], [0], [0], [1], [0, 0, 1, 1], [], []>} : vector<2x32xbf16>, vector<32x128xbf16>, vector<2x128xf32> -> vector<2x128xf32>
    %335 = vector.broadcast %185 : vector<1x128xf32> to vector<2x128xf32>
    %336 = arith.addf %334, %335 : vector<2x128xf32>
    %337 = arith.truncf %332 : vector<2x32xf32> to vector<2x32xbf16>
    %cst_52 = arith.constant dense<0.000000e+00> : vector<2x128xf32>
    %338 = tpu.matmul %337, %182, %cst_52 {dimension_numbers = #tpu.dot_dimension_numbers<[1], [0], [0], [1], [0, 0, 1, 1], [], []>} : vector<2x32xbf16>, vector<32x128xbf16>, vector<2x128xf32> -> vector<2x128xf32>
    %339 = arith.addf %336, %338 : vector<2x128xf32>
    %340 = arith.negf %339 : vector<2x128xf32>
    %341 = math.exp %340 : vector<2x128xf32>
    %cst_53 = arith.constant 1.000000e+00 : f32
    %342 = vector.broadcast %cst_53 : f32 to vector<2x128xf32>
    %343 = arith.addf %342, %341 : vector<2x128xf32>
    %344 = arith.divf %342, %343 : vector<2x128xf32>
    %345 = math.tanh %339 : vector<2x128xf32>
    %346 = vector.extract_strided_slice %344 {offsets = [0, 0], sizes = [2, 32], strides = [1, 1]} : vector<2x128xf32> to vector<2x32xf32>
    %347 = vector.extract_strided_slice %344 {offsets = [0, 32], sizes = [2, 32], strides = [1, 1]} : vector<2x128xf32> to vector<2x32xf32>
    %348 = vector.extract_strided_slice %345 {offsets = [0, 64], sizes = [2, 32], strides = [1, 1]} : vector<2x128xf32> to vector<2x32xf32>
    %349 = vector.extract_strided_slice %344 {offsets = [0, 96], sizes = [2, 32], strides = [1, 1]} : vector<2x128xf32> to vector<2x32xf32>
    %350 = arith.mulf %347, %330 : vector<2x32xf32>
    %351 = arith.mulf %346, %348 : vector<2x32xf32>
    %352 = arith.addf %350, %351 : vector<2x32xf32>
    %353 = math.tanh %352 : vector<2x32xf32>
    %354 = arith.mulf %349, %353 : vector<2x32xf32>
    %355 = arith.truncf %354 : vector<2x32xf32> to vector<2x32xbf16>
    %c2 = arith.constant 2 : index
    %c0_54 = arith.constant 0 : index
    %c0_55 = arith.constant 0 : index
    %356 = vector.load %arg3[%c2, %c0_54, %c0_55] : memref<3x32x128xbf16, #tpu.memory_space<vmem>>, vector<1x32x128xbf16>
    %357 = vector.shape_cast %356 : vector<1x32x128xbf16> to vector<32x128xbf16>
    %c2_56 = arith.constant 2 : index
    %c0_57 = arith.constant 0 : index
    %c0_58 = arith.constant 0 : index
    %358 = vector.load %arg2[%c2_56, %c0_57, %c0_58] : memref<3x32x128xbf16, #tpu.memory_space<vmem>>, vector<1x32x128xbf16>
    %359 = vector.shape_cast %358 : vector<1x32x128xbf16> to vector<32x128xbf16>
    %c2_59 = arith.constant 2 : index
    %c0_60 = arith.constant 0 : index
    %360 = vector.load %arg4[%c2_59, %c0_60] : memref<3x128xf32, #tpu.memory_space<vmem>>, vector<1x128xf32>
    %cst_61 = arith.constant dense<0.000000e+00> : vector<2x128xf32>
    %361 = tpu.matmul %201, %359, %cst_61 {dimension_numbers = #tpu.dot_dimension_numbers<[1], [0], [0], [1], [0, 0, 1, 1], [], []>} : vector<2x32xbf16>, vector<32x128xbf16>, vector<2x128xf32> -> vector<2x128xf32>
    %362 = vector.broadcast %360 : vector<1x128xf32> to vector<2x128xf32>
    %363 = arith.addf %361, %362 : vector<2x128xf32>
    %364 = arith.negf %363 : vector<2x128xf32>
    %365 = math.exp %364 : vector<2x128xf32>
    %cst_62 = arith.constant 1.000000e+00 : f32
    %366 = vector.broadcast %cst_62 : f32 to vector<2x128xf32>
    %367 = arith.addf %366, %365 : vector<2x128xf32>
    %368 = arith.divf %366, %367 : vector<2x128xf32>
    %369 = math.tanh %363 : vector<2x128xf32>
    %370 = vector.extract_strided_slice %368 {offsets = [0, 0], sizes = [2, 32], strides = [1, 1]} : vector<2x128xf32> to vector<2x32xf32>
    %371 = vector.extract_strided_slice %369 {offsets = [0, 64], sizes = [2, 32], strides = [1, 1]} : vector<2x128xf32> to vector<2x32xf32>
    %372 = vector.extract_strided_slice %368 {offsets = [0, 96], sizes = [2, 32], strides = [1, 1]} : vector<2x128xf32> to vector<2x32xf32>
    %373 = arith.mulf %370, %371 : vector<2x32xf32>
    %374 = math.tanh %373 : vector<2x32xf32>
    %375 = arith.mulf %372, %374 : vector<2x32xf32>
    %cst_63 = arith.constant dense<0.000000e+00> : vector<2x128xf32>
    %376 = tpu.matmul %223, %359, %cst_63 {dimension_numbers = #tpu.dot_dimension_numbers<[1], [0], [0], [1], [0, 0, 1, 1], [], []>} : vector<2x32xbf16>, vector<32x128xbf16>, vector<2x128xf32> -> vector<2x128xf32>
    %377 = vector.broadcast %360 : vector<1x128xf32> to vector<2x128xf32>
    %378 = arith.addf %376, %377 : vector<2x128xf32>
    %379 = arith.truncf %375 : vector<2x32xf32> to vector<2x32xbf16>
    %cst_64 = arith.constant dense<0.000000e+00> : vector<2x128xf32>
    %380 = tpu.matmul %379, %357, %cst_64 {dimension_numbers = #tpu.dot_dimension_numbers<[1], [0], [0], [1], [0, 0, 1, 1], [], []>} : vector<2x32xbf16>, vector<32x128xbf16>, vector<2x128xf32> -> vector<2x128xf32>
    %381 = arith.addf %378, %380 : vector<2x128xf32>
    %382 = arith.negf %381 : vector<2x128xf32>
    %383 = math.exp %382 : vector<2x128xf32>
    %cst_65 = arith.constant 1.000000e+00 : f32
    %384 = vector.broadcast %cst_65 : f32 to vector<2x128xf32>
    %385 = arith.addf %384, %383 : vector<2x128xf32>
    %386 = arith.divf %384, %385 : vector<2x128xf32>
    %387 = math.tanh %381 : vector<2x128xf32>
    %388 = vector.extract_strided_slice %386 {offsets = [0, 0], sizes = [2, 32], strides = [1, 1]} : vector<2x128xf32> to vector<2x32xf32>
    %389 = vector.extract_strided_slice %386 {offsets = [0, 32], sizes = [2, 32], strides = [1, 1]} : vector<2x128xf32> to vector<2x32xf32>
    %390 = vector.extract_strided_slice %387 {offsets = [0, 64], sizes = [2, 32], strides = [1, 1]} : vector<2x128xf32> to vector<2x32xf32>
    %391 = vector.extract_strided_slice %386 {offsets = [0, 96], sizes = [2, 32], strides = [1, 1]} : vector<2x128xf32> to vector<2x32xf32>
    %392 = arith.mulf %389, %373 : vector<2x32xf32>
    %393 = arith.mulf %388, %390 : vector<2x32xf32>
    %394 = arith.addf %392, %393 : vector<2x32xf32>
    %395 = math.tanh %394 : vector<2x32xf32>
    %396 = arith.mulf %391, %395 : vector<2x32xf32>
    %cst_66 = arith.constant dense<0.000000e+00> : vector<2x128xf32>
    %397 = tpu.matmul %245, %359, %cst_66 {dimension_numbers = #tpu.dot_dimension_numbers<[1], [0], [0], [1], [0, 0, 1, 1], [], []>} : vector<2x32xbf16>, vector<32x128xbf16>, vector<2x128xf32> -> vector<2x128xf32>
    %398 = vector.broadcast %360 : vector<1x128xf32> to vector<2x128xf32>
    %399 = arith.addf %397, %398 : vector<2x128xf32>
    %400 = arith.truncf %396 : vector<2x32xf32> to vector<2x32xbf16>
    %cst_67 = arith.constant dense<0.000000e+00> : vector<2x128xf32>
    %401 = tpu.matmul %400, %357, %cst_67 {dimension_numbers = #tpu.dot_dimension_numbers<[1], [0], [0], [1], [0, 0, 1, 1], [], []>} : vector<2x32xbf16>, vector<32x128xbf16>, vector<2x128xf32> -> vector<2x128xf32>
    %402 = arith.addf %399, %401 : vector<2x128xf32>
    %403 = arith.negf %402 : vector<2x128xf32>
    %404 = math.exp %403 : vector<2x128xf32>
    %cst_68 = arith.constant 1.000000e+00 : f32
    %405 = vector.broadcast %cst_68 : f32 to vector<2x128xf32>
    %406 = arith.addf %405, %404 : vector<2x128xf32>
    %407 = arith.divf %405, %406 : vector<2x128xf32>
    %408 = math.tanh %402 : vector<2x128xf32>
    %409 = vector.extract_strided_slice %407 {offsets = [0, 0], sizes = [2, 32], strides = [1, 1]} : vector<2x128xf32> to vector<2x32xf32>
    %410 = vector.extract_strided_slice %407 {offsets = [0, 32], sizes = [2, 32], strides = [1, 1]} : vector<2x128xf32> to vector<2x32xf32>
    %411 = vector.extract_strided_slice %408 {offsets = [0, 64], sizes = [2, 32], strides = [1, 1]} : vector<2x128xf32> to vector<2x32xf32>
    %412 = vector.extract_strided_slice %407 {offsets = [0, 96], sizes = [2, 32], strides = [1, 1]} : vector<2x128xf32> to vector<2x32xf32>
    %413 = arith.mulf %410, %394 : vector<2x32xf32>
    %414 = arith.mulf %409, %411 : vector<2x32xf32>
    %415 = arith.addf %413, %414 : vector<2x32xf32>
    %416 = math.tanh %415 : vector<2x32xf32>
    %417 = arith.mulf %412, %416 : vector<2x32xf32>
    %cst_69 = arith.constant dense<0.000000e+00> : vector<2x128xf32>
    %418 = tpu.matmul %267, %359, %cst_69 {dimension_numbers = #tpu.dot_dimension_numbers<[1], [0], [0], [1], [0, 0, 1, 1], [], []>} : vector<2x32xbf16>, vector<32x128xbf16>, vector<2x128xf32> -> vector<2x128xf32>
    %419 = vector.broadcast %360 : vector<1x128xf32> to vector<2x128xf32>
    %420 = arith.addf %418, %419 : vector<2x128xf32>
    %421 = arith.truncf %417 : vector<2x32xf32> to vector<2x32xbf16>
    %cst_70 = arith.constant dense<0.000000e+00> : vector<2x128xf32>
    %422 = tpu.matmul %421, %357, %cst_70 {dimension_numbers = #tpu.dot_dimension_numbers<[1], [0], [0], [1], [0, 0, 1, 1], [], []>} : vector<2x32xbf16>, vector<32x128xbf16>, vector<2x128xf32> -> vector<2x128xf32>
    %423 = arith.addf %420, %422 : vector<2x128xf32>
    %424 = arith.negf %423 : vector<2x128xf32>
    %425 = math.exp %424 : vector<2x128xf32>
    %cst_71 = arith.constant 1.000000e+00 : f32
    %426 = vector.broadcast %cst_71 : f32 to vector<2x128xf32>
    %427 = arith.addf %426, %425 : vector<2x128xf32>
    %428 = arith.divf %426, %427 : vector<2x128xf32>
    %429 = math.tanh %423 : vector<2x128xf32>
    %430 = vector.extract_strided_slice %428 {offsets = [0, 0], sizes = [2, 32], strides = [1, 1]} : vector<2x128xf32> to vector<2x32xf32>
    %431 = vector.extract_strided_slice %428 {offsets = [0, 32], sizes = [2, 32], strides = [1, 1]} : vector<2x128xf32> to vector<2x32xf32>
    %432 = vector.extract_strided_slice %429 {offsets = [0, 64], sizes = [2, 32], strides = [1, 1]} : vector<2x128xf32> to vector<2x32xf32>
    %433 = vector.extract_strided_slice %428 {offsets = [0, 96], sizes = [2, 32], strides = [1, 1]} : vector<2x128xf32> to vector<2x32xf32>
    %434 = arith.mulf %431, %415 : vector<2x32xf32>
    %435 = arith.mulf %430, %432 : vector<2x32xf32>
    %436 = arith.addf %434, %435 : vector<2x32xf32>
    %437 = math.tanh %436 : vector<2x32xf32>
    %438 = arith.mulf %433, %437 : vector<2x32xf32>
    %cst_72 = arith.constant dense<0.000000e+00> : vector<2x128xf32>
    %439 = tpu.matmul %289, %359, %cst_72 {dimension_numbers = #tpu.dot_dimension_numbers<[1], [0], [0], [1], [0, 0, 1, 1], [], []>} : vector<2x32xbf16>, vector<32x128xbf16>, vector<2x128xf32> -> vector<2x128xf32>
    %440 = vector.broadcast %360 : vector<1x128xf32> to vector<2x128xf32>
    %441 = arith.addf %439, %440 : vector<2x128xf32>
    %442 = arith.truncf %438 : vector<2x32xf32> to vector<2x32xbf16>
    %cst_73 = arith.constant dense<0.000000e+00> : vector<2x128xf32>
    %443 = tpu.matmul %442, %357, %cst_73 {dimension_numbers = #tpu.dot_dimension_numbers<[1], [0], [0], [1], [0, 0, 1, 1], [], []>} : vector<2x32xbf16>, vector<32x128xbf16>, vector<2x128xf32> -> vector<2x128xf32>
    %444 = arith.addf %441, %443 : vector<2x128xf32>
    %445 = arith.negf %444 : vector<2x128xf32>
    %446 = math.exp %445 : vector<2x128xf32>
    %cst_74 = arith.constant 1.000000e+00 : f32
    %447 = vector.broadcast %cst_74 : f32 to vector<2x128xf32>
    %448 = arith.addf %447, %446 : vector<2x128xf32>
    %449 = arith.divf %447, %448 : vector<2x128xf32>
    %450 = math.tanh %444 : vector<2x128xf32>
    %451 = vector.extract_strided_slice %449 {offsets = [0, 0], sizes = [2, 32], strides = [1, 1]} : vector<2x128xf32> to vector<2x32xf32>
    %452 = vector.extract_strided_slice %449 {offsets = [0, 32], sizes = [2, 32], strides = [1, 1]} : vector<2x128xf32> to vector<2x32xf32>
    %453 = vector.extract_strided_slice %450 {offsets = [0, 64], sizes = [2, 32], strides = [1, 1]} : vector<2x128xf32> to vector<2x32xf32>
    %454 = vector.extract_strided_slice %449 {offsets = [0, 96], sizes = [2, 32], strides = [1, 1]} : vector<2x128xf32> to vector<2x32xf32>
    %455 = arith.mulf %452, %436 : vector<2x32xf32>
    %456 = arith.mulf %451, %453 : vector<2x32xf32>
    %457 = arith.addf %455, %456 : vector<2x32xf32>
    %458 = math.tanh %457 : vector<2x32xf32>
    %459 = arith.mulf %454, %458 : vector<2x32xf32>
    %cst_75 = arith.constant dense<0.000000e+00> : vector<2x128xf32>
    %460 = tpu.matmul %311, %359, %cst_75 {dimension_numbers = #tpu.dot_dimension_numbers<[1], [0], [0], [1], [0, 0, 1, 1], [], []>} : vector<2x32xbf16>, vector<32x128xbf16>, vector<2x128xf32> -> vector<2x128xf32>
    %461 = vector.broadcast %360 : vector<1x128xf32> to vector<2x128xf32>
    %462 = arith.addf %460, %461 : vector<2x128xf32>
    %463 = arith.truncf %459 : vector<2x32xf32> to vector<2x32xbf16>
    %cst_76 = arith.constant dense<0.000000e+00> : vector<2x128xf32>
    %464 = tpu.matmul %463, %357, %cst_76 {dimension_numbers = #tpu.dot_dimension_numbers<[1], [0], [0], [1], [0, 0, 1, 1], [], []>} : vector<2x32xbf16>, vector<32x128xbf16>, vector<2x128xf32> -> vector<2x128xf32>
    %465 = arith.addf %462, %464 : vector<2x128xf32>
    %466 = arith.negf %465 : vector<2x128xf32>
    %467 = math.exp %466 : vector<2x128xf32>
    %cst_77 = arith.constant 1.000000e+00 : f32
    %468 = vector.broadcast %cst_77 : f32 to vector<2x128xf32>
    %469 = arith.addf %468, %467 : vector<2x128xf32>
    %470 = arith.divf %468, %469 : vector<2x128xf32>
    %471 = math.tanh %465 : vector<2x128xf32>
    %472 = vector.extract_strided_slice %470 {offsets = [0, 0], sizes = [2, 32], strides = [1, 1]} : vector<2x128xf32> to vector<2x32xf32>
    %473 = vector.extract_strided_slice %470 {offsets = [0, 32], sizes = [2, 32], strides = [1, 1]} : vector<2x128xf32> to vector<2x32xf32>
    %474 = vector.extract_strided_slice %471 {offsets = [0, 64], sizes = [2, 32], strides = [1, 1]} : vector<2x128xf32> to vector<2x32xf32>
    %475 = vector.extract_strided_slice %470 {offsets = [0, 96], sizes = [2, 32], strides = [1, 1]} : vector<2x128xf32> to vector<2x32xf32>
    %476 = arith.mulf %473, %457 : vector<2x32xf32>
    %477 = arith.mulf %472, %474 : vector<2x32xf32>
    %478 = arith.addf %476, %477 : vector<2x32xf32>
    %479 = math.tanh %478 : vector<2x32xf32>
    %480 = arith.mulf %475, %479 : vector<2x32xf32>
    %cst_78 = arith.constant dense<0.000000e+00> : vector<2x128xf32>
    %481 = tpu.matmul %333, %359, %cst_78 {dimension_numbers = #tpu.dot_dimension_numbers<[1], [0], [0], [1], [0, 0, 1, 1], [], []>} : vector<2x32xbf16>, vector<32x128xbf16>, vector<2x128xf32> -> vector<2x128xf32>
    %482 = vector.broadcast %360 : vector<1x128xf32> to vector<2x128xf32>
    %483 = arith.addf %481, %482 : vector<2x128xf32>
    %484 = arith.truncf %480 : vector<2x32xf32> to vector<2x32xbf16>
    %cst_79 = arith.constant dense<0.000000e+00> : vector<2x128xf32>
    %485 = tpu.matmul %484, %357, %cst_79 {dimension_numbers = #tpu.dot_dimension_numbers<[1], [0], [0], [1], [0, 0, 1, 1], [], []>} : vector<2x32xbf16>, vector<32x128xbf16>, vector<2x128xf32> -> vector<2x128xf32>
    %486 = arith.addf %483, %485 : vector<2x128xf32>
    %487 = arith.negf %486 : vector<2x128xf32>
    %488 = math.exp %487 : vector<2x128xf32>
    %cst_80 = arith.constant 1.000000e+00 : f32
    %489 = vector.broadcast %cst_80 : f32 to vector<2x128xf32>
    %490 = arith.addf %489, %488 : vector<2x128xf32>
    %491 = arith.divf %489, %490 : vector<2x128xf32>
    %492 = math.tanh %486 : vector<2x128xf32>
    %493 = vector.extract_strided_slice %491 {offsets = [0, 0], sizes = [2, 32], strides = [1, 1]} : vector<2x128xf32> to vector<2x32xf32>
    %494 = vector.extract_strided_slice %491 {offsets = [0, 32], sizes = [2, 32], strides = [1, 1]} : vector<2x128xf32> to vector<2x32xf32>
    %495 = vector.extract_strided_slice %492 {offsets = [0, 64], sizes = [2, 32], strides = [1, 1]} : vector<2x128xf32> to vector<2x32xf32>
    %496 = vector.extract_strided_slice %491 {offsets = [0, 96], sizes = [2, 32], strides = [1, 1]} : vector<2x128xf32> to vector<2x32xf32>
    %497 = arith.mulf %494, %478 : vector<2x32xf32>
    %498 = arith.mulf %493, %495 : vector<2x32xf32>
    %499 = arith.addf %497, %498 : vector<2x32xf32>
    %500 = math.tanh %499 : vector<2x32xf32>
    %501 = arith.mulf %496, %500 : vector<2x32xf32>
    %cst_81 = arith.constant dense<0.000000e+00> : vector<2x128xf32>
    %502 = tpu.matmul %355, %359, %cst_81 {dimension_numbers = #tpu.dot_dimension_numbers<[1], [0], [0], [1], [0, 0, 1, 1], [], []>} : vector<2x32xbf16>, vector<32x128xbf16>, vector<2x128xf32> -> vector<2x128xf32>
    %503 = vector.broadcast %360 : vector<1x128xf32> to vector<2x128xf32>
    %504 = arith.addf %502, %503 : vector<2x128xf32>
    %505 = arith.truncf %501 : vector<2x32xf32> to vector<2x32xbf16>
    %cst_82 = arith.constant dense<0.000000e+00> : vector<2x128xf32>
    %506 = tpu.matmul %505, %357, %cst_82 {dimension_numbers = #tpu.dot_dimension_numbers<[1], [0], [0], [1], [0, 0, 1, 1], [], []>} : vector<2x32xbf16>, vector<32x128xbf16>, vector<2x128xf32> -> vector<2x128xf32>
    %507 = arith.addf %504, %506 : vector<2x128xf32>
    %508 = arith.negf %507 : vector<2x128xf32>
    %509 = math.exp %508 : vector<2x128xf32>
    %cst_83 = arith.constant 1.000000e+00 : f32
    %510 = vector.broadcast %cst_83 : f32 to vector<2x128xf32>
    %511 = arith.addf %510, %509 : vector<2x128xf32>
    %512 = arith.divf %510, %511 : vector<2x128xf32>
    %513 = math.tanh %507 : vector<2x128xf32>
    %514 = vector.extract_strided_slice %512 {offsets = [0, 0], sizes = [2, 32], strides = [1, 1]} : vector<2x128xf32> to vector<2x32xf32>
    %515 = vector.extract_strided_slice %512 {offsets = [0, 32], sizes = [2, 32], strides = [1, 1]} : vector<2x128xf32> to vector<2x32xf32>
    %516 = vector.extract_strided_slice %513 {offsets = [0, 64], sizes = [2, 32], strides = [1, 1]} : vector<2x128xf32> to vector<2x32xf32>
    %517 = vector.extract_strided_slice %512 {offsets = [0, 96], sizes = [2, 32], strides = [1, 1]} : vector<2x128xf32> to vector<2x32xf32>
    %518 = arith.mulf %515, %499 : vector<2x32xf32>
    %519 = arith.mulf %514, %516 : vector<2x32xf32>
    %520 = arith.addf %518, %519 : vector<2x32xf32>
    %521 = math.tanh %520 : vector<2x32xf32>
    %522 = arith.mulf %517, %521 : vector<2x32xf32>
    %523 = arith.truncf %522 : vector<2x32xf32> to vector<2x32xbf16>
    %c0_84 = arith.constant 0 : index
    %c0_85 = arith.constant 0 : index
    %524 = vector.load %arg5[%c0_84, %c0_85] : memref<32x4xbf16, #tpu.memory_space<vmem>>, vector<32x4xbf16>
    %cst_86 = arith.constant dense<0.000000e+00> : vector<2x4xf32>
    %525 = tpu.matmul %523, %524, %cst_86 {dimension_numbers = #tpu.dot_dimension_numbers<[1], [0], [0], [1], [0, 0, 1, 1], [], []>} : vector<2x32xbf16>, vector<32x4xbf16>, vector<2x4xf32> -> vector<2x4xf32>
    %c0_87 = arith.constant 0 : index
    %c0_88 = arith.constant 0 : index
    %526 = vector.load %arg6[%c0_87, %c0_88] : memref<1x4xf32, #tpu.memory_space<vmem>>, vector<1x4xf32>
    %527 = vector.broadcast %526 : vector<1x4xf32> to vector<2x4xf32>
    %528 = arith.addf %525, %527 : vector<2x4xf32>
    %cst_89 = arith.constant dense<0xFF800000> : vector<2xf32>
    %529 = vector.multi_reduction <maximumf>, %528, %cst_89 [1] : vector<2x4xf32> to vector<2xf32>
    %530 = vector.shape_cast %529 : vector<2xf32> to vector<2x1xf32>
    %531 = vector.broadcast %530 : vector<2x1xf32> to vector<2x4xf32>
    %532 = arith.subf %528, %531 : vector<2x4xf32>
    %533 = math.exp %532 : vector<2x4xf32>
    %cst_90 = arith.constant dense<0.000000e+00> : vector<2xf32>
    %534 = vector.multi_reduction <add>, %533, %cst_90 [1] : vector<2x4xf32> to vector<2xf32>
    %535 = vector.shape_cast %534 : vector<2xf32> to vector<2x1xf32>
    %536 = math.log %535 : vector<2x1xf32>
    %537 = vector.broadcast %536 : vector<2x1xf32> to vector<2x4xf32>
    %538 = arith.subf %532, %537 : vector<2x4xf32>
    %c0_91 = arith.constant 0 : index
    %c0_92 = arith.constant 0 : index
    %539 = vector.load %arg7[%c0_91, %c0_92] : memref<2x4xf32, #tpu.memory_space<vmem>>, vector<2x4xf32>
    tpu.vector_store %arg7[%c0_91, %c0_92], %538 {strides = array<i32>} : memref<2x4xf32, #tpu.memory_space<vmem>>, vector<2x4xf32>,
    return
  }
  func.func @transform_0(%arg0: i32) -> (i32, i32) {
    %c0_i32 = arith.constant 0 : i32
    %c0_i32_0 = arith.constant 0 : i32
    %c0_i32_1 = arith.constant 0 : i32
    return %c0_i32, %c0_i32_0 : i32, i32
  }
  func.func @transform_1(%arg0: i32) -> (i32, i32, i32) {
    %c0_i32 = arith.constant 0 : i32
    %c0_i32_0 = arith.constant 0 : i32
    %c0_i32_1 = arith.constant 0 : i32
    %c0_i32_2 = arith.constant 0 : i32
    return %c0_i32, %c0_i32_0, %c0_i32_1 : i32, i32, i32
  }
  func.func @transform_2(%arg0: i32) -> (i32, i32, i32) {
    %c0_i32 = arith.constant 0 : i32
    %c0_i32_0 = arith.constant 0 : i32
    %c0_i32_1 = arith.constant 0 : i32
    %c0_i32_2 = arith.constant 0 : i32
    return %c0_i32, %c0_i32_0, %c0_i32_1 : i32, i32, i32
  }
  func.func @transform_3(%arg0: i32) -> (i32, i32) {
    %c0_i32 = arith.constant 0 : i32
    %c0_i32_0 = arith.constant 0 : i32
    %c0_i32_1 = arith.constant 0 : i32
    return %c0_i32, %c0_i32_0 : i32, i32
  }
  func.func @transform_4(%arg0: i32) -> (i32, i32) {
    %c0_i32 = arith.constant 0 : i32
    %c0_i32_0 = arith.constant 0 : i32
    %c0_i32_1 = arith.constant 0 : i32
    return %c0_i32, %c0_i32_0 : i32, i32
  }
  func.func @transform_5(%arg0: i32) -> (i32, i32) {
    %c0_i32 = arith.constant 0 : i32
    %c0_i32_0 = arith.constant 0 : i32
    %c0_i32_1 = arith.constant 0 : i32
    return %c0_i32, %c0_i32_0 : i32, i32
  }
  func.func @transform_6(%arg0: i32) -> (i32, i32) {
    %c0_i32 = arith.constant 0 : i32
    %c0_i32_0 = arith.constant 0 : i32
    %c0_i32_1 = arith.constant 0 : i32
    return %c0_i32, %c0_i32_0 : i32, i32
  }
}

</mosaic_0001>

<llo_original>
// kernel: classifier_forward.1
$region0: #{classifier_forward.1}
  #allocation0 [shape = 'u32[]', space=smem, size = 0x4, offset = 0x4, fixed_abs, tag = 'smem constant byte address 0x4 - core index']
  #allocation1 [shape = 'u32[144,128]{1,0:T(1,128)}', space=vmem, size = 0x12000, scoped, tag = 'internal scratch']
  %s0 = inlined_call_operand.vmem [shape: f32[16,16], index: 0, kind: input, shape index: {}]
  %s1 = inlined_call_operand.hbm [shape: bf16[3,32,128], index: 1, kind: input, shape index: {}]
  %s2 = inlined_call_operand.hbm [shape: bf16[3,32,128], index: 2, kind: input, shape index: {}]
  %s3 = inlined_call_operand.vmem [shape: f32[3,128], index: 3, kind: input, shape index: {}]
  %s4 = inlined_call_operand.vmem [shape: bf16[32,4], index: 4, kind: input, shape index: {}]
  %s5 = inlined_call_operand.vmem [shape: f32[1,4], index: 5, kind: input, shape index: {}]
  %s6 = inlined_call_operand.hbm [shape: f32[2,4], index: 6, kind: output, shape index: {}]
  %s7 = sld [smem:[#allocation0]]
  $region42: #{classifier_forward.1} parent=0
    _
  %s9 = ssub.s32 1, %s7
  %s10 = scalar_select 0, %s9, %s7
  $region1: #{classifier_forward.1} parent=0
    #allocation2 [shape = 'u8[24576]{0}', space=vmem, size = 0x6000, scoped, tag = 'input window, operand 1, single buffered']
    #allocation3 [shape = 's32[1]{0}', space=sflag, size = 0x4, scoped, tag = 'scoped memory for classifier_forward.1']
    #allocation4 [shape = 's32[1]{0}', space=sflag, size = 0x4, scoped, tag = 'scoped memory for classifier_forward.1']
    #allocation5 [shape = 'u8[24576]{0}', space=vmem, size = 0x6000, scoped, tag = 'input window, operand 2, single buffered']
    #allocation6 [shape = 's32[1]{0}', space=sflag, size = 0x4, scoped, tag = 'scoped memory for classifier_forward.1']
    #allocation7 [shape = 'u8[1024]{0}', space=vmem, size = 0x400, scoped, tag = 'output window, operand 0, single buffered']
    %11 = vsyncpa [#allocation3], 0
    %12 = vsyncpa [#allocation6], 0
    %13 = vsyncpa [#allocation4], 0
    // Predicated region
    $region2: #{classifier_forward.1} parent=1 // pred_check
      _
    $region3: #{classifier_forward.1} parent=1 // pred_check_branch
      %15 = sbr.rel (0) target = $region5
    $region4: #{classifier_forward.1} parent=1 // pred_region
      _
    $region5: #{classifier_forward.1} parent=1 // pred_fallthru
      _
    // Predicated region
    $region6: #{classifier_forward.1} parent=1 // pred_check
      _
    $region7: #{classifier_forward.1} parent=1 // pred_check_branch
      %17 = sbr.rel (0) target = $region9
    $region8: #{classifier_forward.1} parent=1 // pred_region
      %s19 = ssub.s32 768, 768
      %20 = vsyncadd [#allocation3], %s19
      %s21 = sshll.u32 [#allocation2], 4
      %s22 = int_to_ptr.vmem [resolvable:$true] %s21
      %27 = dma.hbm_to_vmem [thread:$0]  %s1, 768, %s22, [#allocation3], 64, 64, 4
    $region9: #{classifier_forward.1} parent=1 // pred_fallthru
      _
    // Predicated region
    $region10: #{classifier_forward.1} parent=1 // pred_check
      _
    $region11: #{classifier_forward.1} parent=1 // pred_check_branch
      %29 = sbr.rel (0) target = $region13
    $region12: #{classifier_forward.1} parent=1 // pred_region
      %s31 = ssub.s32 768, 768
      %32 = vsyncadd [#allocation6], %s31
      %s33 = sshll.u32 [#allocation5], 4
      %s34 = int_to_ptr.vmem [resolvable:$true] %s33
      %39 = dma.hbm_to_vmem [thread:$0]  %s2, 768, %s34, [#allocation6], 64, 64, 4
    $region13: #{classifier_forward.1} parent=1 // pred_fallthru
      _
    // Predicated region
    $region14: #{classifier_forward.1} parent=1 // pred_check
      _
    $region15: #{classifier_forward.1} parent=1 // pred_check_branch
      %41 = sbr.rel (0) target = $region17
    $region16: #{classifier_forward.1} parent=1 // pred_region
      _
    $region17: #{classifier_forward.1} parent=1 // pred_fallthru
      _
    // Predicated region
    $region18: #{classifier_forward.1} parent=1 // pred_check
      _
    $region19: #{classifier_forward.1} parent=1 // pred_check_branch
      %43 = sbr.rel (0) target = $region21
    $region20: #{classifier_forward.1} parent=1 // pred_region
      _
    $region21: #{classifier_forward.1} parent=1 // pred_fallthru
      _
    // Predicated region
    $region22: #{classifier_forward.1} parent=1 // pred_check
      _
    $region23: #{classifier_forward.1} parent=1 // pred_check_branch
      %45 = sbr.rel (0) target = $region25
    $region24: #{classifier_forward.1} parent=1 // pred_region
      _
    $region25: #{classifier_forward.1} parent=1 // pred_fallthru
      _
    // Predicated region
    $region26: #{classifier_forward.1} parent=1 // pred_check
      _
    $region27: #{classifier_forward.1} parent=1 // pred_check_branch
      %47 = sbr.rel (0) target = $region29
    $region28: #{classifier_forward.1} parent=1 // pred_region
      %48 = dma.done [#allocation3], 768
    $region29: #{classifier_forward.1} parent=1 // pred_fallthru
      _
    // Predicated region
    $region30: #{classifier_forward.1} parent=1 // pred_check
      _
    $region31: #{classifier_forward.1} parent=1 // pred_check_branch
      %50 = sbr.rel (0) target = $region33
    $region32: #{classifier_forward.1} parent=1 // pred_region
      %51 = dma.done [#allocation6], 768
    $region33: #{classifier_forward.1} parent=1 // pred_fallthru
      _
    %v53 = vld [vmem:[%s0] sm:$0xff]
    %v54 = vld [vmem:[%s0 + $0x8] sm:$0xff]
    %v55 = vpack.c.bf16 %v54, %v53
    %v56 = vld [vmem:[#allocation2] sm:$0xf]
    %v57 = vld [vmem:[#allocation2 + $0x4] sm:$0xf]
    %v58 = vld [vmem:[%s3] sm:$0x1]
    %v59 = vlaneseq
    %v60 = vshrl.u32 %v59, 7
    %v61 = vsub.s32 0, %v60
    %v62 = vrot.slane %v58, %v61
    %v65 = vunpack.c.l.b16 %v56
    %v66 = vunpack.c.l.b16 %v57
    %v67 = vpack.c.b16 %v66, %v65
    %vm69 = vcmask 130048
    %v71 = vsel %vm69, %v55, 0
    %73 = vmatprep.subr.bf16.mxu0 0
    %74 = vmatpush1.bf16.msra.mxu0 0
    %75 = vmatprep.subr.bf16.mxu0 0
    %76 = vmatpush1.bf16.msra.mxu0 0
    %77 = vmatprep.subr.bf16.mxu0 0
    %78 = vmatpush1.bf16.msra.mxu0 0
    %79 = vmatprep.subr.bf16.mxu0 0
    %80 = vmatpush1.bf16.msra.mxu0 0
    %81 = vmatprep.subr.bf16.mxu0 0
    %82 = vmatpush1.bf16.msra.mxu0 0
    %83 = vmatprep.subr.bf16.mxu0 0
    %84 = vmatpush1.bf16.msra.mxu0 0
    %85 = vmatprep.subr.bf16.mxu0 0
    %86 = vmatpush1.bf16.msra.mxu0 0
    %87 = vmatprep.subr.bf16.mxu0 0
    %88 = vmatpush1.bf16.msra.mxu0 %v67
    %89 = vmatprep.subr.bf16.mxu0 0
    %90 = vmatpush2.bf16.msra.mxu0 0
    %91 = vmatprep.subr.bf16.mxu0 0
    %92 = vmatpush2.bf16.msra.mxu0 0
    %93 = vmatprep.subr.bf16.mxu0 0
    %94 = vmatpush2.bf16.msra.mxu0 0
    %95 = vmatprep.subr.bf16.mxu0 0
    %96 = vmatpush2.bf16.msra.mxu0 0
    %97 = vmatprep.subr.bf16.mxu0 0
    %98 = vmatpush2.bf16.msra.mxu0 0
    %99 = vmatprep.subr.bf16.mxu0 0
    %100 = vmatpush2.bf16.msra.mxu0 0
    %101 = vmatprep.subr.bf16.mxu0 0
    %102 = vmatpush2.bf16.msra.mxu0 0
    %103 = vmatprep.subr.bf16.mxu0 0
    %104 = vmatpush2.bf16.msra.mxu0 0
    %105 = vmatprep.mubr.bf16.mxu0 0
    %106 = vmatmul.mubr.bf16.gmra.mxu0 %v71
    %v107 = vpop.f32.mrf.mxu0
    %v108 = vadd.f32 %v62, %v107
    %v109 = vpop.f32.mrf.mxu0
    %v110 = vpop.f32.mrf.mxu0
    %v111 = vadd.f32 %v62, %v110
    %v112 = vpop.f32.mrf.mxu0
    %113 = vdwg.mxu0
    %v115 = vrot.slane %v111, 7
    %vm117 = vcmask 1040384
    %v118 = vsel %vm117, %v108, %v115
    %v120 = vrot.slane %v108, 1
    %v122 = vsel %vm117, %v120, %v111
    %v123 = vrot.slane %v108, 2
    %v125 = vrot.slane %v111, 1
    %v127 = vsel %vm117, %v123, %v125
    %v128 = vrot.slane %v108, 3
    %v130 = vrot.slane %v111, 2
    %v132 = vsel %vm117, %v128, %v130
    %v133 = vrot.slane %v108, 4
    %v135 = vrot.slane %v111, 3
    %v137 = vsel %vm117, %v133, %v135
    %v138 = vrot.slane %v108, 5
    %v140 = vrot.slane %v111, 4
    %v142 = vsel %vm117, %v138, %v140
    %v143 = vrot.slane %v108, 6
    %v145 = vrot.slane %v111, 5
    %v147 = vsel %vm117, %v143, %v145
    %v148 = vrot.slane %v108, 7
    %v150 = vrot.slane %v111, 6
    %v152 = vsel %vm117, %v148, %v150
    %v153 = vld [vmem:[#allocation5] sm:$0xf]
    %v154 = vld [vmem:[#allocation5 + $0x4] sm:$0xf]
    %v155 = vld [vmem:[#allocation5 + $0x8] sm:$0xf]
    %v156 = vld [vmem:[#allocation5 + $0xc] sm:$0xf]
    %v157 = vxor.u32 %v118, 2147483648
    %v158 = vmul.f32 %v157, 1.442695
    %v159 = vpow.pop %v158
    %v160 = vadd.f32 %v159, 1.0
    %v161 = vrcp.pop %v160
    %v162 = vmul.f32 1.0, %v161
    %v163 = vtanh.pop %v118
    %165 = vrot.lane.b32.xlu0 %v163, 64
    %v166 = vpop.permute.xlu0 %165
    %v168 = vmul.f32 %v162, %v166
    %v169 = vtanh.pop %v168
    %171 = vrot.lane.b32.xlu0 %v169, 96
    %v172 = vpop.permute.xlu0 %171
    %v174 = vmul.f32 %v162, %v172
    %v175 = vpack.c.bf16 %v174, %v174
    %177 = vrot.lane.b32.xlu0 %v175, 32
    %v178 = vpop.permute.xlu0 %177
    %v183 = vunpack.c.l.b16 %v153
    %v184 = vunpack.c.l.b16 %v154
    %v185 = vunpack.c.l.b16 %v155
    %v186 = vunpack.c.l.b16 %v156
    %v187 = vpack.c.b16 %v184, %v183
    %v188 = vpack.c.b16 %v186, %v185
    %vm191 = vcmask 261120
    %v193 = vsel %vm191, %v178, 0
    %195 = vmatprep.subr.bf16.mxu0 0
    %196 = vmatpush1.bf16.msra.mxu0 0
    %197 = vmatprep.subr.bf16.mxu0 0
    %198 = vmatpush1.bf16.msra.mxu0 0
    %199 = vmatprep.subr.bf16.mxu0 0
    %200 = vmatpush1.bf16.msra.mxu0 0
    %201 = vmatprep.subr.bf16.mxu0 0
    %202 = vmatpush1.bf16.msra.mxu0 0
    %203 = vmatprep.subr.bf16.mxu0 0
    %204 = vmatpush1.bf16.msra.mxu0 0
    %205 = vmatprep.subr.bf16.mxu0 0
    %206 = vmatpush1.bf16.msra.mxu0 0
    %207 = vmatprep.subr.bf16.mxu0 0
    %208 = vmatpush1.bf16.msra.mxu0 %v188
    %209 = vmatprep.subr.bf16.mxu0 0
    %210 = vmatpush1.bf16.msra.mxu0 %v187
    %211 = vmatprep.subr.bf16.mxu0 0
    %212 = vmatpush2.bf16.msra.mxu0 0
    %213 = vmatprep.subr.bf16.mxu0 0
    %214 = vmatpush2.bf16.msra.mxu0 0
    %215 = vmatprep.subr.bf16.mxu0 0
    %216 = vmatpush2.bf16.msra.mxu0 0
    %217 = vmatprep.subr.bf16.mxu0 0
    %218 = vmatpush2.bf16.msra.mxu0 0
    %219 = vmatprep.subr.bf16.mxu0 0
    %220 = vmatpush2.bf16.msra.mxu0 0
    %221 = vmatprep.subr.bf16.mxu0 0
    %222 = vmatpush2.bf16.msra.mxu0 0
    %223 = vmatprep.subr.bf16.mxu0 0
    %224 = vmatpush2.bf16.msra.mxu0 0
    %225 = vmatprep.subr.bf16.mxu0 0
    %226 = vmatpush2.bf16.msra.mxu0 0
    %227 = vmatprep.mubr.bf16.mxu0 0
    %228 = vmatmul.mubr.bf16.gmra.mxu0 %v193
    %v229 = vpop.f32.mrf.mxu0
    %v230 = vadd.f32 0.0, %v229
    %v231 = vpop.f32.mrf.mxu0
    %v232 = vpop.f32.mrf.mxu0
    %v233 = vpop.f32.mrf.mxu0
    %234 = vdwg.mxu0
    %v235 = vadd.f32 %v122, %v230
    %v236 = vxor.u32 %v235, 2147483648
    %v237 = vmul.f32 %v236, 1.442695
    %v238 = vpow.pop %v237
    %v239 = vadd.f32 %v238, 1.0
    %v240 = vrcp.pop %v239
    %v241 = vmul.f32 1.0, %v240
    %v242 = vtanh.pop %v235
    %244 = vrot.lane.b32.xlu0 %v168, 32
    %v245 = vpop.permute.xlu0 %244
    %v247 = vmul.f32 %v241, %v245
    %249 = vrot.lane.b32.xlu0 %v242, 64
    %v250 = vpop.permute.xlu0 %249
    %v252 = vmul.f32 %v241, %v250
    %254 = vrot.lane.b32.xlu0 %v252, 32
    %v255 = vpop.permute.xlu0 %254
    %v257 = vadd.f32 %v247, %v255
    %v258 = vtanh.pop %v257
    %260 = vrot.lane.b32.xlu0 %v258, 64
    %v261 = vpop.permute.xlu0 %260
    %v263 = vmul.f32 %v241, %v261
    %v264 = vpack.c.bf16 %v263, %v263
    %266 = vrot.lane.b32.xlu0 %v264, 32
    %v267 = vpop.permute.xlu0 %266
    %v269 = vsel %vm191, %v267, 0
    %271 = vmatprep.subr.bf16.mxu0 0
    %272 = vmatpush1.bf16.msra.mxu0 0
    %273 = vmatprep.subr.bf16.mxu0 0
    %274 = vmatpush1.bf16.msra.mxu0 0
    %275 = vmatprep.subr.bf16.mxu0 0
    %276 = vmatpush1.bf16.msra.mxu0 0
    %277 = vmatprep.subr.bf16.mxu0 0
    %278 = vmatpush1.bf16.msra.mxu0 0
    %279 = vmatprep.subr.bf16.mxu0 0
    %280 = vmatpush1.bf16.msra.mxu0 0
    %281 = vmatprep.subr.bf16.mxu0 0
    %282 = vmatpush1.bf16.msra.mxu0 0
    %283 = vmatprep.subr.bf16.mxu0 0
    %284 = vmatpush1.bf16.msra.mxu0 %v188
    %285 = vmatprep.subr.bf16.mxu0 0
    %286 = vmatpush1.bf16.msra.mxu0 %v187
    %287 = vmatprep.subr.bf16.mxu0 0
    %288 = vmatpush2.bf16.msra.mxu0 0
    %289 = vmatprep.subr.bf16.mxu0 0
    %290 = vmatpush2.bf16.msra.mxu0 0
    %291 = vmatprep.subr.bf16.mxu0 0
    %292 = vmatpush2.bf16.msra.mxu0 0
    %293 = vmatprep.subr.bf16.mxu0 0
    %294 = vmatpush2.bf16.msra.mxu0 0
    %295 = vmatprep.subr.bf16.mxu0 0
    %296 = vmatpush2.bf16.msra.mxu0 0
    %297 = vmatprep.subr.bf16.mxu0 0
    %298 = vmatpush2.bf16.msra.mxu0 0
    %299 = vmatprep.subr.bf16.mxu0 0
    %300 = vmatpush2.bf16.msra.mxu0 0
    %301 = vmatprep.subr.bf16.mxu0 0
    %302 = vmatpush2.bf16.msra.mxu0 0
    %303 = vmatprep.mubr.bf16.mxu0 0
    %304 = vmatmul.mubr.bf16.gmra.mxu0 %v269
    %v305 = vpop.f32.mrf.mxu0
    %v306 = vadd.f32 0.0, %v305
    %v307 = vpop.f32.mrf.mxu0
    %v308 = vpop.f32.mrf.mxu0
    %v309 = vpop.f32.mrf.mxu0
    %310 = vdwg.mxu0
    %v311 = vadd.f32 %v127, %v306
    %v312 = vxor.u32 %v311, 2147483648
    %v313 = vmul.f32 %v312, 1.442695
    %v314 = vpow.pop %v313
    %v315 = vadd.f32 %v314, 1.0
    %v316 = vrcp.pop %v315
    %v317 = vmul.f32 1.0, %v316
    %v318 = vtanh.pop %v311
    %v319 = vmul.f32 %v317, %v257
    %321 = vrot.lane.b32.xlu0 %v318, 64
    %v322 = vpop.permute.xlu0 %321
    %v324 = vmul.f32 %v317, %v322
    %326 = vrot.lane.b32.xlu0 %v324, 32
    %v327 = vpop.permute.xlu0 %326
    %v329 = vadd.f32 %v319, %v327
    %v330 = vtanh.pop %v329
    %332 = vrot.lane.b32.xlu0 %v330, 64
    %v333 = vpop.permute.xlu0 %332
    %v335 = vmul.f32 %v317, %v333
    %v336 = vpack.c.bf16 %v335, %v335
    %338 = vrot.lane.b32.xlu0 %v336, 32
    %v339 = vpop.permute.xlu0 %338
    %v341 = vsel %vm191, %v339, 0
    %343 = vmatprep.subr.bf16.mxu0 0
    %344 = vmatpush1.bf16.msra.mxu0 0
    %345 = vmatprep.subr.bf16.mxu0 0
    %346 = vmatpush1.bf16.msra.mxu0 0
    %347 = vmatprep.subr.bf16.mxu0 0
    %348 = vmatpush1.bf16.msra.mxu0 0
    %349 = vmatprep.subr.bf16.mxu0 0
    %350 = vmatpush1.bf16.msra.mxu0 0
    %351 = vmatprep.subr.bf16.mxu0 0
    %352 = vmatpush1.bf16.msra.mxu0 0
    %353 = vmatprep.subr.bf16.mxu0 0
    %354 = vmatpush1.bf16.msra.mxu0 0
    %355 = vmatprep.subr.bf16.mxu0 0
    %356 = vmatpush1.bf16.msra.mxu0 %v188
    %357 = vmatprep.subr.bf16.mxu0 0
    %358 = vmatpush1.bf16.msra.mxu0 %v187
    %359 = vmatprep.subr.bf16.mxu0 0
    %360 = vmatpush2.bf16.msra.mxu0 0
    %361 = vmatprep.subr.bf16.mxu0 0
    %362 = vmatpush2.bf16.msra.mxu0 0
    %363 = vmatprep.subr.bf16.mxu0 0
    %364 = vmatpush2.bf16.msra.mxu0 0
    %365 = vmatprep.subr.bf16.mxu0 0
    %366 = vmatpush2.bf16.msra.mxu0 0
    %367 = vmatprep.subr.bf16.mxu0 0
    %368 = vmatpush2.bf16.msra.mxu0 0
    %369 = vmatprep.subr.bf16.mxu0 0
    %370 = vmatpush2.bf16.msra.mxu0 0
    %371 = vmatprep.subr.bf16.mxu0 0
    %372 = vmatpush2.bf16.msra.mxu0 0
    %373 = vmatprep.subr.bf16.mxu0 0
    %374 = vmatpush2.bf16.msra.mxu0 0
    %375 = vmatprep.mubr.bf16.mxu0 0
    %376 = vmatmul.mubr.bf16.gmra.mxu0 %v341
    %v377 = vpop.f32.mrf.mxu0
    %v378 = vadd.f32 0.0, %v377
    %v379 = vpop.f32.mrf.mxu0
    %v380 = vpop.f32.mrf.mxu0
    %v381 = vpop.f32.mrf.mxu0
    %382 = vdwg.mxu0
    %v383 = vadd.f32 %v132, %v378
    %v384 = vxor.u32 %v383, 2147483648
    %v385 = vmul.f32 %v384, 1.442695
    %v386 = vpow.pop %v385
    %v387 = vadd.f32 %v386, 1.0
    %v388 = vrcp.pop %v387
    %v389 = vmul.f32 1.0, %v388
    %v390 = vtanh.pop %v383
    %v391 = vmul.f32 %v389, %v329
    %393 = vrot.lane.b32.xlu0 %v390, 64
    %v394 = vpop.permute.xlu0 %393
    %v396 = vmul.f32 %v389, %v394
    %398 = vrot.lane.b32.xlu0 %v396, 32
    %v399 = vpop.permute.xlu0 %398
    %v401 = vadd.f32 %v391, %v399
    %v402 = vtanh.pop %v401
    %404 = vrot.lane.b32.xlu0 %v402, 64
    %v405 = vpop.permute.xlu0 %404
    %v407 = vmul.f32 %v389, %v405
    %v408 = vpack.c.bf16 %v407, %v407
    %410 = vrot.lane.b32.xlu0 %v408, 32
    %v411 = vpop.permute.xlu0 %410
    %v413 = vsel %vm191, %v411, 0
    %415 = vmatprep.subr.bf16.mxu0 0
    %416 = vmatpush1.bf16.msra.mxu0 0
    %417 = vmatprep.subr.bf16.mxu0 0
    %418 = vmatpush1.bf16.msra.mxu0 0
    %419 = vmatprep.subr.bf16.mxu0 0
    %420 = vmatpush1.bf16.msra.mxu0 0
    %421 = vmatprep.subr.bf16.mxu0 0
    %422 = vmatpush1.bf16.msra.mxu0 0
    %423 = vmatprep.subr.bf16.mxu0 0
    %424 = vmatpush1.bf16.msra.mxu0 0
    %425 = vmatprep.subr.bf16.mxu0 0
    %426 = vmatpush1.bf16.msra.mxu0 0
    %427 = vmatprep.subr.bf16.mxu0 0
    %428 = vmatpush1.bf16.msra.mxu0 %v188
    %429 = vmatprep.subr.bf16.mxu0 0
    %430 = vmatpush1.bf16.msra.mxu0 %v187
    %431 = vmatprep.subr.bf16.mxu0 0
    %432 = vmatpush2.bf16.msra.mxu0 0
    %433 = vmatprep.subr.bf16.mxu0 0
    %434 = vmatpush2.bf16.msra.mxu0 0
    %435 = vmatprep.subr.bf16.mxu0 0
    %436 = vmatpush2.bf16.msra.mxu0 0
    %437 = vmatprep.subr.bf16.mxu0 0
    %438 = vmatpush2.bf16.msra.mxu0 0
    %439 = vmatprep.subr.bf16.mxu0 0
    %440 = vmatpush2.bf16.msra.mxu0 0
    %441 = vmatprep.subr.bf16.mxu0 0
    %442 = vmatpush2.bf16.msra.mxu0 0
    %443 = vmatprep.subr.bf16.mxu0 0
    %444 = vmatpush2.bf16.msra.mxu0 0
    %445 = vmatprep.subr.bf16.mxu0 0
    %446 = vmatpush2.bf16.msra.mxu0 0
    %447 = vmatprep.mubr.bf16.mxu0 0
    %448 = vmatmul.mubr.bf16.gmra.mxu0 %v413
    %v449 = vpop.f32.mrf.mxu0
    %v450 = vadd.f32 0.0, %v449
    %v451 = vpop.f32.mrf.mxu0
    %v452 = vpop.f32.mrf.mxu0
    %v453 = vpop.f32.mrf.mxu0
    %454 = vdwg.mxu0
    %v455 = vadd.f32 %v137, %v450
    %v456 = vxor.u32 %v455, 2147483648
    %v457 = vmul.f32 %v456, 1.442695
    %v458 = vpow.pop %v457
    %v459 = vadd.f32 %v458, 1.0
    %v460 = vrcp.pop %v459
    %v461 = vmul.f32 1.0, %v460
    %v462 = vtanh.pop %v455
    %v463 = vmul.f32 %v461, %v401
    %465 = vrot.lane.b32.xlu0 %v462, 64
    %v466 = vpop.permute.xlu0 %465
    %v468 = vmul.f32 %v461, %v466
    %470 = vrot.lane.b32.xlu0 %v468, 32
    %v471 = vpop.permute.xlu0 %470
    %v473 = vadd.f32 %v463, %v471
    %v474 = vtanh.pop %v473
    %476 = vrot.lane.b32.xlu0 %v474, 64
    %v477 = vpop.permute.xlu0 %476
    %v479 = vmul.f32 %v461, %v477
    %v480 = vpack.c.bf16 %v479, %v479
    %482 = vrot.lane.b32.xlu0 %v480, 32
    %v483 = vpop.permute.xlu0 %482
    %v485 = vsel %vm191, %v483, 0
    %487 = vmatprep.subr.bf16.mxu0 0
    %488 = vmatpush1.bf16.msra.mxu0 0
    %489 = vmatprep.subr.bf16.mxu0 0
    %490 = vmatpush1.bf16.msra.mxu0 0
    %491 = vmatprep.subr.bf16.mxu0 0
    %492 = vmatpush1.bf16.msra.mxu0 0
    %493 = vmatprep.subr.bf16.mxu0 0
    %494 = vmatpush1.bf16.msra.mxu0 0
    %495 = vmatprep.subr.bf16.mxu0 0
    %496 = vmatpush1.bf16.msra.mxu0 0
    %497 = vmatprep.subr.bf16.mxu0 0
    %498 = vmatpush1.bf16.msra.mxu0 0
    %499 = vmatprep.subr.bf16.mxu0 0
    %500 = vmatpush1.bf16.msra.mxu0 %v188
    %501 = vmatprep.subr.bf16.mxu0 0
    %502 = vmatpush1.bf16.msra.mxu0 %v187
    %503 = vmatprep.subr.bf16.mxu0 0
    %504 = vmatpush2.bf16.msra.mxu0 0
    %505 = vmatprep.subr.bf16.mxu0 0
    %506 = vmatpush2.bf16.msra.mxu0 0
    %507 = vmatprep.subr.bf16.mxu0 0
    %508 = vmatpush2.bf16.msra.mxu0 0
    %509 = vmatprep.subr.bf16.mxu0 0
    %510 = vmatpush2.bf16.msra.mxu0 0
    %511 = vmatprep.subr.bf16.mxu0 0
    %512 = vmatpush2.bf16.msra.mxu0 0
    %513 = vmatprep.subr.bf16.mxu0 0
    %514 = vmatpush2.bf16.msra.mxu0 0
    %515 = vmatprep.subr.bf16.mxu0 0
    %516 = vmatpush2.bf16.msra.mxu0 0
    %517 = vmatprep.subr.bf16.mxu0 0
    %518 = vmatpush2.bf16.msra.mxu0 0
    %519 = vmatprep.mubr.bf16.mxu0 0
    %520 = vmatmul.mubr.bf16.gmra.mxu0 %v485
    %v521 = vpop.f32.mrf.mxu0
    %v522 = vadd.f32 0.0, %v521
    %v523 = vpop.f32.mrf.mxu0
    %v524 = vpop.f32.mrf.mxu0
    %v525 = vpop.f32.mrf.mxu0
    %526 = vdwg.mxu0
    %v527 = vadd.f32 %v142, %v522
    %v528 = vxor.u32 %v527, 2147483648
    %v529 = vmul.f32 %v528, 1.442695
    %v530 = vpow.pop %v529
    %v531 = vadd.f32 %v530, 1.0
    %v532 = vrcp.pop %v531
    %v533 = vmul.f32 1.0, %v532
    %v534 = vtanh.pop %v527
    %v535 = vmul.f32 %v533, %v473
    %537 = vrot.lane.b32.xlu0 %v534, 64
    %v538 = vpop.permute.xlu0 %537
    %v540 = vmul.f32 %v533, %v538
    %542 = vrot.lane.b32.xlu0 %v540, 32
    %v543 = vpop.permute.xlu0 %542
    %v545 = vadd.f32 %v535, %v543
    %v546 = vtanh.pop %v545
    %548 = vrot.lane.b32.xlu0 %v546, 64
    %v549 = vpop.permute.xlu0 %548
    %v551 = vmul.f32 %v533, %v549
    %v552 = vpack.c.bf16 %v551, %v551
    %554 = vrot.lane.b32.xlu0 %v552, 32
    %v555 = vpop.permute.xlu0 %554
    %v557 = vsel %vm191, %v555, 0
    %559 = vmatprep.subr.bf16.mxu0 0
    %560 = vmatpush1.bf16.msra.mxu0 0
    %561 = vmatprep.subr.bf16.mxu0 0
    %562 = vmatpush1.bf16.msra.mxu0 0
    %563 = vmatprep.subr.bf16.mxu0 0
    %564 = vmatpush1.bf16.msra.mxu0 0
    %565 = vmatprep.subr.bf16.mxu0 0
    %566 = vmatpush1.bf16.msra.mxu0 0
    %567 = vmatprep.subr.bf16.mxu0 0
    %568 = vmatpush1.bf16.msra.mxu0 0
    %569 = vmatprep.subr.bf16.mxu0 0
    %570 = vmatpush1.bf16.msra.mxu0 0
    %571 = vmatprep.subr.bf16.mxu0 0
    %572 = vmatpush1.bf16.msra.mxu0 %v188
    %573 = vmatprep.subr.bf16.mxu0 0
    %574 = vmatpush1.bf16.msra.mxu0 %v187
    %575 = vmatprep.subr.bf16.mxu0 0
    %576 = vmatpush2.bf16.msra.mxu0 0
    %577 = vmatprep.subr.bf16.mxu0 0
    %578 = vmatpush2.bf16.msra.mxu0 0
    %579 = vmatprep.subr.bf16.mxu0 0
    %580 = vmatpush2.bf16.msra.mxu0 0
    %581 = vmatprep.subr.bf16.mxu0 0
    %582 = vmatpush2.bf16.msra.mxu0 0
    %583 = vmatprep.subr.bf16.mxu0 0
    %584 = vmatpush2.bf16.msra.mxu0 0
    %585 = vmatprep.subr.bf16.mxu0 0
    %586 = vmatpush2.bf16.msra.mxu0 0
    %587 = vmatprep.subr.bf16.mxu0 0
    %588 = vmatpush2.bf16.msra.mxu0 0
    %589 = vmatprep.subr.bf16.mxu0 0
    %590 = vmatpush2.bf16.msra.mxu0 0
    %591 = vmatprep.mubr.bf16.mxu0 0
    %592 = vmatmul.mubr.bf16.gmra.mxu0 %v557
    %v593 = vpop.f32.mrf.mxu0
    %v594 = vadd.f32 0.0, %v593
    %v595 = vpop.f32.mrf.mxu0
    %v596 = vpop.f32.mrf.mxu0
    %v597 = vpop.f32.mrf.mxu0
    %598 = vdwg.mxu0
    %v599 = vadd.f32 %v147, %v594
    %v600 = vxor.u32 %v599, 2147483648
    %v601 = vmul.f32 %v600, 1.442695
    %v602 = vpow.pop %v601
    %v603 = vadd.f32 %v602, 1.0
    %v604 = vrcp.pop %v603
    %v605 = vmul.f32 1.0, %v604
    %v606 = vtanh.pop %v599
    %v607 = vmul.f32 %v605, %v545
    %609 = vrot.lane.b32.xlu0 %v606, 64
    %v610 = vpop.permute.xlu0 %609
    %v612 = vmul.f32 %v605, %v610
    %614 = vrot.lane.b32.xlu0 %v612, 32
    %v615 = vpop.permute.xlu0 %614
    %v617 = vadd.f32 %v607, %v615
    %v618 = vtanh.pop %v617
    %620 = vrot.lane.b32.xlu0 %v618, 64
    %v621 = vpop.permute.xlu0 %620
    %v623 = vmul.f32 %v605, %v621
    %v624 = vpack.c.bf16 %v623, %v623
    %626 = vrot.lane.b32.xlu0 %v624, 32
    %v627 = vpop.permute.xlu0 %626
    %v629 = vsel %vm191, %v627, 0
    %631 = vmatprep.subr.bf16.mxu0 0
    %632 = vmatpush1.bf16.msra.mxu0 0
    %633 = vmatprep.subr.bf16.mxu0 0
    %634 = vmatpush1.bf16.msra.mxu0 0
    %635 = vmatprep.subr.bf16.mxu0 0
    %636 = vmatpush1.bf16.msra.mxu0 0
    %637 = vmatprep.subr.bf16.mxu0 0
    %638 = vmatpush1.bf16.msra.mxu0 0
    %639 = vmatprep.subr.bf16.mxu0 0
    %640 = vmatpush1.bf16.msra.mxu0 0
    %641 = vmatprep.subr.bf16.mxu0 0
    %642 = vmatpush1.bf16.msra.mxu0 0
    %643 = vmatprep.subr.bf16.mxu0 0
    %644 = vmatpush1.bf16.msra.mxu0 %v188
    %645 = vmatprep.subr.bf16.mxu0 0
    %646 = vmatpush1.bf16.msra.mxu0 %v187
    %647 = vmatprep.subr.bf16.mxu0 0
    %648 = vmatpush2.bf16.msra.mxu0 0
    %649 = vmatprep.subr.bf16.mxu0 0
    %650 = vmatpush2.bf16.msra.mxu0 0
    %651 = vmatprep.subr.bf16.mxu0 0
    %652 = vmatpush2.bf16.msra.mxu0 0
    %653 = vmatprep.subr.bf16.mxu0 0
    %654 = vmatpush2.bf16.msra.mxu0 0
    %655 = vmatprep.subr.bf16.mxu0 0
    %656 = vmatpush2.bf16.msra.mxu0 0
    %657 = vmatprep.subr.bf16.mxu0 0
    %658 = vmatpush2.bf16.msra.mxu0 0
    %659 = vmatprep.subr.bf16.mxu0 0
    %660 = vmatpush2.bf16.msra.mxu0 0
    %661 = vmatprep.subr.bf16.mxu0 0
    %662 = vmatpush2.bf16.msra.mxu0 0
    %663 = vmatprep.mubr.bf16.mxu0 0
    %664 = vmatmul.mubr.bf16.gmra.mxu0 %v629
    %v665 = vpop.f32.mrf.mxu0
    %v666 = vadd.f32 0.0, %v665
    %v667 = vpop.f32.mrf.mxu0
    %v668 = vpop.f32.mrf.mxu0
    %v669 = vpop.f32.mrf.mxu0
    %670 = vdwg.mxu0
    %v671 = vadd.f32 %v152, %v666
    %v672 = vxor.u32 %v671, 2147483648
    %v673 = vmul.f32 %v672, 1.442695
    %v674 = vpow.pop %v673
    %v675 = vadd.f32 %v674, 1.0
    %v676 = vrcp.pop %v675
    %v677 = vmul.f32 1.0, %v676
    %v678 = vtanh.pop %v671
    %v679 = vmul.f32 %v677, %v617
    %681 = vrot.lane.b32.xlu0 %v678, 64
    %v682 = vpop.permute.xlu0 %681
    %v684 = vmul.f32 %v677, %v682
    %686 = vrot.lane.b32.xlu0 %v684, 32
    %v687 = vpop.permute.xlu0 %686
    %v689 = vadd.f32 %v679, %v687
    %v690 = vtanh.pop %v689
    %692 = vrot.lane.b32.xlu0 %v690, 64
    %v693 = vpop.permute.xlu0 %692
    %v695 = vmul.f32 %v677, %v693
    %v696 = vpack.c.bf16 %v695, %v695
    %s697 = scalar_lea.vmem [#allocation5], 16
    %v698 = vld [vmem:[%s697] sm:$0xf]
    %v699 = vld [vmem:[%s697 + $0x4] sm:$0xf]
    %v700 = vld [vmem:[%s697 + $0x8] sm:$0xf]
    %v701 = vld [vmem:[%s697 + $0xc] sm:$0xf]
    %s702 = scalar_lea.vmem [#allocation2], 16
    %v703 = vld [vmem:[%s702] sm:$0xf]
    %v704 = vld [vmem:[%s702 + $0x4] sm:$0xf]
    %v705 = vld [vmem:[%s702 + $0x8] sm:$0xf]
    %v706 = vld [vmem:[%s702 + $0xc] sm:$0xf]
    %v707 = vld [vmem:[%s3 + $0x1] sm:$0x1]
    %v708 = vlaneseq
    %v709 = vshrl.u32 %v708, 7
    %v710 = vsub.s32 0, %v709
    %v711 = vrot.slane %v707, %v710
    %v716 = vunpack.c.l.b16 %v703
    %v717 = vunpack.c.l.b16 %v704
    %v718 = vunpack.c.l.b16 %v705
    %v719 = vunpack.c.l.b16 %v706
    %v720 = vpack.c.b16 %v717, %v716
    %v721 = vpack.c.b16 %v719, %v718
    %724 = vmatprep.subr.bf16.mxu0 0
    %725 = vmatpush1.bf16.msra.mxu0 0
    %726 = vmatprep.subr.bf16.mxu0 0
    %727 = vmatpush1.bf16.msra.mxu0 0
    %728 = vmatprep.subr.bf16.mxu0 0
    %729 = vmatpush1.bf16.msra.mxu0 0
    %730 = vmatprep.subr.bf16.mxu0 0
    %731 = vmatpush1.bf16.msra.mxu0 0
    %732 = vmatprep.subr.bf16.mxu0 0
    %733 = vmatpush1.bf16.msra.mxu0 0
    %734 = vmatprep.subr.bf16.mxu0 0
    %735 = vmatpush1.bf16.msra.mxu0 0
    %736 = vmatprep.subr.bf16.mxu0 0
    %737 = vmatpush1.bf16.msra.mxu0 %v721
    %738 = vmatprep.subr.bf16.mxu0 0
    %739 = vmatpush1.bf16.msra.mxu0 %v720
    %740 = vmatprep.subr.bf16.mxu0 0
    %741 = vmatpush2.bf16.msra.mxu0 0
    %742 = vmatprep.subr.bf16.mxu0 0
    %743 = vmatpush2.bf16.msra.mxu0 0
    %744 = vmatprep.subr.bf16.mxu0 0
    %745 = vmatpush2.bf16.msra.mxu0 0
    %746 = vmatprep.subr.bf16.mxu0 0
    %747 = vmatpush2.bf16.msra.mxu0 0
    %748 = vmatprep.subr.bf16.mxu0 0
    %749 = vmatpush2.bf16.msra.mxu0 0
    %750 = vmatprep.subr.bf16.mxu0 0
    %751 = vmatpush2.bf16.msra.mxu0 0
    %752 = vmatprep.subr.bf16.mxu0 0
    %753 = vmatpush2.bf16.msra.mxu0 0
    %754 = vmatprep.subr.bf16.mxu0 0
    %755 = vmatpush2.bf16.msra.mxu0 0
    %756 = vmatprep.mubr.bf16.mxu0 0
    %757 = vmatmul.mubr.bf16.gmra.mxu0 %v193
    %v758 = vpop.f32.mrf.mxu0
    %v759 = vadd.f32 %v711, %v758
    %v760 = vpop.f32.mrf.mxu0
    %v761 = vpop.f32.mrf.mxu0
    %v762 = vpop.f32.mrf.mxu0
    %763 = vdwg.mxu0
    %v764 = vxor.u32 %v759, 2147483648
    %v765 = vmul.f32 %v764, 1.442695
    %v766 = vpow.pop %v765
    %v767 = vadd.f32 %v766, 1.0
    %v768 = vrcp.pop %v767
    %v769 = vmul.f32 1.0, %v768
    %v770 = vtanh.pop %v759
    %772 = vrot.lane.b32.xlu0 %v770, 64
    %v773 = vpop.permute.xlu0 %772
    %v775 = vmul.f32 %v769, %v773
    %v776 = vtanh.pop %v775
    %778 = vrot.lane.b32.xlu0 %v776, 96
    %v779 = vpop.permute.xlu0 %778
    %v781 = vmul.f32 %v769, %v779
    %v782 = vpack.c.bf16 %v781, %v781
    %783 = vmatprep.subr.bf16.mxu0 0
    %784 = vmatpush1.bf16.msra.mxu0 0
    %785 = vmatprep.subr.bf16.mxu0 0
    %786 = vmatpush1.bf16.msra.mxu0 0
    %787 = vmatprep.subr.bf16.mxu0 0
    %788 = vmatpush1.bf16.msra.mxu0 0
    %789 = vmatprep.subr.bf16.mxu0 0
    %790 = vmatpush1.bf16.msra.mxu0 0
    %791 = vmatprep.subr.bf16.mxu0 0
    %792 = vmatpush1.bf16.msra.mxu0 0
    %793 = vmatprep.subr.bf16.mxu0 0
    %794 = vmatpush1.bf16.msra.mxu0 0
    %795 = vmatprep.subr.bf16.mxu0 0
    %796 = vmatpush1.bf16.msra.mxu0 %v721
    %797 = vmatprep.subr.bf16.mxu0 0
    %798 = vmatpush1.bf16.msra.mxu0 %v720
    %799 = vmatprep.subr.bf16.mxu0 0
    %800 = vmatpush2.bf16.msra.mxu0 0
    %801 = vmatprep.subr.bf16.mxu0 0
    %802 = vmatpush2.bf16.msra.mxu0 0
    %803 = vmatprep.subr.bf16.mxu0 0
    %804 = vmatpush2.bf16.msra.mxu0 0
    %805 = vmatprep.subr.bf16.mxu0 0
    %806 = vmatpush2.bf16.msra.mxu0 0
    %807 = vmatprep.subr.bf16.mxu0 0
    %808 = vmatpush2.bf16.msra.mxu0 0
    %809 = vmatprep.subr.bf16.mxu0 0
    %810 = vmatpush2.bf16.msra.mxu0 0
    %811 = vmatprep.subr.bf16.mxu0 0
    %812 = vmatpush2.bf16.msra.mxu0 0
    %813 = vmatprep.subr.bf16.mxu0 0
    %814 = vmatpush2.bf16.msra.mxu0 0
    %815 = vmatprep.mubr.bf16.mxu0 0
    %816 = vmatmul.mubr.bf16.gmra.mxu0 %v269
    %v817 = vpop.f32.mrf.mxu0
    %v818 = vadd.f32 %v711, %v817
    %v819 = vpop.f32.mrf.mxu0
    %v820 = vpop.f32.mrf.mxu0
    %v821 = vpop.f32.mrf.mxu0
    %822 = vdwg.mxu0
    %824 = vrot.lane.b32.xlu0 %v782, 32
    %v825 = vpop.permute.xlu0 %824
    %v830 = vunpack.c.l.b16 %v698
    %v831 = vunpack.c.l.b16 %v699
    %v832 = vunpack.c.l.b16 %v700
    %v833 = vunpack.c.l.b16 %v701
    %v834 = vpack.c.b16 %v831, %v830
    %v835 = vpack.c.b16 %v833, %v832
    %v839 = vsel %vm191, %v825, 0
    %841 = vmatprep.subr.bf16.mxu0 0
    %842 = vmatpush1.bf16.msra.mxu0 0
    %843 = vmatprep.subr.bf16.mxu0 0
    %844 = vmatpush1.bf16.msra.mxu0 0
    %845 = vmatprep.subr.bf16.mxu0 0
    %846 = vmatpush1.bf16.msra.mxu0 0
    %847 = vmatprep.subr.bf16.mxu0 0
    %848 = vmatpush1.bf16.msra.mxu0 0
    %849 = vmatprep.subr.bf16.mxu0 0
    %850 = vmatpush1.bf16.msra.mxu0 0
    %851 = vmatprep.subr.bf16.mxu0 0
    %852 = vmatpush1.bf16.msra.mxu0 0
    %853 = vmatprep.subr.bf16.mxu0 0
    %854 = vmatpush1.bf16.msra.mxu0 %v835
    %855 = vmatprep.subr.bf16.mxu0 0
    %856 = vmatpush1.bf16.msra.mxu0 %v834
    %857 = vmatprep.subr.bf16.mxu0 0
    %858 = vmatpush2.bf16.msra.mxu0 0
    %859 = vmatprep.subr.bf16.mxu0 0
    %860 = vmatpush2.bf16.msra.mxu0 0
    %861 = vmatprep.subr.bf16.mxu0 0
    %862 = vmatpush2.bf16.msra.mxu0 0
    %863 = vmatprep.subr.bf16.mxu0 0
    %864 = vmatpush2.bf16.msra.mxu0 0
    %865 = vmatprep.subr.bf16.mxu0 0
    %866 = vmatpush2.bf16.msra.mxu0 0
    %867 = vmatprep.subr.bf16.mxu0 0
    %868 = vmatpush2.bf16.msra.mxu0 0
    %869 = vmatprep.subr.bf16.mxu0 0
    %870 = vmatpush2.bf16.msra.mxu0 0
    %871 = vmatprep.subr.bf16.mxu0 0
    %872 = vmatpush2.bf16.msra.mxu0 0
    %873 = vmatprep.mubr.bf16.mxu0 0
    %874 = vmatmul.mubr.bf16.gmra.mxu0 %v839
    %v875 = vpop.f32.mrf.mxu0
    %v876 = vadd.f32 0.0, %v875
    %v877 = vpop.f32.mrf.mxu0
    %v878 = vpop.f32.mrf.mxu0
    %v879 = vpop.f32.mrf.mxu0
    %880 = vdwg.mxu0
    %v881 = vadd.f32 %v818, %v876
    %v882 = vxor.u32 %v881, 2147483648
    %v883 = vmul.f32 %v882, 1.442695
    %v884 = vpow.pop %v883
    %v885 = vadd.f32 %v884, 1.0
    %v886 = vrcp.pop %v885
    %v887 = vmul.f32 1.0, %v886
    %v888 = vtanh.pop %v881
    %890 = vrot.lane.b32.xlu0 %v775, 32
    %v891 = vpop.permute.xlu0 %890
    %v893 = vmul.f32 %v887, %v891
    %895 = vrot.lane.b32.xlu0 %v888, 64
    %v896 = vpop.permute.xlu0 %895
    %v898 = vmul.f32 %v887, %v896
    %900 = vrot.lane.b32.xlu0 %v898, 32
    %v901 = vpop.permute.xlu0 %900
    %v903 = vadd.f32 %v893, %v901
    %v904 = vtanh.pop %v903
    %906 = vrot.lane.b32.xlu0 %v904, 64
    %v907 = vpop.permute.xlu0 %906
    %v909 = vmul.f32 %v887, %v907
    %v910 = vpack.c.bf16 %v909, %v909
    %911 = vmatprep.subr.bf16.mxu0 0
    %912 = vmatpush1.bf16.msra.mxu0 0
    %913 = vmatprep.subr.bf16.mxu0 0
    %914 = vmatpush1.bf16.msra.mxu0 0
    %915 = vmatprep.subr.bf16.mxu0 0
    %916 = vmatpush1.bf16.msra.mxu0 0
    %917 = vmatprep.subr.bf16.mxu0 0
    %918 = vmatpush1.bf16.msra.mxu0 0
    %919 = vmatprep.subr.bf16.mxu0 0
    %920 = vmatpush1.bf16.msra.mxu0 0
    %921 = vmatprep.subr.bf16.mxu0 0
    %922 = vmatpush1.bf16.msra.mxu0 0
    %923 = vmatprep.subr.bf16.mxu0 0
    %924 = vmatpush1.bf16.msra.mxu0 %v721
    %925 = vmatprep.subr.bf16.mxu0 0
    %926 = vmatpush1.bf16.msra.mxu0 %v720
    %927 = vmatprep.subr.bf16.mxu0 0
    %928 = vmatpush2.bf16.msra.mxu0 0
    %929 = vmatprep.subr.bf16.mxu0 0
    %930 = vmatpush2.bf16.msra.mxu0 0
    %931 = vmatprep.subr.bf16.mxu0 0
    %932 = vmatpush2.bf16.msra.mxu0 0
    %933 = vmatprep.subr.bf16.mxu0 0
    %934 = vmatpush2.bf16.msra.mxu0 0
    %935 = vmatprep.subr.bf16.mxu0 0
    %936 = vmatpush2.bf16.msra.mxu0 0
    %937 = vmatprep.subr.bf16.mxu0 0
    %938 = vmatpush2.bf16.msra.mxu0 0
    %939 = vmatprep.subr.bf16.mxu0 0
    %940 = vmatpush2.bf16.msra.mxu0 0
    %941 = vmatprep.subr.bf16.mxu0 0
    %942 = vmatpush2.bf16.msra.mxu0 0
    %943 = vmatprep.mubr.bf16.mxu0 0
    %944 = vmatmul.mubr.bf16.gmra.mxu0 %v341
    %v945 = vpop.f32.mrf.mxu0
    %v946 = vadd.f32 %v711, %v945
    %v947 = vpop.f32.mrf.mxu0
    %v948 = vpop.f32.mrf.mxu0
    %v949 = vpop.f32.mrf.mxu0
    %950 = vdwg.mxu0
    %952 = vrot.lane.b32.xlu0 %v910, 32
    %v953 = vpop.permute.xlu0 %952
    %v955 = vsel %vm191, %v953, 0
    %957 = vmatprep.subr.bf16.mxu0 0
    %958 = vmatpush1.bf16.msra.mxu0 0
    %959 = vmatprep.subr.bf16.mxu0 0
    %960 = vmatpush1.bf16.msra.mxu0 0
    %961 = vmatprep.subr.bf16.mxu0 0
    %962 = vmatpush1.bf16.msra.mxu0 0
    %963 = vmatprep.subr.bf16.mxu0 0
    %964 = vmatpush1.bf16.msra.mxu0 0
    %965 = vmatprep.subr.bf16.mxu0 0
    %966 = vmatpush1.bf16.msra.mxu0 0
    %967 = vmatprep.subr.bf16.mxu0 0
    %968 = vmatpush1.bf16.msra.mxu0 0
    %969 = vmatprep.subr.bf16.mxu0 0
    %970 = vmatpush1.bf16.msra.mxu0 %v835
    %971 = vmatprep.subr.bf16.mxu0 0
    %972 = vmatpush1.bf16.msra.mxu0 %v834
    %973 = vmatprep.subr.bf16.mxu0 0
    %974 = vmatpush2.bf16.msra.mxu0 0
    %975 = vmatprep.subr.bf16.mxu0 0
    %976 = vmatpush2.bf16.msra.mxu0 0
    %977 = vmatprep.subr.bf16.mxu0 0
    %978 = vmatpush2.bf16.msra.mxu0 0
    %979 = vmatprep.subr.bf16.mxu0 0
    %980 = vmatpush2.bf16.msra.mxu0 0
    %981 = vmatprep.subr.bf16.mxu0 0
    %982 = vmatpush2.bf16.msra.mxu0 0
    %983 = vmatprep.subr.bf16.mxu0 0
    %984 = vmatpush2.bf16.msra.mxu0 0
    %985 = vmatprep.subr.bf16.mxu0 0
    %986 = vmatpush2.bf16.msra.mxu0 0
    %987 = vmatprep.subr.bf16.mxu0 0
    %988 = vmatpush2.bf16.msra.mxu0 0
    %989 = vmatprep.mubr.bf16.mxu0 0
    %990 = vmatmul.mubr.bf16.gmra.mxu0 %v955
    %v991 = vpop.f32.mrf.mxu0
    %v992 = vadd.f32 0.0, %v991
    %v993 = vpop.f32.mrf.mxu0
    %v994 = vpop.f32.mrf.mxu0
    %v995 = vpop.f32.mrf.mxu0
    %996 = vdwg.mxu0
    %v997 = vadd.f32 %v946, %v992
    %v998 = vxor.u32 %v997, 2147483648
    %v999 = vmul.f32 %v998, 1.442695
    %v1000 = vpow.pop %v999
    %v1001 = vadd.f32 %v1000, 1.0
    %v1002 = vrcp.pop %v1001
    %v1003 = vmul.f32 1.0, %v1002
    %v1004 = vtanh.pop %v997
    %v1005 = vmul.f32 %v1003, %v903
    %1007 = vrot.lane.b32.xlu0 %v1004, 64
    %v1008 = vpop.permute.xlu0 %1007
    %v1010 = vmul.f32 %v1003, %v1008
    %1012 = vrot.lane.b32.xlu0 %v1010, 32
    %v1013 = vpop.permute.xlu0 %1012
    %v1015 = vadd.f32 %v1005, %v1013
    %v1016 = vtanh.pop %v1015
    %1018 = vrot.lane.b32.xlu0 %v1016, 64
    %v1019 = vpop.permute.xlu0 %1018
    %v1021 = vmul.f32 %v1003, %v1019
    %v1022 = vpack.c.bf16 %v1021, %v1021
    %1023 = vmatprep.subr.bf16.mxu0 0
    %1024 = vmatpush1.bf16.msra.mxu0 0
    %1025 = vmatprep.subr.bf16.mxu0 0
    %1026 = vmatpush1.bf16.msra.mxu0 0
    %1027 = vmatprep.subr.bf16.mxu0 0
    %1028 = vmatpush1.bf16.msra.mxu0 0
    %1029 = vmatprep.subr.bf16.mxu0 0
    %1030 = vmatpush1.bf16.msra.mxu0 0
    %1031 = vmatprep.subr.bf16.mxu0 0
    %1032 = vmatpush1.bf16.msra.mxu0 0
    %1033 = vmatprep.subr.bf16.mxu0 0
    %1034 = vmatpush1.bf16.msra.mxu0 0
    %1035 = vmatprep.subr.bf16.mxu0 0
    %1036 = vmatpush1.bf16.msra.mxu0 %v721
    %1037 = vmatprep.subr.bf16.mxu0 0
    %1038 = vmatpush1.bf16.msra.mxu0 %v720
    %1039 = vmatprep.subr.bf16.mxu0 0
    %1040 = vmatpush2.bf16.msra.mxu0 0
    %1041 = vmatprep.subr.bf16.mxu0 0
    %1042 = vmatpush2.bf16.msra.mxu0 0
    %1043 = vmatprep.subr.bf16.mxu0 0
    %1044 = vmatpush2.bf16.msra.mxu0 0
    %1045 = vmatprep.subr.bf16.mxu0 0
    %1046 = vmatpush2.bf16.msra.mxu0 0
    %1047 = vmatprep.subr.bf16.mxu0 0
    %1048 = vmatpush2.bf16.msra.mxu0 0
    %1049 = vmatprep.subr.bf16.mxu0 0
    %1050 = vmatpush2.bf16.msra.mxu0 0
    %1051 = vmatprep.subr.bf16.mxu0 0
    %1052 = vmatpush2.bf16.msra.mxu0 0
    %1053 = vmatprep.subr.bf16.mxu0 0
    %1054 = vmatpush2.bf16.msra.mxu0 0
    %1055 = vmatprep.mubr.bf16.mxu0 0
    %1056 = vmatmul.mubr.bf16.gmra.mxu0 %v413
    %v1057 = vpop.f32.mrf.mxu0
    %v1058 = vadd.f32 %v711, %v1057
    %v1059 = vpop.f32.mrf.mxu0
    %v1060 = vpop.f32.mrf.mxu0
    %v1061 = vpop.f32.mrf.mxu0
    %1062 = vdwg.mxu0
    %1064 = vrot.lane.b32.xlu0 %v1022, 32
    %v1065 = vpop.permute.xlu0 %1064
    %v1067 = vsel %vm191, %v1065, 0
    %1069 = vmatprep.subr.bf16.mxu0 0
    %1070 = vmatpush1.bf16.msra.mxu0 0
    %1071 = vmatprep.subr.bf16.mxu0 0
    %1072 = vmatpush1.bf16.msra.mxu0 0
    %1073 = vmatprep.subr.bf16.mxu0 0
    %1074 = vmatpush1.bf16.msra.mxu0 0
    %1075 = vmatprep.subr.bf16.mxu0 0
    %1076 = vmatpush1.bf16.msra.mxu0 0
    %1077 = vmatprep.subr.bf16.mxu0 0
    %1078 = vmatpush1.bf16.msra.mxu0 0
    %1079 = vmatprep.subr.bf16.mxu0 0
    %1080 = vmatpush1.bf16.msra.mxu0 0
    %1081 = vmatprep.subr.bf16.mxu0 0
    %1082 = vmatpush1.bf16.msra.mxu0 %v835
    %1083 = vmatprep.subr.bf16.mxu0 0
    %1084 = vmatpush1.bf16.msra.mxu0 %v834
    %1085 = vmatprep.subr.bf16.mxu0 0
    %1086 = vmatpush2.bf16.msra.mxu0 0
    %1087 = vmatprep.subr.bf16.mxu0 0
    %1088 = vmatpush2.bf16.msra.mxu0 0
    %1089 = vmatprep.subr.bf16.mxu0 0
    %1090 = vmatpush2.bf16.msra.mxu0 0
    %1091 = vmatprep.subr.bf16.mxu0 0
    %1092 = vmatpush2.bf16.msra.mxu0 0
    %1093 = vmatprep.subr.bf16.mxu0 0
    %1094 = vmatpush2.bf16.msra.mxu0 0
    %1095 = vmatprep.subr.bf16.mxu0 0
    %1096 = vmatpush2.bf16.msra.mxu0 0
    %1097 = vmatprep.subr.bf16.mxu0 0
    %1098 = vmatpush2.bf16.msra.mxu0 0
    %1099 = vmatprep.subr.bf16.mxu0 0
    %1100 = vmatpush2.bf16.msra.mxu0 0
    %1101 = vmatprep.mubr.bf16.mxu0 0
    %1102 = vmatmul.mubr.bf16.gmra.mxu0 %v1067
    %v1103 = vpop.f32.mrf.mxu0
    %v1104 = vadd.f32 0.0, %v1103
    %v1105 = vpop.f32.mrf.mxu0
    %v1106 = vpop.f32.mrf.mxu0
    %v1107 = vpop.f32.mrf.mxu0
    %1108 = vdwg.mxu0
    %v1109 = vadd.f32 %v1058, %v1104
    %v1110 = vxor.u32 %v1109, 2147483648
    %v1111 = vmul.f32 %v1110, 1.442695
    %v1112 = vpow.pop %v1111
    %v1113 = vadd.f32 %v1112, 1.0
    %v1114 = vrcp.pop %v1113
    %v1115 = vmul.f32 1.0, %v1114
    %v1116 = vtanh.pop %v1109
    %v1117 = vmul.f32 %v1115, %v1015
    %1119 = vrot.lane.b32.xlu0 %v1116, 64
    %v1120 = vpop.permute.xlu0 %1119
    %v1122 = vmul.f32 %v1115, %v1120
    %1124 = vrot.lane.b32.xlu0 %v1122, 32
    %v1125 = vpop.permute.xlu0 %1124
    %v1127 = vadd.f32 %v1117, %v1125
    %v1128 = vtanh.pop %v1127
    %1130 = vrot.lane.b32.xlu0 %v1128, 64
    %v1131 = vpop.permute.xlu0 %1130
    %v1133 = vmul.f32 %v1115, %v1131
    %v1134 = vpack.c.bf16 %v1133, %v1133
    %1135 = vmatprep.subr.bf16.mxu0 0
    %1136 = vmatpush1.bf16.msra.mxu0 0
    %1137 = vmatprep.subr.bf16.mxu0 0
    %1138 = vmatpush1.bf16.msra.mxu0 0
    %1139 = vmatprep.subr.bf16.mxu0 0
    %1140 = vmatpush1.bf16.msra.mxu0 0
    %1141 = vmatprep.subr.bf16.mxu0 0
    %1142 = vmatpush1.bf16.msra.mxu0 0
    %1143 = vmatprep.subr.bf16.mxu0 0
    %1144 = vmatpush1.bf16.msra.mxu0 0
    %1145 = vmatprep.subr.bf16.mxu0 0
    %1146 = vmatpush1.bf16.msra.mxu0 0
    %1147 = vmatprep.subr.bf16.mxu0 0
    %1148 = vmatpush1.bf16.msra.mxu0 %v721
    %1149 = vmatprep.subr.bf16.mxu0 0
    %1150 = vmatpush1.bf16.msra.mxu0 %v720
    %1151 = vmatprep.subr.bf16.mxu0 0
    %1152 = vmatpush2.bf16.msra.mxu0 0
    %1153 = vmatprep.subr.bf16.mxu0 0
    %1154 = vmatpush2.bf16.msra.mxu0 0
    %1155 = vmatprep.subr.bf16.mxu0 0
    %1156 = vmatpush2.bf16.msra.mxu0 0
    %1157 = vmatprep.subr.bf16.mxu0 0
    %1158 = vmatpush2.bf16.msra.mxu0 0
    %1159 = vmatprep.subr.bf16.mxu0 0
    %1160 = vmatpush2.bf16.msra.mxu0 0
    %1161 = vmatprep.subr.bf16.mxu0 0
    %1162 = vmatpush2.bf16.msra.mxu0 0
    %1163 = vmatprep.subr.bf16.mxu0 0
    %1164 = vmatpush2.bf16.msra.mxu0 0
    %1165 = vmatprep.subr.bf16.mxu0 0
    %1166 = vmatpush2.bf16.msra.mxu0 0
    %1167 = vmatprep.mubr.bf16.mxu0 0
    %1168 = vmatmul.mubr.bf16.gmra.mxu0 %v485
    %v1169 = vpop.f32.mrf.mxu0
    %v1170 = vadd.f32 %v711, %v1169
    %v1171 = vpop.f32.mrf.mxu0
    %v1172 = vpop.f32.mrf.mxu0
    %v1173 = vpop.f32.mrf.mxu0
    %1174 = vdwg.mxu0
    %1176 = vrot.lane.b32.xlu0 %v1134, 32
    %v1177 = vpop.permute.xlu0 %1176
    %v1179 = vsel %vm191, %v1177, 0
    %1181 = vmatprep.subr.bf16.mxu0 0
    %1182 = vmatpush1.bf16.msra.mxu0 0
    %1183 = vmatprep.subr.bf16.mxu0 0
    %1184 = vmatpush1.bf16.msra.mxu0 0
    %1185 = vmatprep.subr.bf16.mxu0 0
    %1186 = vmatpush1.bf16.msra.mxu0 0
    %1187 = vmatprep.subr.bf16.mxu0 0
    %1188 = vmatpush1.bf16.msra.mxu0 0
    %1189 = vmatprep.subr.bf16.mxu0 0
    %1190 = vmatpush1.bf16.msra.mxu0 0
    %1191 = vmatprep.subr.bf16.mxu0 0
    %1192 = vmatpush1.bf16.msra.mxu0 0
    %1193 = vmatprep.subr.bf16.mxu0 0
    %1194 = vmatpush1.bf16.msra.mxu0 %v835
    %1195 = vmatprep.subr.bf16.mxu0 0
    %1196 = vmatpush1.bf16.msra.mxu0 %v834
    %1197 = vmatprep.subr.bf16.mxu0 0
    %1198 = vmatpush2.bf16.msra.mxu0 0
    %1199 = vmatprep.subr.bf16.mxu0 0
    %1200 = vmatpush2.bf16.msra.mxu0 0
    %1201 = vmatprep.subr.bf16.mxu0 0
    %1202 = vmatpush2.bf16.msra.mxu0 0
    %1203 = vmatprep.subr.bf16.mxu0 0
    %1204 = vmatpush2.bf16.msra.mxu0 0
    %1205 = vmatprep.subr.bf16.mxu0 0
    %1206 = vmatpush2.bf16.msra.mxu0 0
    %1207 = vmatprep.subr.bf16.mxu0 0
    %1208 = vmatpush2.bf16.msra.mxu0 0
    %1209 = vmatprep.subr.bf16.mxu0 0
    %1210 = vmatpush2.bf16.msra.mxu0 0
    %1211 = vmatprep.subr.bf16.mxu0 0
    %1212 = vmatpush2.bf16.msra.mxu0 0
    %1213 = vmatprep.mubr.bf16.mxu0 0
    %1214 = vmatmul.mubr.bf16.gmra.mxu0 %v1179
    %v1215 = vpop.f32.mrf.mxu0
    %v1216 = vadd.f32 0.0, %v1215
    %v1217 = vpop.f32.mrf.mxu0
    %v1218 = vpop.f32.mrf.mxu0
    %v1219 = vpop.f32.mrf.mxu0
    %1220 = vdwg.mxu0
    %v1221 = vadd.f32 %v1170, %v1216
    %v1222 = vxor.u32 %v1221, 2147483648
    %v1223 = vmul.f32 %v1222, 1.442695
    %v1224 = vpow.pop %v1223
    %v1225 = vadd.f32 %v1224, 1.0
    %v1226 = vrcp.pop %v1225
    %v1227 = vmul.f32 1.0, %v1226
    %v1228 = vtanh.pop %v1221
    %v1229 = vmul.f32 %v1227, %v1127
    %1231 = vrot.lane.b32.xlu0 %v1228, 64
    %v1232 = vpop.permute.xlu0 %1231
    %v1234 = vmul.f32 %v1227, %v1232
    %1236 = vrot.lane.b32.xlu0 %v1234, 32
    %v1237 = vpop.permute.xlu0 %1236
    %v1239 = vadd.f32 %v1229, %v1237
    %v1240 = vtanh.pop %v1239
    %1242 = vrot.lane.b32.xlu0 %v1240, 64
    %v1243 = vpop.permute.xlu0 %1242
    %v1245 = vmul.f32 %v1227, %v1243
    %v1246 = vpack.c.bf16 %v1245, %v1245
    %1247 = vmatprep.subr.bf16.mxu0 0
    %1248 = vmatpush1.bf16.msra.mxu0 0
    %1249 = vmatprep.subr.bf16.mxu0 0
    %1250 = vmatpush1.bf16.msra.mxu0 0
    %1251 = vmatprep.subr.bf16.mxu0 0
    %1252 = vmatpush1.bf16.msra.mxu0 0
    %1253 = vmatprep.subr.bf16.mxu0 0
    %1254 = vmatpush1.bf16.msra.mxu0 0
    %1255 = vmatprep.subr.bf16.mxu0 0
    %1256 = vmatpush1.bf16.msra.mxu0 0
    %1257 = vmatprep.subr.bf16.mxu0 0
    %1258 = vmatpush1.bf16.msra.mxu0 0
    %1259 = vmatprep.subr.bf16.mxu0 0
    %1260 = vmatpush1.bf16.msra.mxu0 %v721
    %1261 = vmatprep.subr.bf16.mxu0 0
    %1262 = vmatpush1.bf16.msra.mxu0 %v720
    %1263 = vmatprep.subr.bf16.mxu0 0
    %1264 = vmatpush2.bf16.msra.mxu0 0
    %1265 = vmatprep.subr.bf16.mxu0 0
    %1266 = vmatpush2.bf16.msra.mxu0 0
    %1267 = vmatprep.subr.bf16.mxu0 0
    %1268 = vmatpush2.bf16.msra.mxu0 0
    %1269 = vmatprep.subr.bf16.mxu0 0
    %1270 = vmatpush2.bf16.msra.mxu0 0
    %1271 = vmatprep.subr.bf16.mxu0 0
    %1272 = vmatpush2.bf16.msra.mxu0 0
    %1273 = vmatprep.subr.bf16.mxu0 0
    %1274 = vmatpush2.bf16.msra.mxu0 0
    %1275 = vmatprep.subr.bf16.mxu0 0
    %1276 = vmatpush2.bf16.msra.mxu0 0
    %1277 = vmatprep.subr.bf16.mxu0 0
    %1278 = vmatpush2.bf16.msra.mxu0 0
    %1279 = vmatprep.mubr.bf16.mxu0 0
    %1280 = vmatmul.mubr.bf16.gmra.mxu0 %v557
    %v1281 = vpop.f32.mrf.mxu0
    %v1282 = vadd.f32 %v711, %v1281
    %v1283 = vpop.f32.mrf.mxu0
    %v1284 = vpop.f32.mrf.mxu0
    %v1285 = vpop.f32.mrf.mxu0
    %1286 = vdwg.mxu0
    %1288 = vrot.lane.b32.xlu0 %v1246, 32
    %v1289 = vpop.permute.xlu0 %1288
    %v1291 = vsel %vm191, %v1289, 0
    %1293 = vmatprep.subr.bf16.mxu0 0
    %1294 = vmatpush1.bf16.msra.mxu0 0
    %1295 = vmatprep.subr.bf16.mxu0 0
    %1296 = vmatpush1.bf16.msra.mxu0 0
    %1297 = vmatprep.subr.bf16.mxu0 0
    %1298 = vmatpush1.bf16.msra.mxu0 0
    %1299 = vmatprep.subr.bf16.mxu0 0
    %1300 = vmatpush1.bf16.msra.mxu0 0
    %1301 = vmatprep.subr.bf16.mxu0 0
    %1302 = vmatpush1.bf16.msra.mxu0 0
    %1303 = vmatprep.subr.bf16.mxu0 0
    %1304 = vmatpush1.bf16.msra.mxu0 0
    %1305 = vmatprep.subr.bf16.mxu0 0
    %1306 = vmatpush1.bf16.msra.mxu0 %v835
    %1307 = vmatprep.subr.bf16.mxu0 0
    %1308 = vmatpush1.bf16.msra.mxu0 %v834
    %1309 = vmatprep.subr.bf16.mxu0 0
    %1310 = vmatpush2.bf16.msra.mxu0 0
    %1311 = vmatprep.subr.bf16.mxu0 0
    %1312 = vmatpush2.bf16.msra.mxu0 0
    %1313 = vmatprep.subr.bf16.mxu0 0
    %1314 = vmatpush2.bf16.msra.mxu0 0
    %1315 = vmatprep.subr.bf16.mxu0 0
    %1316 = vmatpush2.bf16.msra.mxu0 0
    %1317 = vmatprep.subr.bf16.mxu0 0
    %1318 = vmatpush2.bf16.msra.mxu0 0
    %1319 = vmatprep.subr.bf16.mxu0 0
    %1320 = vmatpush2.bf16.msra.mxu0 0
    %1321 = vmatprep.subr.bf16.mxu0 0
    %1322 = vmatpush2.bf16.msra.mxu0 0
    %1323 = vmatprep.subr.bf16.mxu0 0
    %1324 = vmatpush2.bf16.msra.mxu0 0
    %1325 = vmatprep.mubr.bf16.mxu0 0
    %1326 = vmatmul.mubr.bf16.gmra.mxu0 %v1291
    %v1327 = vpop.f32.mrf.mxu0
    %v1328 = vadd.f32 0.0, %v1327
    %v1329 = vpop.f32.mrf.mxu0
    %v1330 = vpop.f32.mrf.mxu0
    %v1331 = vpop.f32.mrf.mxu0
    %1332 = vdwg.mxu0
    %v1333 = vadd.f32 %v1282, %v1328
    %v1334 = vxor.u32 %v1333, 2147483648
    %v1335 = vmul.f32 %v1334, 1.442695
    %v1336 = vpow.pop %v1335
    %v1337 = vadd.f32 %v1336, 1.0
    %v1338 = vrcp.pop %v1337
    %v1339 = vmul.f32 1.0, %v1338
    %v1340 = vtanh.pop %v1333
    %v1341 = vmul.f32 %v1339, %v1239
    %1343 = vrot.lane.b32.xlu0 %v1340, 64
    %v1344 = vpop.permute.xlu0 %1343
    %v1346 = vmul.f32 %v1339, %v1344
    %1348 = vrot.lane.b32.xlu0 %v1346, 32
    %v1349 = vpop.permute.xlu0 %1348
    %v1351 = vadd.f32 %v1341, %v1349
    %v1352 = vtanh.pop %v1351
    %1354 = vrot.lane.b32.xlu0 %v1352, 64
    %v1355 = vpop.permute.xlu0 %1354
    %v1357 = vmul.f32 %v1339, %v1355
    %v1358 = vpack.c.bf16 %v1357, %v1357
    %1359 = vmatprep.subr.bf16.mxu0 0
    %1360 = vmatpush1.bf16.msra.mxu0 0
    %1361 = vmatprep.subr.bf16.mxu0 0
    %1362 = vmatpush1.bf16.msra.mxu0 0
    %1363 = vmatprep.subr.bf16.mxu0 0
    %1364 = vmatpush1.bf16.msra.mxu0 0
    %1365 = vmatprep.subr.bf16.mxu0 0
    %1366 = vmatpush1.bf16.msra.mxu0 0
    %1367 = vmatprep.subr.bf16.mxu0 0
    %1368 = vmatpush1.bf16.msra.mxu0 0
    %1369 = vmatprep.subr.bf16.mxu0 0
    %1370 = vmatpush1.bf16.msra.mxu0 0
    %1371 = vmatprep.subr.bf16.mxu0 0
    %1372 = vmatpush1.bf16.msra.mxu0 %v721
    %1373 = vmatprep.subr.bf16.mxu0 0
    %1374 = vmatpush1.bf16.msra.mxu0 %v720
    %1375 = vmatprep.subr.bf16.mxu0 0
    %1376 = vmatpush2.bf16.msra.mxu0 0
    %1377 = vmatprep.subr.bf16.mxu0 0
    %1378 = vmatpush2.bf16.msra.mxu0 0
    %1379 = vmatprep.subr.bf16.mxu0 0
    %1380 = vmatpush2.bf16.msra.mxu0 0
    %1381 = vmatprep.subr.bf16.mxu0 0
    %1382 = vmatpush2.bf16.msra.mxu0 0
    %1383 = vmatprep.subr.bf16.mxu0 0
    %1384 = vmatpush2.bf16.msra.mxu0 0
    %1385 = vmatprep.subr.bf16.mxu0 0
    %1386 = vmatpush2.bf16.msra.mxu0 0
    %1387 = vmatprep.subr.bf16.mxu0 0
    %1388 = vmatpush2.bf16.msra.mxu0 0
    %1389 = vmatprep.subr.bf16.mxu0 0
    %1390 = vmatpush2.bf16.msra.mxu0 0
    %1391 = vmatprep.mubr.bf16.mxu0 0
    %1392 = vmatmul.mubr.bf16.gmra.mxu0 %v629
    %v1393 = vpop.f32.mrf.mxu0
    %v1394 = vadd.f32 %v711, %v1393
    %v1395 = vpop.f32.mrf.mxu0
    %v1396 = vpop.f32.mrf.mxu0
    %v1397 = vpop.f32.mrf.mxu0
    %1398 = vdwg.mxu0
    %1400 = vrot.lane.b32.xlu0 %v1358, 32
    %v1401 = vpop.permute.xlu0 %1400
    %v1403 = vsel %vm191, %v1401, 0
    %1405 = vmatprep.subr.bf16.mxu0 0
    %1406 = vmatpush1.bf16.msra.mxu0 0
    %1407 = vmatprep.subr.bf16.mxu0 0
    %1408 = vmatpush1.bf16.msra.mxu0 0
    %1409 = vmatprep.subr.bf16.mxu0 0
    %1410 = vmatpush1.bf16.msra.mxu0 0
    %1411 = vmatprep.subr.bf16.mxu0 0
    %1412 = vmatpush1.bf16.msra.mxu0 0
    %1413 = vmatprep.subr.bf16.mxu0 0
    %1414 = vmatpush1.bf16.msra.mxu0 0
    %1415 = vmatprep.subr.bf16.mxu0 0
    %1416 = vmatpush1.bf16.msra.mxu0 0
    %1417 = vmatprep.subr.bf16.mxu0 0
    %1418 = vmatpush1.bf16.msra.mxu0 %v835
    %1419 = vmatprep.subr.bf16.mxu0 0
    %1420 = vmatpush1.bf16.msra.mxu0 %v834
    %1421 = vmatprep.subr.bf16.mxu0 0
    %1422 = vmatpush2.bf16.msra.mxu0 0
    %1423 = vmatprep.subr.bf16.mxu0 0
    %1424 = vmatpush2.bf16.msra.mxu0 0
    %1425 = vmatprep.subr.bf16.mxu0 0
    %1426 = vmatpush2.bf16.msra.mxu0 0
    %1427 = vmatprep.subr.bf16.mxu0 0
    %1428 = vmatpush2.bf16.msra.mxu0 0
    %1429 = vmatprep.subr.bf16.mxu0 0
    %1430 = vmatpush2.bf16.msra.mxu0 0
    %1431 = vmatprep.subr.bf16.mxu0 0
    %1432 = vmatpush2.bf16.msra.mxu0 0
    %1433 = vmatprep.subr.bf16.mxu0 0
    %1434 = vmatpush2.bf16.msra.mxu0 0
    %1435 = vmatprep.subr.bf16.mxu0 0
    %1436 = vmatpush2.bf16.msra.mxu0 0
    %1437 = vmatprep.mubr.bf16.mxu0 0
    %1438 = vmatmul.mubr.bf16.gmra.mxu0 %v1403
    %v1439 = vpop.f32.mrf.mxu0
    %v1440 = vadd.f32 0.0, %v1439
    %v1441 = vpop.f32.mrf.mxu0
    %v1442 = vpop.f32.mrf.mxu0
    %v1443 = vpop.f32.mrf.mxu0
    %1444 = vdwg.mxu0
    %v1445 = vadd.f32 %v1394, %v1440
    %v1446 = vxor.u32 %v1445, 2147483648
    %v1447 = vmul.f32 %v1446, 1.442695
    %v1448 = vpow.pop %v1447
    %v1449 = vadd.f32 %v1448, 1.0
    %v1450 = vrcp.pop %v1449
    %v1451 = vmul.f32 1.0, %v1450
    %v1452 = vtanh.pop %v1445
    %v1453 = vmul.f32 %v1451, %v1351
    %1455 = vrot.lane.b32.xlu0 %v1452, 64
    %v1456 = vpop.permute.xlu0 %1455
    %v1458 = vmul.f32 %v1451, %v1456
    %1460 = vrot.lane.b32.xlu0 %v1458, 32
    %v1461 = vpop.permute.xlu0 %1460
    %v1463 = vadd.f32 %v1453, %v1461
    %v1464 = vtanh.pop %v1463
    %1466 = vrot.lane.b32.xlu0 %v1464, 64
    %v1467 = vpop.permute.xlu0 %1466
    %v1469 = vmul.f32 %v1451, %v1467
    %v1470 = vpack.c.bf16 %v1469, %v1469
    %1472 = vrot.lane.b32.xlu0 %v696, 32
    %v1473 = vpop.permute.xlu0 %1472
    %v1475 = vsel %vm191, %v1473, 0
    %1477 = vmatprep.subr.bf16.mxu0 0
    %1478 = vmatpush1.bf16.msra.mxu0 0
    %1479 = vmatprep.subr.bf16.mxu0 0
    %1480 = vmatpush1.bf16.msra.mxu0 0
    %1481 = vmatprep.subr.bf16.mxu0 0
    %1482 = vmatpush1.bf16.msra.mxu0 0
    %1483 = vmatprep.subr.bf16.mxu0 0
    %1484 = vmatpush1.bf16.msra.mxu0 0
    %1485 = vmatprep.subr.bf16.mxu0 0
    %1486 = vmatpush1.bf16.msra.mxu0 0
    %1487 = vmatprep.subr.bf16.mxu0 0
    %1488 = vmatpush1.bf16.msra.mxu0 0
    %1489 = vmatprep.subr.bf16.mxu0 0
    %1490 = vmatpush1.bf16.msra.mxu0 %v721
    %1491 = vmatprep.subr.bf16.mxu0 0
    %1492 = vmatpush1.bf16.msra.mxu0 %v720
    %1493 = vmatprep.subr.bf16.mxu0 0
    %1494 = vmatpush2.bf16.msra.mxu0 0
    %1495 = vmatprep.subr.bf16.mxu0 0
    %1496 = vmatpush2.bf16.msra.mxu0 0
    %1497 = vmatprep.subr.bf16.mxu0 0
    %1498 = vmatpush2.bf16.msra.mxu0 0
    %1499 = vmatprep.subr.bf16.mxu0 0
    %1500 = vmatpush2.bf16.msra.mxu0 0
    %1501 = vmatprep.subr.bf16.mxu0 0
    %1502 = vmatpush2.bf16.msra.mxu0 0
    %1503 = vmatprep.subr.bf16.mxu0 0
    %1504 = vmatpush2.bf16.msra.mxu0 0
    %1505 = vmatprep.subr.bf16.mxu0 0
    %1506 = vmatpush2.bf16.msra.mxu0 0
    %1507 = vmatprep.subr.bf16.mxu0 0
    %1508 = vmatpush2.bf16.msra.mxu0 0
    %1509 = vmatprep.mubr.bf16.mxu0 0
    %1510 = vmatmul.mubr.bf16.gmra.mxu0 %v1475
    %v1511 = vpop.f32.mrf.mxu0
    %v1512 = vadd.f32 %v711, %v1511
    %v1513 = vpop.f32.mrf.mxu0
    %v1514 = vpop.f32.mrf.mxu0
    %v1515 = vpop.f32.mrf.mxu0
    %1516 = vdwg.mxu0
    %1518 = vrot.lane.b32.xlu0 %v1470, 32
    %v1519 = vpop.permute.xlu0 %1518
    %v1521 = vsel %vm191, %v1519, 0
    %1523 = vmatprep.subr.bf16.mxu0 0
    %1524 = vmatpush1.bf16.msra.mxu0 0
    %1525 = vmatprep.subr.bf16.mxu0 0
    %1526 = vmatpush1.bf16.msra.mxu0 0
    %1527 = vmatprep.subr.bf16.mxu0 0
    %1528 = vmatpush1.bf16.msra.mxu0 0
    %1529 = vmatprep.subr.bf16.mxu0 0
    %1530 = vmatpush1.bf16.msra.mxu0 0
    %1531 = vmatprep.subr.bf16.mxu0 0
    %1532 = vmatpush1.bf16.msra.mxu0 0
    %1533 = vmatprep.subr.bf16.mxu0 0
    %1534 = vmatpush1.bf16.msra.mxu0 0
    %1535 = vmatprep.subr.bf16.mxu0 0
    %1536 = vmatpush1.bf16.msra.mxu0 %v835
    %1537 = vmatprep.subr.bf16.mxu0 0
    %1538 = vmatpush1.bf16.msra.mxu0 %v834
    %1539 = vmatprep.subr.bf16.mxu0 0
    %1540 = vmatpush2.bf16.msra.mxu0 0
    %1541 = vmatprep.subr.bf16.mxu0 0
    %1542 = vmatpush2.bf16.msra.mxu0 0
    %1543 = vmatprep.subr.bf16.mxu0 0
    %1544 = vmatpush2.bf16.msra.mxu0 0
    %1545 = vmatprep.subr.bf16.mxu0 0
    %1546 = vmatpush2.bf16.msra.mxu0 0
    %1547 = vmatprep.subr.bf16.mxu0 0
    %1548 = vmatpush2.bf16.msra.mxu0 0
    %1549 = vmatprep.subr.bf16.mxu0 0
    %1550 = vmatpush2.bf16.msra.mxu0 0
    %1551 = vmatprep.subr.bf16.mxu0 0
    %1552 = vmatpush2.bf16.msra.mxu0 0
    %1553 = vmatprep.subr.bf16.mxu0 0
    %1554 = vmatpush2.bf16.msra.mxu0 0
    %1555 = vmatprep.mubr.bf16.mxu0 0
    %1556 = vmatmul.mubr.bf16.gmra.mxu0 %v1521
    %v1557 = vpop.f32.mrf.mxu0
    %v1558 = vadd.f32 0.0, %v1557
    %v1559 = vpop.f32.mrf.mxu0
    %v1560 = vpop.f32.mrf.mxu0
    %v1561 = vpop.f32.mrf.mxu0
    %1562 = vdwg.mxu0
    %v1563 = vadd.f32 %v1512, %v1558
    %v1564 = vxor.u32 %v1563, 2147483648
    %v1565 = vmul.f32 %v1564, 1.442695
    %v1566 = vpow.pop %v1565
    %v1567 = vadd.f32 %v1566, 1.0
    %v1568 = vrcp.pop %v1567
    %v1569 = vmul.f32 1.0, %v1568
    %v1570 = vtanh.pop %v1563
    %v1571 = vmul.f32 %v1569, %v1463
    %1573 = vrot.lane.b32.xlu0 %v1570, 64
    %v1574 = vpop.permute.xlu0 %1573
    %v1576 = vmul.f32 %v1569, %v1574
    %1578 = vrot.lane.b32.xlu0 %v1576, 32
    %v1579 = vpop.permute.xlu0 %1578
    %v1581 = vadd.f32 %v1571, %v1579
    %v1582 = vtanh.pop %v1581
    %1584 = vrot.lane.b32.xlu0 %v1582, 64
    %v1585 = vpop.permute.xlu0 %1584
    %v1587 = vmul.f32 %v1569, %v1585
    %v1588 = vpack.c.bf16 %v1587, %v1587
    %s1589 = scalar_lea.vmem [#allocation5], 32
    %v1590 = vld [vmem:[%s1589] sm:$0xf]
    %v1591 = vld [vmem:[%s1589 + $0x4] sm:$0xf]
    %v1592 = vld [vmem:[%s1589 + $0x8] sm:$0xf]
    %v1593 = vld [vmem:[%s1589 + $0xc] sm:$0xf]
    %s1594 = scalar_lea.vmem [#allocation2], 32
    %v1595 = vld [vmem:[%s1594] sm:$0xf]
    %v1596 = vld [vmem:[%s1594 + $0x4] sm:$0xf]
    %v1597 = vld [vmem:[%s1594 + $0x8] sm:$0xf]
    %v1598 = vld [vmem:[%s1594 + $0xc] sm:$0xf]
    %v1599 = vld [vmem:[%s3 + $0x2] sm:$0x1]
    %v1600 = vlaneseq
    %v1601 = vshrl.u32 %v1600, 7
    %v1602 = vsub.s32 0, %v1601
    %v1603 = vrot.slane %v1599, %v1602
    %v1608 = vunpack.c.l.b16 %v1595
    %v1609 = vunpack.c.l.b16 %v1596
    %v1610 = vunpack.c.l.b16 %v1597
    %v1611 = vunpack.c.l.b16 %v1598
    %v1612 = vpack.c.b16 %v1609, %v1608
    %v1613 = vpack.c.b16 %v1611, %v1610
    %1616 = vmatprep.subr.bf16.mxu0 0
    %1617 = vmatpush1.bf16.msra.mxu0 0
    %1618 = vmatprep.subr.bf16.mxu0 0
    %1619 = vmatpush1.bf16.msra.mxu0 0
    %1620 = vmatprep.subr.bf16.mxu0 0
    %1621 = vmatpush1.bf16.msra.mxu0 0
    %1622 = vmatprep.subr.bf16.mxu0 0
    %1623 = vmatpush1.bf16.msra.mxu0 0
    %1624 = vmatprep.subr.bf16.mxu0 0
    %1625 = vmatpush1.bf16.msra.mxu0 0
    %1626 = vmatprep.subr.bf16.mxu0 0
    %1627 = vmatpush1.bf16.msra.mxu0 0
    %1628 = vmatprep.subr.bf16.mxu0 0
    %1629 = vmatpush1.bf16.msra.mxu0 %v1613
    %1630 = vmatprep.subr.bf16.mxu0 0
    %1631 = vmatpush1.bf16.msra.mxu0 %v1612
    %1632 = vmatprep.subr.bf16.mxu0 0
    %1633 = vmatpush2.bf16.msra.mxu0 0
    %1634 = vmatprep.subr.bf16.mxu0 0
    %1635 = vmatpush2.bf16.msra.mxu0 0
    %1636 = vmatprep.subr.bf16.mxu0 0
    %1637 = vmatpush2.bf16.msra.mxu0 0
    %1638 = vmatprep.subr.bf16.mxu0 0
    %1639 = vmatpush2.bf16.msra.mxu0 0
    %1640 = vmatprep.subr.bf16.mxu0 0
    %1641 = vmatpush2.bf16.msra.mxu0 0
    %1642 = vmatprep.subr.bf16.mxu0 0
    %1643 = vmatpush2.bf16.msra.mxu0 0
    %1644 = vmatprep.subr.bf16.mxu0 0
    %1645 = vmatpush2.bf16.msra.mxu0 0
    %1646 = vmatprep.subr.bf16.mxu0 0
    %1647 = vmatpush2.bf16.msra.mxu0 0
    %1648 = vmatprep.mubr.bf16.mxu0 0
    %1649 = vmatmul.mubr.bf16.gmra.mxu0 %v839
    %v1650 = vpop.f32.mrf.mxu0
    %v1651 = vadd.f32 %v1603, %v1650
    %v1652 = vpop.f32.mrf.mxu0
    %v1653 = vpop.f32.mrf.mxu0
    %v1654 = vpop.f32.mrf.mxu0
    %1655 = vdwg.mxu0
    %v1656 = vxor.u32 %v1651, 2147483648
    %v1657 = vmul.f32 %v1656, 1.442695
    %v1658 = vpow.pop %v1657
    %v1659 = vadd.f32 %v1658, 1.0
    %v1660 = vrcp.pop %v1659
    %v1661 = vmul.f32 1.0, %v1660
    %v1662 = vtanh.pop %v1651
    %1664 = vrot.lane.b32.xlu0 %v1662, 64
    %v1665 = vpop.permute.xlu0 %1664
    %v1667 = vmul.f32 %v1661, %v1665
    %v1668 = vtanh.pop %v1667
    %1670 = vrot.lane.b32.xlu0 %v1668, 96
    %v1671 = vpop.permute.xlu0 %1670
    %v1673 = vmul.f32 %v1661, %v1671
    %1674 = vmatprep.subr.bf16.mxu0 0
    %1675 = vmatpush1.bf16.msra.mxu0 0
    %1676 = vmatprep.subr.bf16.mxu0 0
    %1677 = vmatpush1.bf16.msra.mxu0 0
    %1678 = vmatprep.subr.bf16.mxu0 0
    %1679 = vmatpush1.bf16.msra.mxu0 0
    %1680 = vmatprep.subr.bf16.mxu0 0
    %1681 = vmatpush1.bf16.msra.mxu0 0
    %1682 = vmatprep.subr.bf16.mxu0 0
    %1683 = vmatpush1.bf16.msra.mxu0 0
    %1684 = vmatprep.subr.bf16.mxu0 0
    %1685 = vmatpush1.bf16.msra.mxu0 0
    %1686 = vmatprep.subr.bf16.mxu0 0
    %1687 = vmatpush1.bf16.msra.mxu0 %v1613
    %1688 = vmatprep.subr.bf16.mxu0 0
    %1689 = vmatpush1.bf16.msra.mxu0 %v1612
    %1690 = vmatprep.subr.bf16.mxu0 0
    %1691 = vmatpush2.bf16.msra.mxu0 0
    %1692 = vmatprep.subr.bf16.mxu0 0
    %1693 = vmatpush2.bf16.msra.mxu0 0
    %1694 = vmatprep.subr.bf16.mxu0 0
    %1695 = vmatpush2.bf16.msra.mxu0 0
    %1696 = vmatprep.subr.bf16.mxu0 0
    %1697 = vmatpush2.bf16.msra.mxu0 0
    %1698 = vmatprep.subr.bf16.mxu0 0
    %1699 = vmatpush2.bf16.msra.mxu0 0
    %1700 = vmatprep.subr.bf16.mxu0 0
    %1701 = vmatpush2.bf16.msra.mxu0 0
    %1702 = vmatprep.subr.bf16.mxu0 0
    %1703 = vmatpush2.bf16.msra.mxu0 0
    %1704 = vmatprep.subr.bf16.mxu0 0
    %1705 = vmatpush2.bf16.msra.mxu0 0
    %1706 = vmatprep.mubr.bf16.mxu0 0
    %1707 = vmatmul.mubr.bf16.gmra.mxu0 %v955
    %v1708 = vpop.f32.mrf.mxu0
    %v1709 = vadd.f32 %v1603, %v1708
    %v1710 = vpop.f32.mrf.mxu0
    %v1711 = vpop.f32.mrf.mxu0
    %v1712 = vpop.f32.mrf.mxu0
    %1713 = vdwg.mxu0
    %v1714 = vpack.c.bf16 %v1673, %v1673
    %1716 = vrot.lane.b32.xlu0 %v1714, 32
    %v1717 = vpop.permute.xlu0 %1716
    %v1722 = vunpack.c.l.b16 %v1590
    %v1723 = vunpack.c.l.b16 %v1591
    %v1724 = vunpack.c.l.b16 %v1592
    %v1725 = vunpack.c.l.b16 %v1593
    %v1726 = vpack.c.b16 %v1723, %v1722
    %v1727 = vpack.c.b16 %v1725, %v1724
    %v1731 = vsel %vm191, %v1717, 0
    %1733 = vmatprep.subr.bf16.mxu0 0
    %1734 = vmatpush1.bf16.msra.mxu0 0
    %1735 = vmatprep.subr.bf16.mxu0 0
    %1736 = vmatpush1.bf16.msra.mxu0 0
    %1737 = vmatprep.subr.bf16.mxu0 0
    %1738 = vmatpush1.bf16.msra.mxu0 0
    %1739 = vmatprep.subr.bf16.mxu0 0
    %1740 = vmatpush1.bf16.msra.mxu0 0
    %1741 = vmatprep.subr.bf16.mxu0 0
    %1742 = vmatpush1.bf16.msra.mxu0 0
    %1743 = vmatprep.subr.bf16.mxu0 0
    %1744 = vmatpush1.bf16.msra.mxu0 0
    %1745 = vmatprep.subr.bf16.mxu0 0
    %1746 = vmatpush1.bf16.msra.mxu0 %v1727
    %1747 = vmatprep.subr.bf16.mxu0 0
    %1748 = vmatpush1.bf16.msra.mxu0 %v1726
    %1749 = vmatprep.subr.bf16.mxu0 0
    %1750 = vmatpush2.bf16.msra.mxu0 0
    %1751 = vmatprep.subr.bf16.mxu0 0
    %1752 = vmatpush2.bf16.msra.mxu0 0
    %1753 = vmatprep.subr.bf16.mxu0 0
    %1754 = vmatpush2.bf16.msra.mxu0 0
    %1755 = vmatprep.subr.bf16.mxu0 0
    %1756 = vmatpush2.bf16.msra.mxu0 0
    %1757 = vmatprep.subr.bf16.mxu0 0
    %1758 = vmatpush2.bf16.msra.mxu0 0
    %1759 = vmatprep.subr.bf16.mxu0 0
    %1760 = vmatpush2.bf16.msra.mxu0 0
    %1761 = vmatprep.subr.bf16.mxu0 0
    %1762 = vmatpush2.bf16.msra.mxu0 0
    %1763 = vmatprep.subr.bf16.mxu0 0
    %1764 = vmatpush2.bf16.msra.mxu0 0
    %1765 = vmatprep.mubr.bf16.mxu0 0
    %1766 = vmatmul.mubr.bf16.gmra.mxu0 %v1731
    %v1767 = vpop.f32.mrf.mxu0
    %v1768 = vadd.f32 0.0, %v1767
    %v1769 = vpop.f32.mrf.mxu0
    %v1770 = vpop.f32.mrf.mxu0
    %v1771 = vpop.f32.mrf.mxu0
    %1772 = vdwg.mxu0
    %v1773 = vadd.f32 %v1709, %v1768
    %v1774 = vxor.u32 %v1773, 2147483648
    %v1775 = vmul.f32 %v1774, 1.442695
    %v1776 = vpow.pop %v1775
    %v1777 = vadd.f32 %v1776, 1.0
    %v1778 = vrcp.pop %v1777
    %v1779 = vmul.f32 1.0, %v1778
    %v1780 = vtanh.pop %v1773
    %1782 = vrot.lane.b32.xlu0 %v1667, 32
    %v1783 = vpop.permute.xlu0 %1782
    %v1785 = vmul.f32 %v1779, %v1783
    %1787 = vrot.lane.b32.xlu0 %v1780, 64
    %v1788 = vpop.permute.xlu0 %1787
    %v1790 = vmul.f32 %v1779, %v1788
    %1792 = vrot.lane.b32.xlu0 %v1790, 32
    %v1793 = vpop.permute.xlu0 %1792
    %v1795 = vadd.f32 %v1785, %v1793
    %v1796 = vtanh.pop %v1795
    %1798 = vrot.lane.b32.xlu0 %v1796, 64
    %v1799 = vpop.permute.xlu0 %1798
    %v1801 = vmul.f32 %v1779, %v1799
    %1802 = vmatprep.subr.bf16.mxu0 0
    %1803 = vmatpush1.bf16.msra.mxu0 0
    %1804 = vmatprep.subr.bf16.mxu0 0
    %1805 = vmatpush1.bf16.msra.mxu0 0
    %1806 = vmatprep.subr.bf16.mxu0 0
    %1807 = vmatpush1.bf16.msra.mxu0 0
    %1808 = vmatprep.subr.bf16.mxu0 0
    %1809 = vmatpush1.bf16.msra.mxu0 0
    %1810 = vmatprep.subr.bf16.mxu0 0
    %1811 = vmatpush1.bf16.msra.mxu0 0
    %1812 = vmatprep.subr.bf16.mxu0 0
    %1813 = vmatpush1.bf16.msra.mxu0 0
    %1814 = vmatprep.subr.bf16.mxu0 0
    %1815 = vmatpush1.bf16.msra.mxu0 %v1613
    %1816 = vmatprep.subr.bf16.mxu0 0
    %1817 = vmatpush1.bf16.msra.mxu0 %v1612
    %1818 = vmatprep.subr.bf16.mxu0 0
    %1819 = vmatpush2.bf16.msra.mxu0 0
    %1820 = vmatprep.subr.bf16.mxu0 0
    %1821 = vmatpush2.bf16.msra.mxu0 0
    %1822 = vmatprep.subr.bf16.mxu0 0
    %1823 = vmatpush2.bf16.msra.mxu0 0
    %1824 = vmatprep.subr.bf16.mxu0 0
    %1825 = vmatpush2.bf16.msra.mxu0 0
    %1826 = vmatprep.subr.bf16.mxu0 0
    %1827 = vmatpush2.bf16.msra.mxu0 0
    %1828 = vmatprep.subr.bf16.mxu0 0
    %1829 = vmatpush2.bf16.msra.mxu0 0
    %1830 = vmatprep.subr.bf16.mxu0 0
    %1831 = vmatpush2.bf16.msra.mxu0 0
    %1832 = vmatprep.subr.bf16.mxu0 0
    %1833 = vmatpush2.bf16.msra.mxu0 0
    %1834 = vmatprep.mubr.bf16.mxu0 0
    %1835 = vmatmul.mubr.bf16.gmra.mxu0 %v1067
    %v1836 = vpop.f32.mrf.mxu0
    %v1837 = vadd.f32 %v1603, %v1836
    %v1838 = vpop.f32.mrf.mxu0
    %v1839 = vpop.f32.mrf.mxu0
    %v1840 = vpop.f32.mrf.mxu0
    %1841 = vdwg.mxu0
    %v1842 = vpack.c.bf16 %v1801, %v1801
    %1844 = vrot.lane.b32.xlu0 %v1842, 32
    %v1845 = vpop.permute.xlu0 %1844
    %v1847 = vsel %vm191, %v1845, 0
    %1849 = vmatprep.subr.bf16.mxu0 0
    %1850 = vmatpush1.bf16.msra.mxu0 0
    %1851 = vmatprep.subr.bf16.mxu0 0
    %1852 = vmatpush1.bf16.msra.mxu0 0
    %1853 = vmatprep.subr.bf16.mxu0 0
    %1854 = vmatpush1.bf16.msra.mxu0 0
    %1855 = vmatprep.subr.bf16.mxu0 0
    %1856 = vmatpush1.bf16.msra.mxu0 0
    %1857 = vmatprep.subr.bf16.mxu0 0
    %1858 = vmatpush1.bf16.msra.mxu0 0
    %1859 = vmatprep.subr.bf16.mxu0 0
    %1860 = vmatpush1.bf16.msra.mxu0 0
    %1861 = vmatprep.subr.bf16.mxu0 0
    %1862 = vmatpush1.bf16.msra.mxu0 %v1727
    %1863 = vmatprep.subr.bf16.mxu0 0
    %1864 = vmatpush1.bf16.msra.mxu0 %v1726
    %1865 = vmatprep.subr.bf16.mxu0 0
    %1866 = vmatpush2.bf16.msra.mxu0 0
    %1867 = vmatprep.subr.bf16.mxu0 0
    %1868 = vmatpush2.bf16.msra.mxu0 0
    %1869 = vmatprep.subr.bf16.mxu0 0
    %1870 = vmatpush2.bf16.msra.mxu0 0
    %1871 = vmatprep.subr.bf16.mxu0 0
    %1872 = vmatpush2.bf16.msra.mxu0 0
    %1873 = vmatprep.subr.bf16.mxu0 0
    %1874 = vmatpush2.bf16.msra.mxu0 0
    %1875 = vmatprep.subr.bf16.mxu0 0
    %1876 = vmatpush2.bf16.msra.mxu0 0
    %1877 = vmatprep.subr.bf16.mxu0 0
    %1878 = vmatpush2.bf16.msra.mxu0 0
    %1879 = vmatprep.subr.bf16.mxu0 0
    %1880 = vmatpush2.bf16.msra.mxu0 0
    %1881 = vmatprep.mubr.bf16.mxu0 0
    %1882 = vmatmul.mubr.bf16.gmra.mxu0 %v1847
    %v1883 = vpop.f32.mrf.mxu0
    %v1884 = vadd.f32 0.0, %v1883
    %v1885 = vpop.f32.mrf.mxu0
    %v1886 = vpop.f32.mrf.mxu0
    %v1887 = vpop.f32.mrf.mxu0
    %1888 = vdwg.mxu0
    %v1889 = vadd.f32 %v1837, %v1884
    %v1890 = vxor.u32 %v1889, 2147483648
    %v1891 = vmul.f32 %v1890, 1.442695
    %v1892 = vpow.pop %v1891
    %v1893 = vadd.f32 %v1892, 1.0
    %v1894 = vrcp.pop %v1893
    %v1895 = vmul.f32 1.0, %v1894
    %v1896 = vtanh.pop %v1889
    %v1897 = vmul.f32 %v1895, %v1795
    %1899 = vrot.lane.b32.xlu0 %v1896, 64
    %v1900 = vpop.permute.xlu0 %1899
    %v1902 = vmul.f32 %v1895, %v1900
    %1904 = vrot.lane.b32.xlu0 %v1902, 32
    %v1905 = vpop.permute.xlu0 %1904
    %v1907 = vadd.f32 %v1897, %v1905
    %v1908 = vtanh.pop %v1907
    %1910 = vrot.lane.b32.xlu0 %v1908, 64
    %v1911 = vpop.permute.xlu0 %1910
    %v1913 = vmul.f32 %v1895, %v1911
    %1914 = vmatprep.subr.bf16.mxu0 0
    %1915 = vmatpush1.bf16.msra.mxu0 0
    %1916 = vmatprep.subr.bf16.mxu0 0
    %1917 = vmatpush1.bf16.msra.mxu0 0
    %1918 = vmatprep.subr.bf16.mxu0 0
    %1919 = vmatpush1.bf16.msra.mxu0 0
    %1920 = vmatprep.subr.bf16.mxu0 0
    %1921 = vmatpush1.bf16.msra.mxu0 0
    %1922 = vmatprep.subr.bf16.mxu0 0
    %1923 = vmatpush1.bf16.msra.mxu0 0
    %1924 = vmatprep.subr.bf16.mxu0 0
    %1925 = vmatpush1.bf16.msra.mxu0 0
    %1926 = vmatprep.subr.bf16.mxu0 0
    %1927 = vmatpush1.bf16.msra.mxu0 %v1613
    %1928 = vmatprep.subr.bf16.mxu0 0
    %1929 = vmatpush1.bf16.msra.mxu0 %v1612
    %1930 = vmatprep.subr.bf16.mxu0 0
    %1931 = vmatpush2.bf16.msra.mxu0 0
    %1932 = vmatprep.subr.bf16.mxu0 0
    %1933 = vmatpush2.bf16.msra.mxu0 0
    %1934 = vmatprep.subr.bf16.mxu0 0
    %1935 = vmatpush2.bf16.msra.mxu0 0
    %1936 = vmatprep.subr.bf16.mxu0 0
    %1937 = vmatpush2.bf16.msra.mxu0 0
    %1938 = vmatprep.subr.bf16.mxu0 0
    %1939 = vmatpush2.bf16.msra.mxu0 0
    %1940 = vmatprep.subr.bf16.mxu0 0
    %1941 = vmatpush2.bf16.msra.mxu0 0
    %1942 = vmatprep.subr.bf16.mxu0 0
    %1943 = vmatpush2.bf16.msra.mxu0 0
    %1944 = vmatprep.subr.bf16.mxu0 0
    %1945 = vmatpush2.bf16.msra.mxu0 0
    %1946 = vmatprep.mubr.bf16.mxu0 0
    %1947 = vmatmul.mubr.bf16.gmra.mxu0 %v1179
    %v1948 = vpop.f32.mrf.mxu0
    %v1949 = vadd.f32 %v1603, %v1948
    %v1950 = vpop.f32.mrf.mxu0
    %v1951 = vpop.f32.mrf.mxu0
    %v1952 = vpop.f32.mrf.mxu0
    %1953 = vdwg.mxu0
    %v1954 = vpack.c.bf16 %v1913, %v1913
    %1956 = vrot.lane.b32.xlu0 %v1954, 32
    %v1957 = vpop.permute.xlu0 %1956
    %v1959 = vsel %vm191, %v1957, 0
    %1961 = vmatprep.subr.bf16.mxu0 0
    %1962 = vmatpush1.bf16.msra.mxu0 0
    %1963 = vmatprep.subr.bf16.mxu0 0
    %1964 = vmatpush1.bf16.msra.mxu0 0
    %1965 = vmatprep.subr.bf16.mxu0 0
    %1966 = vmatpush1.bf16.msra.mxu0 0
    %1967 = vmatprep.subr.bf16.mxu0 0
    %1968 = vmatpush1.bf16.msra.mxu0 0
    %1969 = vmatprep.subr.bf16.mxu0 0
    %1970 = vmatpush1.bf16.msra.mxu0 0
    %1971 = vmatprep.subr.bf16.mxu0 0
    %1972 = vmatpush1.bf16.msra.mxu0 0
    %1973 = vmatprep.subr.bf16.mxu0 0
    %1974 = vmatpush1.bf16.msra.mxu0 %v1727
    %1975 = vmatprep.subr.bf16.mxu0 0
    %1976 = vmatpush1.bf16.msra.mxu0 %v1726
    %1977 = vmatprep.subr.bf16.mxu0 0
    %1978 = vmatpush2.bf16.msra.mxu0 0
    %1979 = vmatprep.subr.bf16.mxu0 0
    %1980 = vmatpush2.bf16.msra.mxu0 0
    %1981 = vmatprep.subr.bf16.mxu0 0
    %1982 = vmatpush2.bf16.msra.mxu0 0
    %1983 = vmatprep.subr.bf16.mxu0 0
    %1984 = vmatpush2.bf16.msra.mxu0 0
    %1985 = vmatprep.subr.bf16.mxu0 0
    %1986 = vmatpush2.bf16.msra.mxu0 0
    %1987 = vmatprep.subr.bf16.mxu0 0
    %1988 = vmatpush2.bf16.msra.mxu0 0
    %1989 = vmatprep.subr.bf16.mxu0 0
    %1990 = vmatpush2.bf16.msra.mxu0 0
    %1991 = vmatprep.subr.bf16.mxu0 0
    %1992 = vmatpush2.bf16.msra.mxu0 0
    %1993 = vmatprep.mubr.bf16.mxu0 0
    %1994 = vmatmul.mubr.bf16.gmra.mxu0 %v1959
    %v1995 = vpop.f32.mrf.mxu0
    %v1996 = vadd.f32 0.0, %v1995
    %v1997 = vpop.f32.mrf.mxu0
    %v1998 = vpop.f32.mrf.mxu0
    %v1999 = vpop.f32.mrf.mxu0
    %2000 = vdwg.mxu0
    %v2001 = vadd.f32 %v1949, %v1996
    %v2002 = vxor.u32 %v2001, 2147483648
    %v2003 = vmul.f32 %v2002, 1.442695
    %v2004 = vpow.pop %v2003
    %v2005 = vadd.f32 %v2004, 1.0
    %v2006 = vrcp.pop %v2005
    %v2007 = vmul.f32 1.0, %v2006
    %v2008 = vtanh.pop %v2001
    %v2009 = vmul.f32 %v2007, %v1907
    %2011 = vrot.lane.b32.xlu0 %v2008, 64
    %v2012 = vpop.permute.xlu0 %2011
    %v2014 = vmul.f32 %v2007, %v2012
    %2016 = vrot.lane.b32.xlu0 %v2014, 32
    %v2017 = vpop.permute.xlu0 %2016
    %v2019 = vadd.f32 %v2009, %v2017
    %v2020 = vtanh.pop %v2019
    %2022 = vrot.lane.b32.xlu0 %v2020, 64
    %v2023 = vpop.permute.xlu0 %2022
    %v2025 = vmul.f32 %v2007, %v2023
    %2026 = vmatprep.subr.bf16.mxu0 0
    %2027 = vmatpush1.bf16.msra.mxu0 0
    %2028 = vmatprep.subr.bf16.mxu0 0
    %2029 = vmatpush1.bf16.msra.mxu0 0
    %2030 = vmatprep.subr.bf16.mxu0 0
    %2031 = vmatpush1.bf16.msra.mxu0 0
    %2032 = vmatprep.subr.bf16.mxu0 0
    %2033 = vmatpush1.bf16.msra.mxu0 0
    %2034 = vmatprep.subr.bf16.mxu0 0
    %2035 = vmatpush1.bf16.msra.mxu0 0
    %2036 = vmatprep.subr.bf16.mxu0 0
    %2037 = vmatpush1.bf16.msra.mxu0 0
    %2038 = vmatprep.subr.bf16.mxu0 0
    %2039 = vmatpush1.bf16.msra.mxu0 %v1613
    %2040 = vmatprep.subr.bf16.mxu0 0
    %2041 = vmatpush1.bf16.msra.mxu0 %v1612
    %2042 = vmatprep.subr.bf16.mxu0 0
    %2043 = vmatpush2.bf16.msra.mxu0 0
    %2044 = vmatprep.subr.bf16.mxu0 0
    %2045 = vmatpush2.bf16.msra.mxu0 0
    %2046 = vmatprep.subr.bf16.mxu0 0
    %2047 = vmatpush2.bf16.msra.mxu0 0
    %2048 = vmatprep.subr.bf16.mxu0 0
    %2049 = vmatpush2.bf16.msra.mxu0 0
    %2050 = vmatprep.subr.bf16.mxu0 0
    %2051 = vmatpush2.bf16.msra.mxu0 0
    %2052 = vmatprep.subr.bf16.mxu0 0
    %2053 = vmatpush2.bf16.msra.mxu0 0
    %2054 = vmatprep.subr.bf16.mxu0 0
    %2055 = vmatpush2.bf16.msra.mxu0 0
    %2056 = vmatprep.subr.bf16.mxu0 0
    %2057 = vmatpush2.bf16.msra.mxu0 0
    %2058 = vmatprep.mubr.bf16.mxu0 0
    %2059 = vmatmul.mubr.bf16.gmra.mxu0 %v1291
    %v2060 = vpop.f32.mrf.mxu0
    %v2061 = vadd.f32 %v1603, %v2060
    %v2062 = vpop.f32.mrf.mxu0
    %v2063 = vpop.f32.mrf.mxu0
    %v2064 = vpop.f32.mrf.mxu0
    %2065 = vdwg.mxu0
    %v2066 = vpack.c.bf16 %v2025, %v2025
    %2068 = vrot.lane.b32.xlu0 %v2066, 32
    %v2069 = vpop.permute.xlu0 %2068
    %v2071 = vsel %vm191, %v2069, 0
    %2073 = vmatprep.subr.bf16.mxu0 0
    %2074 = vmatpush1.bf16.msra.mxu0 0
    %2075 = vmatprep.subr.bf16.mxu0 0
    %2076 = vmatpush1.bf16.msra.mxu0 0
    %2077 = vmatprep.subr.bf16.mxu0 0
    %2078 = vmatpush1.bf16.msra.mxu0 0
    %2079 = vmatprep.subr.bf16.mxu0 0
    %2080 = vmatpush1.bf16.msra.mxu0 0
    %2081 = vmatprep.subr.bf16.mxu0 0
    %2082 = vmatpush1.bf16.msra.mxu0 0
    %2083 = vmatprep.subr.bf16.mxu0 0
    %2084 = vmatpush1.bf16.msra.mxu0 0
    %2085 = vmatprep.subr.bf16.mxu0 0
    %2086 = vmatpush1.bf16.msra.mxu0 %v1727
    %2087 = vmatprep.subr.bf16.mxu0 0
    %2088 = vmatpush1.bf16.msra.mxu0 %v1726
    %2089 = vmatprep.subr.bf16.mxu0 0
    %2090 = vmatpush2.bf16.msra.mxu0 0
    %2091 = vmatprep.subr.bf16.mxu0 0
    %2092 = vmatpush2.bf16.msra.mxu0 0
    %2093 = vmatprep.subr.bf16.mxu0 0
    %2094 = vmatpush2.bf16.msra.mxu0 0
    %2095 = vmatprep.subr.bf16.mxu0 0
    %2096 = vmatpush2.bf16.msra.mxu0 0
    %2097 = vmatprep.subr.bf16.mxu0 0
    %2098 = vmatpush2.bf16.msra.mxu0 0
    %2099 = vmatprep.subr.bf16.mxu0 0
    %2100 = vmatpush2.bf16.msra.mxu0 0
    %2101 = vmatprep.subr.bf16.mxu0 0
    %2102 = vmatpush2.bf16.msra.mxu0 0
    %2103 = vmatprep.subr.bf16.mxu0 0
    %2104 = vmatpush2.bf16.msra.mxu0 0
    %2105 = vmatprep.mubr.bf16.mxu0 0
    %2106 = vmatmul.mubr.bf16.gmra.mxu0 %v2071
    %v2107 = vpop.f32.mrf.mxu0
    %v2108 = vadd.f32 0.0, %v2107
    %v2109 = vpop.f32.mrf.mxu0
    %v2110 = vpop.f32.mrf.mxu0
    %v2111 = vpop.f32.mrf.mxu0
    %2112 = vdwg.mxu0
    %v2113 = vadd.f32 %v2061, %v2108
    %v2114 = vxor.u32 %v2113, 2147483648
    %v2115 = vmul.f32 %v2114, 1.442695
    %v2116 = vpow.pop %v2115
    %v2117 = vadd.f32 %v2116, 1.0
    %v2118 = vrcp.pop %v2117
    %v2119 = vmul.f32 1.0, %v2118
    %v2120 = vtanh.pop %v2113
    %v2121 = vmul.f32 %v2119, %v2019
    %2123 = vrot.lane.b32.xlu0 %v2120, 64
    %v2124 = vpop.permute.xlu0 %2123
    %v2126 = vmul.f32 %v2119, %v2124
    %2128 = vrot.lane.b32.xlu0 %v2126, 32
    %v2129 = vpop.permute.xlu0 %2128
    %v2131 = vadd.f32 %v2121, %v2129
    %v2132 = vtanh.pop %v2131
    %2134 = vrot.lane.b32.xlu0 %v2132, 64
    %v2135 = vpop.permute.xlu0 %2134
    %v2137 = vmul.f32 %v2119, %v2135
    %2138 = vmatprep.subr.bf16.mxu0 0
    %2139 = vmatpush1.bf16.msra.mxu0 0
    %2140 = vmatprep.subr.bf16.mxu0 0
    %2141 = vmatpush1.bf16.msra.mxu0 0
    %2142 = vmatprep.subr.bf16.mxu0 0
    %2143 = vmatpush1.bf16.msra.mxu0 0
    %2144 = vmatprep.subr.bf16.mxu0 0
    %2145 = vmatpush1.bf16.msra.mxu0 0
    %2146 = vmatprep.subr.bf16.mxu0 0
    %2147 = vmatpush1.bf16.msra.mxu0 0
    %2148 = vmatprep.subr.bf16.mxu0 0
    %2149 = vmatpush1.bf16.msra.mxu0 0
    %2150 = vmatprep.subr.bf16.mxu0 0
    %2151 = vmatpush1.bf16.msra.mxu0 %v1613
    %2152 = vmatprep.subr.bf16.mxu0 0
    %2153 = vmatpush1.bf16.msra.mxu0 %v1612
    %2154 = vmatprep.subr.bf16.mxu0 0
    %2155 = vmatpush2.bf16.msra.mxu0 0
    %2156 = vmatprep.subr.bf16.mxu0 0
    %2157 = vmatpush2.bf16.msra.mxu0 0
    %2158 = vmatprep.subr.bf16.mxu0 0
    %2159 = vmatpush2.bf16.msra.mxu0 0
    %2160 = vmatprep.subr.bf16.mxu0 0
    %2161 = vmatpush2.bf16.msra.mxu0 0
    %2162 = vmatprep.subr.bf16.mxu0 0
    %2163 = vmatpush2.bf16.msra.mxu0 0
    %2164 = vmatprep.subr.bf16.mxu0 0
    %2165 = vmatpush2.bf16.msra.mxu0 0
    %2166 = vmatprep.subr.bf16.mxu0 0
    %2167 = vmatpush2.bf16.msra.mxu0 0
    %2168 = vmatprep.subr.bf16.mxu0 0
    %2169 = vmatpush2.bf16.msra.mxu0 0
    %2170 = vmatprep.mubr.bf16.mxu0 0
    %2171 = vmatmul.mubr.bf16.gmra.mxu0 %v1403
    %v2172 = vpop.f32.mrf.mxu0
    %v2173 = vadd.f32 %v1603, %v2172
    %v2174 = vpop.f32.mrf.mxu0
    %v2175 = vpop.f32.mrf.mxu0
    %v2176 = vpop.f32.mrf.mxu0
    %2177 = vdwg.mxu0
    %v2178 = vpack.c.bf16 %v2137, %v2137
    %2180 = vrot.lane.b32.xlu0 %v2178, 32
    %v2181 = vpop.permute.xlu0 %2180
    %v2183 = vsel %vm191, %v2181, 0
    %2185 = vmatprep.subr.bf16.mxu0 0
    %2186 = vmatpush1.bf16.msra.mxu0 0
    %2187 = vmatprep.subr.bf16.mxu0 0
    %2188 = vmatpush1.bf16.msra.mxu0 0
    %2189 = vmatprep.subr.bf16.mxu0 0
    %2190 = vmatpush1.bf16.msra.mxu0 0
    %2191 = vmatprep.subr.bf16.mxu0 0
    %2192 = vmatpush1.bf16.msra.mxu0 0
    %2193 = vmatprep.subr.bf16.mxu0 0
    %2194 = vmatpush1.bf16.msra.mxu0 0
    %2195 = vmatprep.subr.bf16.mxu0 0
    %2196 = vmatpush1.bf16.msra.mxu0 0
    %2197 = vmatprep.subr.bf16.mxu0 0
    %2198 = vmatpush1.bf16.msra.mxu0 %v1727
    %2199 = vmatprep.subr.bf16.mxu0 0
    %2200 = vmatpush1.bf16.msra.mxu0 %v1726
    %2201 = vmatprep.subr.bf16.mxu0 0
    %2202 = vmatpush2.bf16.msra.mxu0 0
    %2203 = vmatprep.subr.bf16.mxu0 0
    %2204 = vmatpush2.bf16.msra.mxu0 0
    %2205 = vmatprep.subr.bf16.mxu0 0
    %2206 = vmatpush2.bf16.msra.mxu0 0
    %2207 = vmatprep.subr.bf16.mxu0 0
    %2208 = vmatpush2.bf16.msra.mxu0 0
    %2209 = vmatprep.subr.bf16.mxu0 0
    %2210 = vmatpush2.bf16.msra.mxu0 0
    %2211 = vmatprep.subr.bf16.mxu0 0
    %2212 = vmatpush2.bf16.msra.mxu0 0
    %2213 = vmatprep.subr.bf16.mxu0 0
    %2214 = vmatpush2.bf16.msra.mxu0 0
    %2215 = vmatprep.subr.bf16.mxu0 0
    %2216 = vmatpush2.bf16.msra.mxu0 0
    %2217 = vmatprep.mubr.bf16.mxu0 0
    %2218 = vmatmul.mubr.bf16.gmra.mxu0 %v2183
    %v2219 = vpop.f32.mrf.mxu0
    %v2220 = vadd.f32 0.0, %v2219
    %v2221 = vpop.f32.mrf.mxu0
    %v2222 = vpop.f32.mrf.mxu0
    %v2223 = vpop.f32.mrf.mxu0
    %2224 = vdwg.mxu0
    %v2225 = vadd.f32 %v2173, %v2220
    %v2226 = vxor.u32 %v2225, 2147483648
    %v2227 = vmul.f32 %v2226, 1.442695
    %v2228 = vpow.pop %v2227
    %v2229 = vadd.f32 %v2228, 1.0
    %v2230 = vrcp.pop %v2229
    %v2231 = vmul.f32 1.0, %v2230
    %v2232 = vtanh.pop %v2225
    %v2233 = vmul.f32 %v2231, %v2131
    %2235 = vrot.lane.b32.xlu0 %v2232, 64
    %v2236 = vpop.permute.xlu0 %2235
    %v2238 = vmul.f32 %v2231, %v2236
    %2240 = vrot.lane.b32.xlu0 %v2238, 32
    %v2241 = vpop.permute.xlu0 %2240
    %v2243 = vadd.f32 %v2233, %v2241
    %v2244 = vtanh.pop %v2243
    %2246 = vrot.lane.b32.xlu0 %v2244, 64
    %v2247 = vpop.permute.xlu0 %2246
    %v2249 = vmul.f32 %v2231, %v2247
    %2250 = vmatprep.subr.bf16.mxu0 0
    %2251 = vmatpush1.bf16.msra.mxu0 0
    %2252 = vmatprep.subr.bf16.mxu0 0
    %2253 = vmatpush1.bf16.msra.mxu0 0
    %2254 = vmatprep.subr.bf16.mxu0 0
    %2255 = vmatpush1.bf16.msra.mxu0 0
    %2256 = vmatprep.subr.bf16.mxu0 0
    %2257 = vmatpush1.bf16.msra.mxu0 0
    %2258 = vmatprep.subr.bf16.mxu0 0
    %2259 = vmatpush1.bf16.msra.mxu0 0
    %2260 = vmatprep.subr.bf16.mxu0 0
    %2261 = vmatpush1.bf16.msra.mxu0 0
    %2262 = vmatprep.subr.bf16.mxu0 0
    %2263 = vmatpush1.bf16.msra.mxu0 %v1613
    %2264 = vmatprep.subr.bf16.mxu0 0
    %2265 = vmatpush1.bf16.msra.mxu0 %v1612
    %2266 = vmatprep.subr.bf16.mxu0 0
    %2267 = vmatpush2.bf16.msra.mxu0 0
    %2268 = vmatprep.subr.bf16.mxu0 0
    %2269 = vmatpush2.bf16.msra.mxu0 0
    %2270 = vmatprep.subr.bf16.mxu0 0
    %2271 = vmatpush2.bf16.msra.mxu0 0
    %2272 = vmatprep.subr.bf16.mxu0 0
    %2273 = vmatpush2.bf16.msra.mxu0 0
    %2274 = vmatprep.subr.bf16.mxu0 0
    %2275 = vmatpush2.bf16.msra.mxu0 0
    %2276 = vmatprep.subr.bf16.mxu0 0
    %2277 = vmatpush2.bf16.msra.mxu0 0
    %2278 = vmatprep.subr.bf16.mxu0 0
    %2279 = vmatpush2.bf16.msra.mxu0 0
    %2280 = vmatprep.subr.bf16.mxu0 0
    %2281 = vmatpush2.bf16.msra.mxu0 0
    %2282 = vmatprep.mubr.bf16.mxu0 0
    %2283 = vmatmul.mubr.bf16.gmra.mxu0 %v1521
    %v2284 = vpop.f32.mrf.mxu0
    %v2285 = vadd.f32 %v1603, %v2284
    %v2286 = vpop.f32.mrf.mxu0
    %v2287 = vpop.f32.mrf.mxu0
    %v2288 = vpop.f32.mrf.mxu0
    %2289 = vdwg.mxu0
    %v2290 = vpack.c.bf16 %v2249, %v2249
    %2292 = vrot.lane.b32.xlu0 %v2290, 32
    %v2293 = vpop.permute.xlu0 %2292
    %v2295 = vsel %vm191, %v2293, 0
    %2297 = vmatprep.subr.bf16.mxu0 0
    %2298 = vmatpush1.bf16.msra.mxu0 0
    %2299 = vmatprep.subr.bf16.mxu0 0
    %2300 = vmatpush1.bf16.msra.mxu0 0
    %2301 = vmatprep.subr.bf16.mxu0 0
    %2302 = vmatpush1.bf16.msra.mxu0 0
    %2303 = vmatprep.subr.bf16.mxu0 0
    %2304 = vmatpush1.bf16.msra.mxu0 0
    %2305 = vmatprep.subr.bf16.mxu0 0
    %2306 = vmatpush1.bf16.msra.mxu0 0
    %2307 = vmatprep.subr.bf16.mxu0 0
    %2308 = vmatpush1.bf16.msra.mxu0 0
    %2309 = vmatprep.subr.bf16.mxu0 0
    %2310 = vmatpush1.bf16.msra.mxu0 %v1727
    %2311 = vmatprep.subr.bf16.mxu0 0
    %2312 = vmatpush1.bf16.msra.mxu0 %v1726
    %2313 = vmatprep.subr.bf16.mxu0 0
    %2314 = vmatpush2.bf16.msra.mxu0 0
    %2315 = vmatprep.subr.bf16.mxu0 0
    %2316 = vmatpush2.bf16.msra.mxu0 0
    %2317 = vmatprep.subr.bf16.mxu0 0
    %2318 = vmatpush2.bf16.msra.mxu0 0
    %2319 = vmatprep.subr.bf16.mxu0 0
    %2320 = vmatpush2.bf16.msra.mxu0 0
    %2321 = vmatprep.subr.bf16.mxu0 0
    %2322 = vmatpush2.bf16.msra.mxu0 0
    %2323 = vmatprep.subr.bf16.mxu0 0
    %2324 = vmatpush2.bf16.msra.mxu0 0
    %2325 = vmatprep.subr.bf16.mxu0 0
    %2326 = vmatpush2.bf16.msra.mxu0 0
    %2327 = vmatprep.subr.bf16.mxu0 0
    %2328 = vmatpush2.bf16.msra.mxu0 0
    %2329 = vmatprep.mubr.bf16.mxu0 0
    %2330 = vmatmul.mubr.bf16.gmra.mxu0 %v2295
    %v2331 = vpop.f32.mrf.mxu0
    %v2332 = vadd.f32 0.0, %v2331
    %v2333 = vpop.f32.mrf.mxu0
    %v2334 = vpop.f32.mrf.mxu0
    %v2335 = vpop.f32.mrf.mxu0
    %2336 = vdwg.mxu0
    %v2337 = vadd.f32 %v2285, %v2332
    %v2338 = vxor.u32 %v2337, 2147483648
    %v2339 = vmul.f32 %v2338, 1.442695
    %v2340 = vpow.pop %v2339
    %v2341 = vadd.f32 %v2340, 1.0
    %v2342 = vrcp.pop %v2341
    %v2343 = vmul.f32 1.0, %v2342
    %v2344 = vtanh.pop %v2337
    %v2345 = vmul.f32 %v2343, %v2243
    %2347 = vrot.lane.b32.xlu0 %v2344, 64
    %v2348 = vpop.permute.xlu0 %2347
    %v2350 = vmul.f32 %v2343, %v2348
    %2352 = vrot.lane.b32.xlu0 %v2350, 32
    %v2353 = vpop.permute.xlu0 %2352
    %v2355 = vadd.f32 %v2345, %v2353
    %v2356 = vtanh.pop %v2355
    %2358 = vrot.lane.b32.xlu0 %v2356, 64
    %v2359 = vpop.permute.xlu0 %2358
    %v2361 = vmul.f32 %v2343, %v2359
    %2363 = vrot.lane.b32.xlu0 %v1588, 32
    %v2364 = vpop.permute.xlu0 %2363
    %v2366 = vsel %vm191, %v2364, 0
    %2368 = vmatprep.subr.bf16.mxu0 0
    %2369 = vmatpush1.bf16.msra.mxu0 0
    %2370 = vmatprep.subr.bf16.mxu0 0
    %2371 = vmatpush1.bf16.msra.mxu0 0
    %2372 = vmatprep.subr.bf16.mxu0 0
    %2373 = vmatpush1.bf16.msra.mxu0 0
    %2374 = vmatprep.subr.bf16.mxu0 0
    %2375 = vmatpush1.bf16.msra.mxu0 0
    %2376 = vmatprep.subr.bf16.mxu0 0
    %2377 = vmatpush1.bf16.msra.mxu0 0
    %2378 = vmatprep.subr.bf16.mxu0 0
    %2379 = vmatpush1.bf16.msra.mxu0 0
    %2380 = vmatprep.subr.bf16.mxu0 0
    %2381 = vmatpush1.bf16.msra.mxu0 %v1613
    %2382 = vmatprep.subr.bf16.mxu0 0
    %2383 = vmatpush1.bf16.msra.mxu0 %v1612
    %2384 = vmatprep.subr.bf16.mxu0 0
    %2385 = vmatpush2.bf16.msra.mxu0 0
    %2386 = vmatprep.subr.bf16.mxu0 0
    %2387 = vmatpush2.bf16.msra.mxu0 0
    %2388 = vmatprep.subr.bf16.mxu0 0
    %2389 = vmatpush2.bf16.msra.mxu0 0
    %2390 = vmatprep.subr.bf16.mxu0 0
    %2391 = vmatpush2.bf16.msra.mxu0 0
    %2392 = vmatprep.subr.bf16.mxu0 0
    %2393 = vmatpush2.bf16.msra.mxu0 0
    %2394 = vmatprep.subr.bf16.mxu0 0
    %2395 = vmatpush2.bf16.msra.mxu0 0
    %2396 = vmatprep.subr.bf16.mxu0 0
    %2397 = vmatpush2.bf16.msra.mxu0 0
    %2398 = vmatprep.subr.bf16.mxu0 0
    %2399 = vmatpush2.bf16.msra.mxu0 0
    %2400 = vmatprep.mubr.bf16.mxu0 0
    %2401 = vmatmul.mubr.bf16.gmra.mxu0 %v2366
    %v2402 = vpop.f32.mrf.mxu0
    %v2403 = vadd.f32 %v1603, %v2402
    %v2404 = vpop.f32.mrf.mxu0
    %v2405 = vpop.f32.mrf.mxu0
    %v2406 = vpop.f32.mrf.mxu0
    %2407 = vdwg.mxu0
    %v2408 = vpack.c.bf16 %v2361, %v2361
    %2410 = vrot.lane.b32.xlu0 %v2408, 32
    %v2411 = vpop.permute.xlu0 %2410
    %v2413 = vsel %vm191, %v2411, 0
    %2415 = vmatprep.subr.bf16.mxu0 0
    %2416 = vmatpush1.bf16.msra.mxu0 0
    %2417 = vmatprep.subr.bf16.mxu0 0
    %2418 = vmatpush1.bf16.msra.mxu0 0
    %2419 = vmatprep.subr.bf16.mxu0 0
    %2420 = vmatpush1.bf16.msra.mxu0 0
    %2421 = vmatprep.subr.bf16.mxu0 0
    %2422 = vmatpush1.bf16.msra.mxu0 0
    %2423 = vmatprep.subr.bf16.mxu0 0
    %2424 = vmatpush1.bf16.msra.mxu0 0
    %2425 = vmatprep.subr.bf16.mxu0 0
    %2426 = vmatpush1.bf16.msra.mxu0 0
    %2427 = vmatprep.subr.bf16.mxu0 0
    %2428 = vmatpush1.bf16.msra.mxu0 %v1727
    %2429 = vmatprep.subr.bf16.mxu0 0
    %2430 = vmatpush1.bf16.msra.mxu0 %v1726
    %2431 = vmatprep.subr.bf16.mxu0 0
    %2432 = vmatpush2.bf16.msra.mxu0 0
    %2433 = vmatprep.subr.bf16.mxu0 0
    %2434 = vmatpush2.bf16.msra.mxu0 0
    %2435 = vmatprep.subr.bf16.mxu0 0
    %2436 = vmatpush2.bf16.msra.mxu0 0
    %2437 = vmatprep.subr.bf16.mxu0 0
    %2438 = vmatpush2.bf16.msra.mxu0 0
    %2439 = vmatprep.subr.bf16.mxu0 0
    %2440 = vmatpush2.bf16.msra.mxu0 0
    %2441 = vmatprep.subr.bf16.mxu0 0
    %2442 = vmatpush2.bf16.msra.mxu0 0
    %2443 = vmatprep.subr.bf16.mxu0 0
    %2444 = vmatpush2.bf16.msra.mxu0 0
    %2445 = vmatprep.subr.bf16.mxu0 0
    %2446 = vmatpush2.bf16.msra.mxu0 0
    %2447 = vmatprep.mubr.bf16.mxu0 0
    %2448 = vmatmul.mubr.bf16.gmra.mxu0 %v2413
    %v2449 = vpop.f32.mrf.mxu0
    %v2450 = vadd.f32 0.0, %v2449
    %v2451 = vpop.f32.mrf.mxu0
    %v2452 = vpop.f32.mrf.mxu0
    %v2453 = vpop.f32.mrf.mxu0
    %2454 = vdwg.mxu0
    %v2455 = vadd.f32 %v2403, %v2450
    %v2456 = vxor.u32 %v2455, 2147483648
    %v2457 = vmul.f32 %v2456, 1.442695
    %v2458 = vpow.pop %v2457
    %v2459 = vadd.f32 %v2458, 1.0
    %v2460 = vrcp.pop %v2459
    %v2461 = vmul.f32 1.0, %v2460
    %v2462 = vtanh.pop %v2455
    %v2463 = vmul.f32 %v2461, %v2355
    %2465 = vrot.lane.b32.xlu0 %v2462, 64
    %v2466 = vpop.permute.xlu0 %2465
    %v2468 = vmul.f32 %v2461, %v2466
    %2470 = vrot.lane.b32.xlu0 %v2468, 32
    %v2471 = vpop.permute.xlu0 %2470
    %v2473 = vadd.f32 %v2463, %v2471
    %v2474 = vtanh.pop %v2473
    %2476 = vrot.lane.b32.xlu0 %v2474, 64
    %v2477 = vpop.permute.xlu0 %2476
    %v2479 = vmul.f32 %v2461, %v2477
    %v2480 = vpack.c.bf16 %v2479, %v2479
    %v2481 = vld [vmem:[%s4] sm:$0xf]
    %v2482 = vld [vmem:[%s4 + $0x4] sm:$0xf]
    %v2483 = vld [vmem:[%s4 + $0x8] sm:$0xf]
    %v2484 = vld [vmem:[%s4 + $0xc] sm:$0xf]
    %v2485 = vld [vmem:[%s5] sm:$0x1]
    %v2487 = vlaneseq
    %v2488 = vshrl.u32 %v2487, 7
    %v2489 = vsub.s32 0, %v2488
    %v2490 = vrot.slane %v2485, %v2489
    %2493 = vrot.lane.b32.xlu0 %v2480, 32
    %v2494 = vpop.permute.xlu0 %2493
    %v2499 = vunpack.c.l.b16 %v2481
    %v2500 = vunpack.c.l.b16 %v2482
    %v2501 = vunpack.c.l.b16 %v2483
    %v2502 = vunpack.c.l.b16 %v2484
    %v2503 = vpack.c.b16 %v2500, %v2499
    %v2504 = vpack.c.b16 %v2502, %v2501
    %v2508 = vsel %vm191, %v2494, 0
    %2510 = vmatprep.subr.bf16.mxu0 0
    %2511 = vmatpush1.bf16.msra.mxu0 0
    %2512 = vmatprep.subr.bf16.mxu0 0
    %2513 = vmatpush1.bf16.msra.mxu0 0
    %2514 = vmatprep.subr.bf16.mxu0 0
    %2515 = vmatpush1.bf16.msra.mxu0 0
    %2516 = vmatprep.subr.bf16.mxu0 0
    %2517 = vmatpush1.bf16.msra.mxu0 0
    %2518 = vmatprep.subr.bf16.mxu0 0
    %2519 = vmatpush1.bf16.msra.mxu0 0
    %2520 = vmatprep.subr.bf16.mxu0 0
    %2521 = vmatpush1.bf16.msra.mxu0 0
    %2522 = vmatprep.subr.bf16.mxu0 0
    %2523 = vmatpush1.bf16.msra.mxu0 %v2504
    %2524 = vmatprep.subr.bf16.mxu0 0
    %2525 = vmatpush1.bf16.msra.mxu0 %v2503
    %2526 = vmatprep.subr.bf16.mxu0 0
    %2527 = vmatpush2.bf16.msra.mxu0 0
    %2528 = vmatprep.subr.bf16.mxu0 0
    %2529 = vmatpush2.bf16.msra.mxu0 0
    %2530 = vmatprep.subr.bf16.mxu0 0
    %2531 = vmatpush2.bf16.msra.mxu0 0
    %2532 = vmatprep.subr.bf16.mxu0 0
    %2533 = vmatpush2.bf16.msra.mxu0 0
    %2534 = vmatprep.subr.bf16.mxu0 0
    %2535 = vmatpush2.bf16.msra.mxu0 0
    %2536 = vmatprep.subr.bf16.mxu0 0
    %2537 = vmatpush2.bf16.msra.mxu0 0
    %2538 = vmatprep.subr.bf16.mxu0 0
    %2539 = vmatpush2.bf16.msra.mxu0 0
    %2540 = vmatprep.subr.bf16.mxu0 0
    %2541 = vmatpush2.bf16.msra.mxu0 0
    %2542 = vmatprep.mubr.bf16.mxu0 0
    %2543 = vmatmul.mubr.bf16.gmra.mxu0 %v2508
    %v2544 = vpop.f32.mrf.mxu0
    %v2545 = vadd.f32 %v2490, %v2544
    %v2546 = vpop.f32.mrf.mxu0
    %v2547 = vpop.f32.mrf.mxu0
    %v2548 = vpop.f32.mrf.mxu0
    %2549 = vdwg.mxu0
    %vm2550 = vcmask 25600
    %v2551 = vsel %vm2550, %v2545, -inf
    %2552 = vmax.xlane.f32.xlu0 %v2551
    %v2553 = vpop.xlane.xlu0 %2552
    %v2554 = vsub.f32 %v2545, %v2553
    %v2555 = vmul.f32 %v2554, 1.442695
    %v2556 = vpow.pop %v2555
    %v2557 = vsel %vm2550, %v2556, 0.0
    %2558 = vadd.xlane.f32.xlu0 %v2557
    %v2559 = vpop.xlane.xlu0 %2558
    %v2560 = vlog2.pop %v2559
    %v2561 = vmul.f32 %v2560, 0.6931472
    %v2562 = vsub.f32 %v2554, %v2561
    %2563 = vst.msk [vmem:[#allocation7] sm:$0x3] %vm2550, %v2562
    // Predicated region
    $region34: #{classifier_forward.1} parent=1 // pred_check
      _
    $region35: #{classifier_forward.1} parent=1 // pred_check_branch
      %2565 = sbr.rel (0) target = $region37
    $region36: #{classifier_forward.1} parent=1 // pred_region
      %s2567 = ssub.s32 32, 32
      %2568 = vsyncadd [#allocation4], %s2567
      %s2570 = sshll.u32 [#allocation7], 4
      %s2571 = int_to_ptr.vmem [resolvable:$true] %s2570
      %2573 = dma.vmem_to_hbm [thread:$0]  %s2571, 32, %s6, [#allocation4]
    $region37: #{classifier_forward.1} parent=1 // pred_fallthru
      _
    // Predicated region
    $region38: #{classifier_forward.1} parent=1 // pred_check
      _
    $region39: #{classifier_forward.1} parent=1 // pred_check_branch
      %2575 = sbr.rel (0) target = $region41
    $region40: #{classifier_forward.1} parent=1 // pred_region
      %2576 = dma.done [#allocation4], 32
    $region41: #{classifier_forward.1} parent=1 // pred_fallthru
      _
    %2577 = vsyncpa [#allocation3], 1
    %2578 = vsyncpa [#allocation6], 1
    %2579 = vsyncpa [#allocation4], 1

</llo_original>
